<compile_context>
chip_gen: v5e
topology: v5e:2x2
jax: 0.10.0
libtpu: 0.0.40
codegen_flags: <defaults>
</compile_context>

<pallas_src>
import jax
import jax.numpy as jnp
from jax.experimental import pallas as pl
from jax.experimental.pallas import tpu as pltpu

NEG_INF = -1e30
BN_EPS = 1e-5
NB_CHUNK = 8          # neighbor-chunk for the running max (live slab = rows*8*D*4 B)
VMEM_LIMIT = 32 * 1024 * 1024   # explicit scoped-VMEM budget (safe on v5e/v6e/v7x)


# ----------------------------------------------------------------------------
# Fused kernel: block_num GraphConv blocks + pyramid readout + classifier head
# ----------------------------------------------------------------------------
def hagnet_kernel(x_ref, adj_ref, member_ref,
                  w_x_ref, b_x_ref, w_m_ref, b_m_ref,
                  w0_ref, b0_ref, w1_ref, b1_ref, w2_ref, b2_ref,
                  graphs_ref, logits_ref):
    x = x_ref[...]                         # (N, D)  node features
    adj = adj_ref[...]                     # (N, N)  adj[center, neighbor]
    member = member_ref[...]               # (B, N)  one-hot graph membership
    N, D = x.shape
    block_num = w_x_ref.shape[0]

    # Guards for empty neighborhoods / graphs: hoisted out of the block loop
    # (adj and membership are constant for the whole forward).
    has_nbr = jnp.sum(adj, axis=1, keepdims=True) > 0.0       # (N, 1)
    has_node = jnp.sum(member, axis=1, keepdims=True) > 0.0   # (B, 1)

    def masked_rowmax(sel, vals):
        # max over rows of `vals` selected by `sel` (0/1), per output row.
        # Running max over chunks of the selection axis so only a
        # (rows, NB_CHUNK, D) slab is ever live (never (rows, N, D)).
        rows = sel.shape[0]
        n = vals.shape[0]
        run = jnp.full((rows, vals.shape[1]), NEG_INF, dtype=jnp.float32)
        for s in range(0, n, NB_CHUNK):
            e = min(s + NB_CHUNK, n)
            sel_c = sel[:, s:e]                                # (rows, c)
            val_c = vals[s:e, :]                               # (c, D)
            m = jnp.where(sel_c[:, :, None] > 0.0, val_c[None, :, :], NEG_INF)
            run = jnp.maximum(run, jnp.max(m, axis=1))
        return run

    # ---- GraphConv blocks (dense connection carried in registers/VMEM) ----
    hiddens = [x]
    block_in = x
    for i in range(block_num):
        # packed x-side matmul: [msg | gh_r | gh_z | gh_n] = x @ (D, 4D)
        xw = jnp.dot(block_in, w_x_ref[i],
                     preferred_element_type=jnp.float32) + b_x_ref[i]      # (N, 4D)
        msg = xw[:, :D]
        gh = xw[:, D:]                                                     # (N, 3D)

        # 'sum' aggregation on the MXU
        sum_agg = jnp.dot(adj, msg, preferred_element_type=jnp.float32)   # (N, D)
        # 'max' aggregation via chunked running max (no (N,N,D) intermediate)
        max_agg = masked_rowmax(adj, msg)
        max_agg = jnp.where(has_nbr, max_agg, 0.0)
        merged = sum_agg + max_agg          # multiple_aggregation_merge='sum'

        # packed merged-side matmul: [gi_r | gi_z | gi_n] = merged @ (D, 3D)
        gi = jnp.dot(merged, w_m_ref[i],
                     preferred_element_type=jnp.float32) + b_m_ref[i]      # (N, 3D)

        # GRU-cell node update (input = merged aggregation, hidden = block_in)
        r = jax.nn.sigmoid(gi[:, :D] + gh[:, :D])
        z = jax.nn.sigmoid(gi[:, D:2 * D] + gh[:, D:2 * D])
        n_ = jnp.tanh(gi[:, 2 * D:] + r * gh[:, 2 * D:])
        h = (1.0 - z) * n_ + z * block_in

        hiddens.append(h)
        block_in = block_in + h             # add_dense_connection=True

    # ---- pyramid readout (sum + max pooling, merged by sum), fused concat ---
    pooled = []
    for h in hiddens:
        sum_pool = jnp.dot(member, h, preferred_element_type=jnp.float32)  # (B, D)
        max_pool = masked_rowmax(member, h)
        max_pool = jnp.where(has_node, max_pool, 0.0)
        pooled.append(sum_pool + max_pool)
    graphs = jnp.concatenate(pooled, axis=1)          # (B, D*(block_num+1)) lane-dense
    graphs_ref[...] = graphs

    # ---- classifier head (BN already folded into w0/b0, w1/b1) -------------
    y = jnp.dot(graphs, w0_ref[...], preferred_element_type=jnp.float32) + b0_ref[...]
    y = jax.nn.gelu(y, approximate=True)
    y = jnp.dot(y, w1_ref[...], preferred_element_type=jnp.float32) + b1_ref[...]
    y = jax.nn.gelu(y, approximate=True)
    # logits written to a 128-lane padded slab (unmasked vst); sliced in glue
    logits_ref[...] = jnp.dot(y, w2_ref[...],
                              preferred_element_type=jnp.float32) + b2_ref[...]


# ----------------------------------------------------------------------------
# Parameter init (PyTorch-style layout) + one-time packing / BN folding
# ----------------------------------------------------------------------------
def _init_linear(key, fan_in, fan_out):
    kw, kb = jax.random.split(key)
    bound = 1.0 / float(fan_in) ** 0.5
    w = jax.random.uniform(kw, (fan_in, fan_out), jnp.float32, -bound, bound)
    b = jax.random.uniform(kb, (fan_out,), jnp.float32, -bound, bound)
    return w, b


def init_params(key, D, hidden_dim, classifier_dim, output_dim, block_num):
    keys = jax.random.split(key, block_num + 3)
    blocks = []
    bound = 1.0 / float(D) ** 0.5
    for i in range(block_num):
        kb = jax.random.split(keys[i], 5)
        w_msg, b_msg = _init_linear(kb[0], D, D)
        blocks.append(dict(
            w_msg=w_msg, b_msg=b_msg,
            w_i=jax.random.uniform(kb[1], (3, D, D), jnp.float32, -bound, bound),
            b_i=jax.random.uniform(kb[2], (3, D), jnp.float32, -bound, bound),
            w_h=jax.random.uniform(kb[3], (3, D, D), jnp.float32, -bound, bound),
            b_h=jax.random.uniform(kb[4], (3, D), jnp.float32, -bound, bound),
        ))
    readout_dim = D * (block_num + 1)
    w0, b0 = _init_linear(keys[block_num], readout_dim, hidden_dim)
    w1, b1 = _init_linear(keys[block_num + 1], hidden_dim, classifier_dim)
    w2, b2 = _init_linear(keys[block_num + 2], classifier_dim, output_dim)
    head = dict(
        w0=w0, b0=b0,
        bn0_gamma=jnp.ones((hidden_dim,), jnp.float32),
        bn0_beta=jnp.zeros((hidden_dim,), jnp.float32),
        bn0_mean=jnp.zeros((hidden_dim,), jnp.float32),
        bn0_var=jnp.ones((hidden_dim,), jnp.float32),
        w1=w1, b1=b1,
        bn1_gamma=jnp.ones((classifier_dim,), jnp.float32),
        bn1_beta=jnp.zeros((classifier_dim,), jnp.float32),
        bn1_mean=jnp.zeros((classifier_dim,), jnp.float32),
        bn1_var=jnp.ones((classifier_dim,), jnp.float32),
        w2=w2, b2=b2,
    )
    return dict(blocks=blocks, head=head)


def pack_params(params):
    """One-time packing: wide GRU/message weights, folded eval-mode BN,
    lane-padded logits projection, 2-D (1, D) biases."""
    blocks = params["blocks"]
    W_X = jnp.stack([jnp.concatenate(
        [b["w_msg"], b["w_h"][0], b["w_h"][1], b["w_h"][2]], axis=1) for b in blocks])
    B_X = jnp.stack([jnp.concatenate(
        [b["b_msg"], b["b_h"][0], b["b_h"][1], b["b_h"][2]], axis=0)[None, :] for b in blocks])
    W_M = jnp.stack([jnp.concatenate(
        [b["w_i"][0], b["w_i"][1], b["w_i"][2]], axis=1) for b in blocks])
    B_M = jnp.stack([jnp.concatenate(
        [b["b_i"][0], b["b_i"][1], b["b_i"][2]], axis=0)[None, :] for b in blocks])

    hd = params["head"]
    s0 = hd["bn0_gamma"] * jax.lax.rsqrt(hd["bn0_var"] + BN_EPS)
    w0 = hd["w0"] * s0[None, :]
    b0 = ((hd["b0"] - hd["bn0_mean"]) * s0 + hd["bn0_beta"])[None, :]
    s1 = hd["bn1_gamma"] * jax.lax.rsqrt(hd["bn1_var"] + BN_EPS)
    w1 = hd["w1"] * s1[None, :]
    b1 = ((hd["b1"] - hd["bn1_mean"]) * s1 + hd["bn1_beta"])[None, :]

    out_dim = hd["w2"].shape[1]
    pad = ((out_dim + 127) // 128) * 128
    w2 = jnp.zeros((hd["w2"].shape[0], pad), jnp.float32).at[:, :out_dim].set(hd["w2"])
    b2 = jnp.zeros((1, pad), jnp.float32).at[:, :out_dim].set(hd["b2"])

    packed = dict(W_X=W_X, B_X=B_X, W_M=W_M, B_M=B_M,
                  w0=w0, b0=b0, w1=w1, b1=b1, w2=w2, b2=b2)
    return packed, out_dim


# ----------------------------------------------------------------------------
# Forward pass wrapper: a single pallas_call for the whole model
# ----------------------------------------------------------------------------
def model_4v4_forward(packed, x, adj, member_onehot, *, out_dim):
    N, D = x.shape
    B = member_onehot.shape[0]
    block_num = packed["W_X"].shape[0]
    R = D * (block_num + 1)
    pad = packed["w2"].shape[1]

    args = (x, adj, member_onehot,
            packed["W_X"], packed["B_X"], packed["W_M"], packed["B_M"],
            packed["w0"], packed["b0"], packed["w1"], packed["b1"],
            packed["w2"], packed["b2"])
    vmem = lambda: pl.BlockSpec(memory_space=pltpu.MemorySpace.VMEM)

    graphs, logits_padded = pl.pallas_call(
        hagnet_kernel,
        out_shape=(jax.ShapeDtypeStruct((B, R), jnp.float32),
                   jax.ShapeDtypeStruct((B, pad), jnp.float32)),
        in_specs=[vmem() for _ in args],
        out_specs=(vmem(), vmem()),
        compiler_params=pltpu.CompilerParams(vmem_limit_bytes=VMEM_LIMIT),
    )(*args)

    return logits_padded[:, :out_dim], graphs


# ----------------------------------------------------------------------------
# Pure-JAX reference (unpacked params, un-folded BN) for validation
# ----------------------------------------------------------------------------
def reference_forward(params, x, adj, member):
    P = jax.lax.Precision.HIGHEST
    dot = lambda a, b: jnp.dot(a, b, precision=P)
    deg = jnp.sum(adj, axis=1, keepdims=True)
    hiddens = [x]
    block_in = x
    for blk in params["blocks"]:
        msg = dot(block_in, blk["w_msg"]) + blk["b_msg"]
        sum_agg = dot(adj, msg)
        masked = jnp.where(adj[:, :, None] > 0, msg[None, :, :], NEG_INF)
        max_agg = jnp.where(deg > 0, jnp.max(masked, axis=1), 0.0)
        merged = sum_agg + max_agg
        gi = [dot(merged, blk["w_i"][k]) + blk["b_i"][k] for k in range(3)]
        gh = [dot(block_in, blk["w_h"][k]) + blk["b_h"][k] for k in range(3)]
        r = jax.nn.sigmoid(gi[0] + gh[0])
        z = jax.nn.sigmoid(gi[1] + gh[1])
        n = jnp.tanh(gi[2] + r * gh[2])
        h = (1.0 - z) * n + z * block_in
        hiddens.append(h)
        block_in = block_in + h
    cnt = jnp.sum(member, axis=1, keepdims=True)
    pooled = []
    for h in hiddens:
        sp = dot(member, h)
        masked = jnp.where(member[:, :, None] > 0, h[None, :, :], NEG_INF)
        mp = jnp.where(cnt > 0, jnp.max(masked, axis=1), 0.0)
        pooled.append(sp + mp)
    graphs = jnp.concatenate(pooled, axis=1)
    hd = params["head"]
    bn = lambda v, g, be, m, var: (v - m) * jax.lax.rsqrt(var + BN_EPS) * g + be
    y = dot(graphs, hd["w0"]) + hd["b0"]
    y = jax.nn.gelu(bn(y, hd["bn0_gamma"], hd["bn0_beta"], hd["bn0_mean"], hd["bn0_var"]),
                    approximate=True)
    y = dot(y, hd["w1"]) + hd["b1"]
    y = jax.nn.gelu(bn(y, hd["bn1_gamma"], hd["bn1_beta"], hd["bn1_mean"], hd["bn1_var"]),
                    approximate=True)
    return dot(y, hd["w2"]) + hd["b2"], graphs


if __name__ == "__main__":
    # Small synthetic config: hidden_dim == classifier_dim so bn1(hidden_dim)
    # is shape-consistent (as the PyTorch module requires).
    N, D, B = 16, 32, 2
    block_num, hidden_dim, classifier_dim, output_dim = 3, 32, 32, 2

    key = jax.random.PRNGKey(0)
    kx, kp = jax.random.split(key)
    x = jax.random.normal(kx, (N, D), jnp.float32)

    # edges: (2, E) int, rows = (neighbor_node, center_node); ring graph per graph
    edge_list = []
    for g in range(B):
        base = g * (N // B)
        n_g = N // B
        for i in range(n_g):
            a, b = base + i, base + (i + 1) % n_g
            edge_list.append((a, b))
            edge_list.append((b, a))
    edges = jnp.array(edge_list, dtype=jnp.int32).T                      # (2, 32)
    membership = jnp.array([0] * (N // B) + [1] * (N // B), dtype=jnp.int32)

    # glue: dense adjacency (center x neighbor) and one-hot membership
    adj = jnp.zeros((N, N), jnp.float32).at[edges[1], edges[0]].set(1.0)
    member_onehot = jax.nn.one_hot(membership, B, dtype=jnp.float32).T   # (B, N)

    params = init_params(kp, D, hidden_dim, classifier_dim, output_dim, block_num)
    packed, out_dim = pack_params(params)   # one-time pack / BN fold / pad

    forward = jax.jit(model_4v4_forward, static_argnames=("out_dim",))
    logits, graphs = forward(packed, x, adj, member_onehot, out_dim=out_dim)
    jax.block_until_ready((logits, graphs))

    # validate against the pure-JAX reference
    ref_logits, ref_graphs = reference_forward(params, x, adj, member_onehot)

    assert logits.shape == (B, output_dim)
    assert graphs.shape == (B, D * (block_num + 1))
    assert bool(jnp.all(jnp.isfinite(logits))) and bool(jnp.all(jnp.isfinite(graphs)))
    assert float(jnp.max(jnp.abs(graphs - ref_graphs))) < 1e-2
    assert float(jnp.max(jnp.abs(logits - ref_logits))) < 1e-2
    print("KERNEL_OK")
</pallas_src>

<mosaic_0001>
module attributes {stable_mosaic.version = 11 : i64} {
  func.func @hagnet_kernel(%arg0: memref<16x32xf32, #tpu.memory_space<vmem>>, %arg1: memref<16x16xf32, #tpu.memory_space<vmem>>, %arg2: memref<2x16xf32, #tpu.memory_space<vmem>>, %arg3: memref<3x32x128xf32, #tpu.memory_space<vmem>>, %arg4: memref<3x1x128xf32, #tpu.memory_space<vmem>>, %arg5: memref<3x32x96xf32, #tpu.memory_space<vmem>>, %arg6: memref<3x1x96xf32, #tpu.memory_space<vmem>>, %arg7: memref<128x32xf32, #tpu.memory_space<vmem>>, %arg8: memref<1x32xf32, #tpu.memory_space<vmem>>, %arg9: memref<32x32xf32, #tpu.memory_space<vmem>>, %arg10: memref<1x32xf32, #tpu.memory_space<vmem>>, %arg11: memref<32x128xf32, #tpu.memory_space<vmem>>, %arg12: memref<1x128xf32, #tpu.memory_space<vmem>>, %arg13: memref<2x128xf32, #tpu.memory_space<vmem>>, %arg14: memref<2x128xf32, #tpu.memory_space<vmem>>) attributes {dimension_semantics = [], scalar_prefetch = 0 : i64, scratch_operands = 0 : i64, tpu.core_type = #tpu.core_type<tc>} {
    %c0 = arith.constant 0 : index
    %c0_0 = arith.constant 0 : index
    %0 = vector.load %arg0[%c0, %c0_0] : memref<16x32xf32, #tpu.memory_space<vmem>>, vector<16x32xf32>
    %c0_1 = arith.constant 0 : index
    %c0_2 = arith.constant 0 : index
    %1 = vector.load %arg1[%c0_1, %c0_2] : memref<16x16xf32, #tpu.memory_space<vmem>>, vector<16x16xf32>
    %c0_3 = arith.constant 0 : index
    %c0_4 = arith.constant 0 : index
    %2 = vector.load %arg2[%c0_3, %c0_4] : memref<2x16xf32, #tpu.memory_space<vmem>>, vector<2x16xf32>
    %cst = arith.constant dense<0.000000e+00> : vector<16xf32>
    %3 = vector.multi_reduction <add>, %1, %cst [1] : vector<16x16xf32> to vector<16xf32>
    %4 = vector.shape_cast %3 : vector<16xf32> to vector<16x1xf32>
    %cst_5 = arith.constant 0.000000e+00 : f32
    %5 = vector.broadcast %cst_5 : f32 to vector<16x1xf32>
    %6 = arith.cmpf ogt, %4, %5 : vector<16x1xf32>
    %cst_6 = arith.constant dense<0.000000e+00> : vector<2xf32>
    %7 = vector.multi_reduction <add>, %2, %cst_6 [1] : vector<2x16xf32> to vector<2xf32>
    %8 = vector.shape_cast %7 : vector<2xf32> to vector<2x1xf32>
    %cst_7 = arith.constant 0.000000e+00 : f32
    %9 = vector.broadcast %cst_7 : f32 to vector<2x1xf32>
    %10 = arith.cmpf ogt, %8, %9 : vector<2x1xf32>
    %c0_8 = arith.constant 0 : index
    %c0_9 = arith.constant 0 : index
    %c0_10 = arith.constant 0 : index
    %11 = vector.load %arg3[%c0_8, %c0_9, %c0_10] : memref<3x32x128xf32, #tpu.memory_space<vmem>>, vector<1x32x128xf32>
    %12 = vector.shape_cast %11 : vector<1x32x128xf32> to vector<32x128xf32>
    %cst_11 = arith.constant dense<0.000000e+00> : vector<16x128xf32>
    %13 = tpu.matmul %0, %12, %cst_11 {dimension_numbers = #tpu.dot_dimension_numbers<[1], [0], [0], [1], [0, 0, 1, 1], [], []>} : vector<16x32xf32>, vector<32x128xf32>, vector<16x128xf32> -> vector<16x128xf32>
    %c0_12 = arith.constant 0 : index
    %c0_13 = arith.constant 0 : index
    %c0_14 = arith.constant 0 : index
    %14 = vector.load %arg4[%c0_12, %c0_13, %c0_14] : memref<3x1x128xf32, #tpu.memory_space<vmem>>, vector<1x1x128xf32>
    %15 = vector.shape_cast %14 : vector<1x1x128xf32> to vector<1x128xf32>
    %16 = vector.broadcast %15 : vector<1x128xf32> to vector<16x128xf32>
    %17 = arith.addf %13, %16 : vector<16x128xf32>
    %18 = vector.extract_strided_slice %17 {offsets = [0, 0], sizes = [16, 32], strides = [1, 1]} : vector<16x128xf32> to vector<16x32xf32>
    %19 = vector.extract_strided_slice %17 {offsets = [0, 32], sizes = [16, 96], strides = [1, 1]} : vector<16x128xf32> to vector<16x96xf32>
    %cst_15 = arith.constant dense<0.000000e+00> : vector<16x32xf32>
    %20 = tpu.matmul %1, %18, %cst_15 {dimension_numbers = #tpu.dot_dimension_numbers<[1], [0], [0], [1], [0, 0, 1, 1], [], []>} : vector<16x16xf32>, vector<16x32xf32>, vector<16x32xf32> -> vector<16x32xf32>
    %cst_16 = arith.constant -1.000000e+30 : f32
    %21 = vector.broadcast %cst_16 : f32 to vector<16x32xf32>
    %22 = vector.extract_strided_slice %1 {offsets = [0, 0], sizes = [16, 8], strides = [1, 1]} : vector<16x16xf32> to vector<16x8xf32>
    %23 = vector.extract_strided_slice %18 {offsets = [0, 0], sizes = [8, 32], strides = [1, 1]} : vector<16x32xf32> to vector<8x32xf32>
    %24 = vector.shape_cast %22 : vector<16x8xf32> to vector<16x8x1xf32>
    %cst_17 = arith.constant 0.000000e+00 : f32
    %25 = vector.broadcast %cst_17 : f32 to vector<16x8x1xf32>
    %26 = arith.cmpf ogt, %24, %25 : vector<16x8x1xf32>
    %27 = vector.shape_cast %23 : vector<8x32xf32> to vector<1x8x32xf32>
    %cst_18 = arith.constant -1.000000e+30 : f32
    %28 = vector.shape_cast %26 : vector<16x8x1xi1> to vector<16x8x1xi1>
    %29 = vector.broadcast %28 : vector<16x8x1xi1> to vector<16x8x32xi1>
    %30 = vector.shape_cast %27 : vector<1x8x32xf32> to vector<1x8x32xf32>
    %31 = vector.broadcast %30 : vector<1x8x32xf32> to vector<16x8x32xf32>
    %32 = vector.broadcast %cst_18 : f32 to vector<16x8x32xf32>
    %33 = arith.select %29, %31, %32 : vector<16x8x32xi1>, vector<16x8x32xf32>
    %cst_19 = arith.constant dense<0xFF800000> : vector<16x32xf32>
    %34 = vector.multi_reduction <maximumf>, %33, %cst_19 [1] : vector<16x8x32xf32> to vector<16x32xf32>
    %35 = arith.maximumf %21, %34 : vector<16x32xf32>
    %36 = vector.extract_strided_slice %1 {offsets = [0, 8], sizes = [16, 8], strides = [1, 1]} : vector<16x16xf32> to vector<16x8xf32>
    %37 = vector.extract_strided_slice %18 {offsets = [8, 0], sizes = [8, 32], strides = [1, 1]} : vector<16x32xf32> to vector<8x32xf32>
    %38 = vector.shape_cast %36 : vector<16x8xf32> to vector<16x8x1xf32>
    %cst_20 = arith.constant 0.000000e+00 : f32
    %39 = vector.broadcast %cst_20 : f32 to vector<16x8x1xf32>
    %40 = arith.cmpf ogt, %38, %39 : vector<16x8x1xf32>
    %41 = vector.shape_cast %37 : vector<8x32xf32> to vector<1x8x32xf32>
    %cst_21 = arith.constant -1.000000e+30 : f32
    %42 = vector.shape_cast %40 : vector<16x8x1xi1> to vector<16x8x1xi1>
    %43 = vector.broadcast %42 : vector<16x8x1xi1> to vector<16x8x32xi1>
    %44 = vector.shape_cast %41 : vector<1x8x32xf32> to vector<1x8x32xf32>
    %45 = vector.broadcast %44 : vector<1x8x32xf32> to vector<16x8x32xf32>
    %46 = vector.broadcast %cst_21 : f32 to vector<16x8x32xf32>
    %47 = arith.select %43, %45, %46 : vector<16x8x32xi1>, vector<16x8x32xf32>
    %cst_22 = arith.constant dense<0xFF800000> : vector<16x32xf32>
    %48 = vector.multi_reduction <maximumf>, %47, %cst_22 [1] : vector<16x8x32xf32> to vector<16x32xf32>
    %49 = arith.maximumf %35, %48 : vector<16x32xf32>
    %cst_23 = arith.constant 0.000000e+00 : f32
    %50 = vector.shape_cast %6 : vector<16x1xi1> to vector<16x1xi1>
    %51 = vector.broadcast %50 : vector<16x1xi1> to vector<16x32xi1>
    %52 = vector.broadcast %cst_23 : f32 to vector<16x32xf32>
    %53 = arith.select %51, %49, %52 : vector<16x32xi1>, vector<16x32xf32>
    %54 = arith.addf %20, %53 : vector<16x32xf32>
    %c0_24 = arith.constant 0 : index
    %c0_25 = arith.constant 0 : index
    %c0_26 = arith.constant 0 : index
    %55 = vector.load %arg5[%c0_24, %c0_25, %c0_26] : memref<3x32x96xf32, #tpu.memory_space<vmem>>, vector<1x32x96xf32>
    %56 = vector.shape_cast %55 : vector<1x32x96xf32> to vector<32x96xf32>
    %cst_27 = arith.constant dense<0.000000e+00> : vector<16x96xf32>
    %57 = tpu.matmul %54, %56, %cst_27 {dimension_numbers = #tpu.dot_dimension_numbers<[1], [0], [0], [1], [0, 0, 1, 1], [], []>} : vector<16x32xf32>, vector<32x96xf32>, vector<16x96xf32> -> vector<16x96xf32>
    %c0_28 = arith.constant 0 : index
    %c0_29 = arith.constant 0 : index
    %c0_30 = arith.constant 0 : index
    %58 = vector.load %arg6[%c0_28, %c0_29, %c0_30] : memref<3x1x96xf32, #tpu.memory_space<vmem>>, vector<1x1x96xf32>
    %59 = vector.shape_cast %58 : vector<1x1x96xf32> to vector<1x96xf32>
    %60 = vector.broadcast %59 : vector<1x96xf32> to vector<16x96xf32>
    %61 = arith.addf %57, %60 : vector<16x96xf32>
    %62 = vector.extract_strided_slice %61 {offsets = [0, 0], sizes = [16, 32], strides = [1, 1]} : vector<16x96xf32> to vector<16x32xf32>
    %63 = vector.extract_strided_slice %19 {offsets = [0, 0], sizes = [16, 32], strides = [1, 1]} : vector<16x96xf32> to vector<16x32xf32>
    %64 = arith.addf %62, %63 : vector<16x32xf32>
    %65 = arith.negf %64 : vector<16x32xf32>
    %66 = math.exp %65 : vector<16x32xf32>
    %cst_31 = arith.constant 1.000000e+00 : f32
    %67 = vector.broadcast %cst_31 : f32 to vector<16x32xf32>
    %68 = arith.addf %67, %66 : vector<16x32xf32>
    %69 = arith.divf %67, %68 : vector<16x32xf32>
    %70 = vector.extract_strided_slice %61 {offsets = [0, 32], sizes = [16, 32], strides = [1, 1]} : vector<16x96xf32> to vector<16x32xf32>
    %71 = vector.extract_strided_slice %19 {offsets = [0, 32], sizes = [16, 32], strides = [1, 1]} : vector<16x96xf32> to vector<16x32xf32>
    %72 = arith.addf %70, %71 : vector<16x32xf32>
    %73 = arith.negf %72 : vector<16x32xf32>
    %74 = math.exp %73 : vector<16x32xf32>
    %cst_32 = arith.constant 1.000000e+00 : f32
    %75 = vector.broadcast %cst_32 : f32 to vector<16x32xf32>
    %76 = arith.addf %75, %74 : vector<16x32xf32>
    %77 = arith.divf %75, %76 : vector<16x32xf32>
    %78 = vector.extract_strided_slice %61 {offsets = [0, 64], sizes = [16, 32], strides = [1, 1]} : vector<16x96xf32> to vector<16x32xf32>
    %79 = vector.extract_strided_slice %19 {offsets = [0, 64], sizes = [16, 32], strides = [1, 1]} : vector<16x96xf32> to vector<16x32xf32>
    %80 = arith.mulf %69, %79 : vector<16x32xf32>
    %81 = arith.addf %78, %80 : vector<16x32xf32>
    %82 = math.tanh %81 : vector<16x32xf32>
    %cst_33 = arith.constant 1.000000e+00 : f32
    %83 = vector.broadcast %cst_33 : f32 to vector<16x32xf32>
    %84 = arith.subf %83, %77 : vector<16x32xf32>
    %85 = arith.mulf %84, %82 : vector<16x32xf32>
    %86 = arith.mulf %77, %0 : vector<16x32xf32>
    %87 = arith.addf %85, %86 : vector<16x32xf32>
    %88 = arith.addf %0, %87 : vector<16x32xf32>
    %c1 = arith.constant 1 : index
    %c0_34 = arith.constant 0 : index
    %c0_35 = arith.constant 0 : index
    %89 = vector.load %arg3[%c1, %c0_34, %c0_35] : memref<3x32x128xf32, #tpu.memory_space<vmem>>, vector<1x32x128xf32>
    %90 = vector.shape_cast %89 : vector<1x32x128xf32> to vector<32x128xf32>
    %cst_36 = arith.constant dense<0.000000e+00> : vector<16x128xf32>
    %91 = tpu.matmul %88, %90, %cst_36 {dimension_numbers = #tpu.dot_dimension_numbers<[1], [0], [0], [1], [0, 0, 1, 1], [], []>} : vector<16x32xf32>, vector<32x128xf32>, vector<16x128xf32> -> vector<16x128xf32>
    %c1_37 = arith.constant 1 : index
    %c0_38 = arith.constant 0 : index
    %c0_39 = arith.constant 0 : index
    %92 = vector.load %arg4[%c1_37, %c0_38, %c0_39] : memref<3x1x128xf32, #tpu.memory_space<vmem>>, vector<1x1x128xf32>
    %93 = vector.shape_cast %92 : vector<1x1x128xf32> to vector<1x128xf32>
    %94 = vector.broadcast %93 : vector<1x128xf32> to vector<16x128xf32>
    %95 = arith.addf %91, %94 : vector<16x128xf32>
    %96 = vector.extract_strided_slice %95 {offsets = [0, 0], sizes = [16, 32], strides = [1, 1]} : vector<16x128xf32> to vector<16x32xf32>
    %97 = vector.extract_strided_slice %95 {offsets = [0, 32], sizes = [16, 96], strides = [1, 1]} : vector<16x128xf32> to vector<16x96xf32>
    %cst_40 = arith.constant dense<0.000000e+00> : vector<16x32xf32>
    %98 = tpu.matmul %1, %96, %cst_40 {dimension_numbers = #tpu.dot_dimension_numbers<[1], [0], [0], [1], [0, 0, 1, 1], [], []>} : vector<16x16xf32>, vector<16x32xf32>, vector<16x32xf32> -> vector<16x32xf32>
    %cst_41 = arith.constant -1.000000e+30 : f32
    %99 = vector.broadcast %cst_41 : f32 to vector<16x32xf32>
    %100 = vector.extract_strided_slice %1 {offsets = [0, 0], sizes = [16, 8], strides = [1, 1]} : vector<16x16xf32> to vector<16x8xf32>
    %101 = vector.extract_strided_slice %96 {offsets = [0, 0], sizes = [8, 32], strides = [1, 1]} : vector<16x32xf32> to vector<8x32xf32>
    %102 = vector.shape_cast %100 : vector<16x8xf32> to vector<16x8x1xf32>
    %cst_42 = arith.constant 0.000000e+00 : f32
    %103 = vector.broadcast %cst_42 : f32 to vector<16x8x1xf32>
    %104 = arith.cmpf ogt, %102, %103 : vector<16x8x1xf32>
    %105 = vector.shape_cast %101 : vector<8x32xf32> to vector<1x8x32xf32>
    %cst_43 = arith.constant -1.000000e+30 : f32
    %106 = vector.shape_cast %104 : vector<16x8x1xi1> to vector<16x8x1xi1>
    %107 = vector.broadcast %106 : vector<16x8x1xi1> to vector<16x8x32xi1>
    %108 = vector.shape_cast %105 : vector<1x8x32xf32> to vector<1x8x32xf32>
    %109 = vector.broadcast %108 : vector<1x8x32xf32> to vector<16x8x32xf32>
    %110 = vector.broadcast %cst_43 : f32 to vector<16x8x32xf32>
    %111 = arith.select %107, %109, %110 : vector<16x8x32xi1>, vector<16x8x32xf32>
    %cst_44 = arith.constant dense<0xFF800000> : vector<16x32xf32>
    %112 = vector.multi_reduction <maximumf>, %111, %cst_44 [1] : vector<16x8x32xf32> to vector<16x32xf32>
    %113 = arith.maximumf %99, %112 : vector<16x32xf32>
    %114 = vector.extract_strided_slice %1 {offsets = [0, 8], sizes = [16, 8], strides = [1, 1]} : vector<16x16xf32> to vector<16x8xf32>
    %115 = vector.extract_strided_slice %96 {offsets = [8, 0], sizes = [8, 32], strides = [1, 1]} : vector<16x32xf32> to vector<8x32xf32>
    %116 = vector.shape_cast %114 : vector<16x8xf32> to vector<16x8x1xf32>
    %cst_45 = arith.constant 0.000000e+00 : f32
    %117 = vector.broadcast %cst_45 : f32 to vector<16x8x1xf32>
    %118 = arith.cmpf ogt, %116, %117 : vector<16x8x1xf32>
    %119 = vector.shape_cast %115 : vector<8x32xf32> to vector<1x8x32xf32>
    %cst_46 = arith.constant -1.000000e+30 : f32
    %120 = vector.shape_cast %118 : vector<16x8x1xi1> to vector<16x8x1xi1>
    %121 = vector.broadcast %120 : vector<16x8x1xi1> to vector<16x8x32xi1>
    %122 = vector.shape_cast %119 : vector<1x8x32xf32> to vector<1x8x32xf32>
    %123 = vector.broadcast %122 : vector<1x8x32xf32> to vector<16x8x32xf32>
    %124 = vector.broadcast %cst_46 : f32 to vector<16x8x32xf32>
    %125 = arith.select %121, %123, %124 : vector<16x8x32xi1>, vector<16x8x32xf32>
    %cst_47 = arith.constant dense<0xFF800000> : vector<16x32xf32>
    %126 = vector.multi_reduction <maximumf>, %125, %cst_47 [1] : vector<16x8x32xf32> to vector<16x32xf32>
    %127 = arith.maximumf %113, %126 : vector<16x32xf32>
    %cst_48 = arith.constant 0.000000e+00 : f32
    %128 = vector.shape_cast %6 : vector<16x1xi1> to vector<16x1xi1>
    %129 = vector.broadcast %128 : vector<16x1xi1> to vector<16x32xi1>
    %130 = vector.broadcast %cst_48 : f32 to vector<16x32xf32>
    %131 = arith.select %129, %127, %130 : vector<16x32xi1>, vector<16x32xf32>
    %132 = arith.addf %98, %131 : vector<16x32xf32>
    %c1_49 = arith.constant 1 : index
    %c0_50 = arith.constant 0 : index
    %c0_51 = arith.constant 0 : index
    %133 = vector.load %arg5[%c1_49, %c0_50, %c0_51] : memref<3x32x96xf32, #tpu.memory_space<vmem>>, vector<1x32x96xf32>
    %134 = vector.shape_cast %133 : vector<1x32x96xf32> to vector<32x96xf32>
    %cst_52 = arith.constant dense<0.000000e+00> : vector<16x96xf32>
    %135 = tpu.matmul %132, %134, %cst_52 {dimension_numbers = #tpu.dot_dimension_numbers<[1], [0], [0], [1], [0, 0, 1, 1], [], []>} : vector<16x32xf32>, vector<32x96xf32>, vector<16x96xf32> -> vector<16x96xf32>
    %c1_53 = arith.constant 1 : index
    %c0_54 = arith.constant 0 : index
    %c0_55 = arith.constant 0 : index
    %136 = vector.load %arg6[%c1_53, %c0_54, %c0_55] : memref<3x1x96xf32, #tpu.memory_space<vmem>>, vector<1x1x96xf32>
    %137 = vector.shape_cast %136 : vector<1x1x96xf32> to vector<1x96xf32>
    %138 = vector.broadcast %137 : vector<1x96xf32> to vector<16x96xf32>
    %139 = arith.addf %135, %138 : vector<16x96xf32>
    %140 = vector.extract_strided_slice %139 {offsets = [0, 0], sizes = [16, 32], strides = [1, 1]} : vector<16x96xf32> to vector<16x32xf32>
    %141 = vector.extract_strided_slice %97 {offsets = [0, 0], sizes = [16, 32], strides = [1, 1]} : vector<16x96xf32> to vector<16x32xf32>
    %142 = arith.addf %140, %141 : vector<16x32xf32>
    %143 = arith.negf %142 : vector<16x32xf32>
    %144 = math.exp %143 : vector<16x32xf32>
    %cst_56 = arith.constant 1.000000e+00 : f32
    %145 = vector.broadcast %cst_56 : f32 to vector<16x32xf32>
    %146 = arith.addf %145, %144 : vector<16x32xf32>
    %147 = arith.divf %145, %146 : vector<16x32xf32>
    %148 = vector.extract_strided_slice %139 {offsets = [0, 32], sizes = [16, 32], strides = [1, 1]} : vector<16x96xf32> to vector<16x32xf32>
    %149 = vector.extract_strided_slice %97 {offsets = [0, 32], sizes = [16, 32], strides = [1, 1]} : vector<16x96xf32> to vector<16x32xf32>
    %150 = arith.addf %148, %149 : vector<16x32xf32>
    %151 = arith.negf %150 : vector<16x32xf32>
    %152 = math.exp %151 : vector<16x32xf32>
    %cst_57 = arith.constant 1.000000e+00 : f32
    %153 = vector.broadcast %cst_57 : f32 to vector<16x32xf32>
    %154 = arith.addf %153, %152 : vector<16x32xf32>
    %155 = arith.divf %153, %154 : vector<16x32xf32>
    %156 = vector.extract_strided_slice %139 {offsets = [0, 64], sizes = [16, 32], strides = [1, 1]} : vector<16x96xf32> to vector<16x32xf32>
    %157 = vector.extract_strided_slice %97 {offsets = [0, 64], sizes = [16, 32], strides = [1, 1]} : vector<16x96xf32> to vector<16x32xf32>
    %158 = arith.mulf %147, %157 : vector<16x32xf32>
    %159 = arith.addf %156, %158 : vector<16x32xf32>
    %160 = math.tanh %159 : vector<16x32xf32>
    %cst_58 = arith.constant 1.000000e+00 : f32
    %161 = vector.broadcast %cst_58 : f32 to vector<16x32xf32>
    %162 = arith.subf %161, %155 : vector<16x32xf32>
    %163 = arith.mulf %162, %160 : vector<16x32xf32>
    %164 = arith.mulf %155, %88 : vector<16x32xf32>
    %165 = arith.addf %163, %164 : vector<16x32xf32>
    %166 = arith.addf %88, %165 : vector<16x32xf32>
    %c2 = arith.constant 2 : index
    %c0_59 = arith.constant 0 : index
    %c0_60 = arith.constant 0 : index
    %167 = vector.load %arg3[%c2, %c0_59, %c0_60] : memref<3x32x128xf32, #tpu.memory_space<vmem>>, vector<1x32x128xf32>
    %168 = vector.shape_cast %167 : vector<1x32x128xf32> to vector<32x128xf32>
    %cst_61 = arith.constant dense<0.000000e+00> : vector<16x128xf32>
    %169 = tpu.matmul %166, %168, %cst_61 {dimension_numbers = #tpu.dot_dimension_numbers<[1], [0], [0], [1], [0, 0, 1, 1], [], []>} : vector<16x32xf32>, vector<32x128xf32>, vector<16x128xf32> -> vector<16x128xf32>
    %c2_62 = arith.constant 2 : index
    %c0_63 = arith.constant 0 : index
    %c0_64 = arith.constant 0 : index
    %170 = vector.load %arg4[%c2_62, %c0_63, %c0_64] : memref<3x1x128xf32, #tpu.memory_space<vmem>>, vector<1x1x128xf32>
    %171 = vector.shape_cast %170 : vector<1x1x128xf32> to vector<1x128xf32>
    %172 = vector.broadcast %171 : vector<1x128xf32> to vector<16x128xf32>
    %173 = arith.addf %169, %172 : vector<16x128xf32>
    %174 = vector.extract_strided_slice %173 {offsets = [0, 0], sizes = [16, 32], strides = [1, 1]} : vector<16x128xf32> to vector<16x32xf32>
    %175 = vector.extract_strided_slice %173 {offsets = [0, 32], sizes = [16, 96], strides = [1, 1]} : vector<16x128xf32> to vector<16x96xf32>
    %cst_65 = arith.constant dense<0.000000e+00> : vector<16x32xf32>
    %176 = tpu.matmul %1, %174, %cst_65 {dimension_numbers = #tpu.dot_dimension_numbers<[1], [0], [0], [1], [0, 0, 1, 1], [], []>} : vector<16x16xf32>, vector<16x32xf32>, vector<16x32xf32> -> vector<16x32xf32>
    %cst_66 = arith.constant -1.000000e+30 : f32
    %177 = vector.broadcast %cst_66 : f32 to vector<16x32xf32>
    %178 = vector.extract_strided_slice %1 {offsets = [0, 0], sizes = [16, 8], strides = [1, 1]} : vector<16x16xf32> to vector<16x8xf32>
    %179 = vector.extract_strided_slice %174 {offsets = [0, 0], sizes = [8, 32], strides = [1, 1]} : vector<16x32xf32> to vector<8x32xf32>
    %180 = vector.shape_cast %178 : vector<16x8xf32> to vector<16x8x1xf32>
    %cst_67 = arith.constant 0.000000e+00 : f32
    %181 = vector.broadcast %cst_67 : f32 to vector<16x8x1xf32>
    %182 = arith.cmpf ogt, %180, %181 : vector<16x8x1xf32>
    %183 = vector.shape_cast %179 : vector<8x32xf32> to vector<1x8x32xf32>
    %cst_68 = arith.constant -1.000000e+30 : f32
    %184 = vector.shape_cast %182 : vector<16x8x1xi1> to vector<16x8x1xi1>
    %185 = vector.broadcast %184 : vector<16x8x1xi1> to vector<16x8x32xi1>
    %186 = vector.shape_cast %183 : vector<1x8x32xf32> to vector<1x8x32xf32>
    %187 = vector.broadcast %186 : vector<1x8x32xf32> to vector<16x8x32xf32>
    %188 = vector.broadcast %cst_68 : f32 to vector<16x8x32xf32>
    %189 = arith.select %185, %187, %188 : vector<16x8x32xi1>, vector<16x8x32xf32>
    %cst_69 = arith.constant dense<0xFF800000> : vector<16x32xf32>
    %190 = vector.multi_reduction <maximumf>, %189, %cst_69 [1] : vector<16x8x32xf32> to vector<16x32xf32>
    %191 = arith.maximumf %177, %190 : vector<16x32xf32>
    %192 = vector.extract_strided_slice %1 {offsets = [0, 8], sizes = [16, 8], strides = [1, 1]} : vector<16x16xf32> to vector<16x8xf32>
    %193 = vector.extract_strided_slice %174 {offsets = [8, 0], sizes = [8, 32], strides = [1, 1]} : vector<16x32xf32> to vector<8x32xf32>
    %194 = vector.shape_cast %192 : vector<16x8xf32> to vector<16x8x1xf32>
    %cst_70 = arith.constant 0.000000e+00 : f32
    %195 = vector.broadcast %cst_70 : f32 to vector<16x8x1xf32>
    %196 = arith.cmpf ogt, %194, %195 : vector<16x8x1xf32>
    %197 = vector.shape_cast %193 : vector<8x32xf32> to vector<1x8x32xf32>
    %cst_71 = arith.constant -1.000000e+30 : f32
    %198 = vector.shape_cast %196 : vector<16x8x1xi1> to vector<16x8x1xi1>
    %199 = vector.broadcast %198 : vector<16x8x1xi1> to vector<16x8x32xi1>
    %200 = vector.shape_cast %197 : vector<1x8x32xf32> to vector<1x8x32xf32>
    %201 = vector.broadcast %200 : vector<1x8x32xf32> to vector<16x8x32xf32>
    %202 = vector.broadcast %cst_71 : f32 to vector<16x8x32xf32>
    %203 = arith.select %199, %201, %202 : vector<16x8x32xi1>, vector<16x8x32xf32>
    %cst_72 = arith.constant dense<0xFF800000> : vector<16x32xf32>
    %204 = vector.multi_reduction <maximumf>, %203, %cst_72 [1] : vector<16x8x32xf32> to vector<16x32xf32>
    %205 = arith.maximumf %191, %204 : vector<16x32xf32>
    %cst_73 = arith.constant 0.000000e+00 : f32
    %206 = vector.shape_cast %6 : vector<16x1xi1> to vector<16x1xi1>
    %207 = vector.broadcast %206 : vector<16x1xi1> to vector<16x32xi1>
    %208 = vector.broadcast %cst_73 : f32 to vector<16x32xf32>
    %209 = arith.select %207, %205, %208 : vector<16x32xi1>, vector<16x32xf32>
    %210 = arith.addf %176, %209 : vector<16x32xf32>
    %c2_74 = arith.constant 2 : index
    %c0_75 = arith.constant 0 : index
    %c0_76 = arith.constant 0 : index
    %211 = vector.load %arg5[%c2_74, %c0_75, %c0_76] : memref<3x32x96xf32, #tpu.memory_space<vmem>>, vector<1x32x96xf32>
    %212 = vector.shape_cast %211 : vector<1x32x96xf32> to vector<32x96xf32>
    %cst_77 = arith.constant dense<0.000000e+00> : vector<16x96xf32>
    %213 = tpu.matmul %210, %212, %cst_77 {dimension_numbers = #tpu.dot_dimension_numbers<[1], [0], [0], [1], [0, 0, 1, 1], [], []>} : vector<16x32xf32>, vector<32x96xf32>, vector<16x96xf32> -> vector<16x96xf32>
    %c2_78 = arith.constant 2 : index
    %c0_79 = arith.constant 0 : index
    %c0_80 = arith.constant 0 : index
    %214 = vector.load %arg6[%c2_78, %c0_79, %c0_80] : memref<3x1x96xf32, #tpu.memory_space<vmem>>, vector<1x1x96xf32>
    %215 = vector.shape_cast %214 : vector<1x1x96xf32> to vector<1x96xf32>
    %216 = vector.broadcast %215 : vector<1x96xf32> to vector<16x96xf32>
    %217 = arith.addf %213, %216 : vector<16x96xf32>
    %218 = vector.extract_strided_slice %217 {offsets = [0, 0], sizes = [16, 32], strides = [1, 1]} : vector<16x96xf32> to vector<16x32xf32>
    %219 = vector.extract_strided_slice %175 {offsets = [0, 0], sizes = [16, 32], strides = [1, 1]} : vector<16x96xf32> to vector<16x32xf32>
    %220 = arith.addf %218, %219 : vector<16x32xf32>
    %221 = arith.negf %220 : vector<16x32xf32>
    %222 = math.exp %221 : vector<16x32xf32>
    %cst_81 = arith.constant 1.000000e+00 : f32
    %223 = vector.broadcast %cst_81 : f32 to vector<16x32xf32>
    %224 = arith.addf %223, %222 : vector<16x32xf32>
    %225 = arith.divf %223, %224 : vector<16x32xf32>
    %226 = vector.extract_strided_slice %217 {offsets = [0, 32], sizes = [16, 32], strides = [1, 1]} : vector<16x96xf32> to vector<16x32xf32>
    %227 = vector.extract_strided_slice %175 {offsets = [0, 32], sizes = [16, 32], strides = [1, 1]} : vector<16x96xf32> to vector<16x32xf32>
    %228 = arith.addf %226, %227 : vector<16x32xf32>
    %229 = arith.negf %228 : vector<16x32xf32>
    %230 = math.exp %229 : vector<16x32xf32>
    %cst_82 = arith.constant 1.000000e+00 : f32
    %231 = vector.broadcast %cst_82 : f32 to vector<16x32xf32>
    %232 = arith.addf %231, %230 : vector<16x32xf32>
    %233 = arith.divf %231, %232 : vector<16x32xf32>
    %234 = vector.extract_strided_slice %217 {offsets = [0, 64], sizes = [16, 32], strides = [1, 1]} : vector<16x96xf32> to vector<16x32xf32>
    %235 = vector.extract_strided_slice %175 {offsets = [0, 64], sizes = [16, 32], strides = [1, 1]} : vector<16x96xf32> to vector<16x32xf32>
    %236 = arith.mulf %225, %235 : vector<16x32xf32>
    %237 = arith.addf %234, %236 : vector<16x32xf32>
    %238 = math.tanh %237 : vector<16x32xf32>
    %cst_83 = arith.constant 1.000000e+00 : f32
    %239 = vector.broadcast %cst_83 : f32 to vector<16x32xf32>
    %240 = arith.subf %239, %233 : vector<16x32xf32>
    %241 = arith.mulf %240, %238 : vector<16x32xf32>
    %242 = arith.mulf %233, %166 : vector<16x32xf32>
    %243 = arith.addf %241, %242 : vector<16x32xf32>
    %cst_84 = arith.constant dense<0.000000e+00> : vector<2x32xf32>
    %244 = tpu.matmul %2, %0, %cst_84 {dimension_numbers = #tpu.dot_dimension_numbers<[1], [0], [0], [1], [0, 0, 1, 1], [], []>} : vector<2x16xf32>, vector<16x32xf32>, vector<2x32xf32> -> vector<2x32xf32>
    %cst_85 = arith.constant -1.000000e+30 : f32
    %245 = vector.broadcast %cst_85 : f32 to vector<2x32xf32>
    %246 = vector.extract_strided_slice %2 {offsets = [0, 0], sizes = [2, 8], strides = [1, 1]} : vector<2x16xf32> to vector<2x8xf32>
    %247 = vector.extract_strided_slice %0 {offsets = [0, 0], sizes = [8, 32], strides = [1, 1]} : vector<16x32xf32> to vector<8x32xf32>
    %248 = vector.shape_cast %246 : vector<2x8xf32> to vector<2x8x1xf32>
    %cst_86 = arith.constant 0.000000e+00 : f32
    %249 = vector.broadcast %cst_86 : f32 to vector<2x8x1xf32>
    %250 = arith.cmpf ogt, %248, %249 : vector<2x8x1xf32>
    %251 = vector.shape_cast %247 : vector<8x32xf32> to vector<1x8x32xf32>
    %cst_87 = arith.constant -1.000000e+30 : f32
    %252 = vector.shape_cast %250 : vector<2x8x1xi1> to vector<2x8x1xi1>
    %253 = vector.broadcast %252 : vector<2x8x1xi1> to vector<2x8x32xi1>
    %254 = vector.shape_cast %251 : vector<1x8x32xf32> to vector<1x8x32xf32>
    %255 = vector.broadcast %254 : vector<1x8x32xf32> to vector<2x8x32xf32>
    %256 = vector.broadcast %cst_87 : f32 to vector<2x8x32xf32>
    %257 = arith.select %253, %255, %256 : vector<2x8x32xi1>, vector<2x8x32xf32>
    %cst_88 = arith.constant dense<0xFF800000> : vector<2x32xf32>
    %258 = vector.multi_reduction <maximumf>, %257, %cst_88 [1] : vector<2x8x32xf32> to vector<2x32xf32>
    %259 = arith.maximumf %245, %258 : vector<2x32xf32>
    %260 = vector.extract_strided_slice %2 {offsets = [0, 8], sizes = [2, 8], strides = [1, 1]} : vector<2x16xf32> to vector<2x8xf32>
    %261 = vector.extract_strided_slice %0 {offsets = [8, 0], sizes = [8, 32], strides = [1, 1]} : vector<16x32xf32> to vector<8x32xf32>
    %262 = vector.shape_cast %260 : vector<2x8xf32> to vector<2x8x1xf32>
    %cst_89 = arith.constant 0.000000e+00 : f32
    %263 = vector.broadcast %cst_89 : f32 to vector<2x8x1xf32>
    %264 = arith.cmpf ogt, %262, %263 : vector<2x8x1xf32>
    %265 = vector.shape_cast %261 : vector<8x32xf32> to vector<1x8x32xf32>
    %cst_90 = arith.constant -1.000000e+30 : f32
    %266 = vector.shape_cast %264 : vector<2x8x1xi1> to vector<2x8x1xi1>
    %267 = vector.broadcast %266 : vector<2x8x1xi1> to vector<2x8x32xi1>
    %268 = vector.shape_cast %265 : vector<1x8x32xf32> to vector<1x8x32xf32>
    %269 = vector.broadcast %268 : vector<1x8x32xf32> to vector<2x8x32xf32>
    %270 = vector.broadcast %cst_90 : f32 to vector<2x8x32xf32>
    %271 = arith.select %267, %269, %270 : vector<2x8x32xi1>, vector<2x8x32xf32>
    %cst_91 = arith.constant dense<0xFF800000> : vector<2x32xf32>
    %272 = vector.multi_reduction <maximumf>, %271, %cst_91 [1] : vector<2x8x32xf32> to vector<2x32xf32>
    %273 = arith.maximumf %259, %272 : vector<2x32xf32>
    %cst_92 = arith.constant 0.000000e+00 : f32
    %274 = vector.shape_cast %10 : vector<2x1xi1> to vector<2x1xi1>
    %275 = vector.broadcast %274 : vector<2x1xi1> to vector<2x32xi1>
    %276 = vector.broadcast %cst_92 : f32 to vector<2x32xf32>
    %277 = arith.select %275, %273, %276 : vector<2x32xi1>, vector<2x32xf32>
    %278 = arith.addf %244, %277 : vector<2x32xf32>
    %cst_93 = arith.constant dense<0.000000e+00> : vector<2x32xf32>
    %279 = tpu.matmul %2, %87, %cst_93 {dimension_numbers = #tpu.dot_dimension_numbers<[1], [0], [0], [1], [0, 0, 1, 1], [], []>} : vector<2x16xf32>, vector<16x32xf32>, vector<2x32xf32> -> vector<2x32xf32>
    %cst_94 = arith.constant -1.000000e+30 : f32
    %280 = vector.broadcast %cst_94 : f32 to vector<2x32xf32>
    %281 = vector.extract_strided_slice %2 {offsets = [0, 0], sizes = [2, 8], strides = [1, 1]} : vector<2x16xf32> to vector<2x8xf32>
    %282 = vector.extract_strided_slice %87 {offsets = [0, 0], sizes = [8, 32], strides = [1, 1]} : vector<16x32xf32> to vector<8x32xf32>
    %283 = vector.shape_cast %281 : vector<2x8xf32> to vector<2x8x1xf32>
    %cst_95 = arith.constant 0.000000e+00 : f32
    %284 = vector.broadcast %cst_95 : f32 to vector<2x8x1xf32>
    %285 = arith.cmpf ogt, %283, %284 : vector<2x8x1xf32>
    %286 = vector.shape_cast %282 : vector<8x32xf32> to vector<1x8x32xf32>
    %cst_96 = arith.constant -1.000000e+30 : f32
    %287 = vector.shape_cast %285 : vector<2x8x1xi1> to vector<2x8x1xi1>
    %288 = vector.broadcast %287 : vector<2x8x1xi1> to vector<2x8x32xi1>
    %289 = vector.shape_cast %286 : vector<1x8x32xf32> to vector<1x8x32xf32>
    %290 = vector.broadcast %289 : vector<1x8x32xf32> to vector<2x8x32xf32>
    %291 = vector.broadcast %cst_96 : f32 to vector<2x8x32xf32>
    %292 = arith.select %288, %290, %291 : vector<2x8x32xi1>, vector<2x8x32xf32>
    %cst_97 = arith.constant dense<0xFF800000> : vector<2x32xf32>
    %293 = vector.multi_reduction <maximumf>, %292, %cst_97 [1] : vector<2x8x32xf32> to vector<2x32xf32>
    %294 = arith.maximumf %280, %293 : vector<2x32xf32>
    %295 = vector.extract_strided_slice %2 {offsets = [0, 8], sizes = [2, 8], strides = [1, 1]} : vector<2x16xf32> to vector<2x8xf32>
    %296 = vector.extract_strided_slice %87 {offsets = [8, 0], sizes = [8, 32], strides = [1, 1]} : vector<16x32xf32> to vector<8x32xf32>
    %297 = vector.shape_cast %295 : vector<2x8xf32> to vector<2x8x1xf32>
    %cst_98 = arith.constant 0.000000e+00 : f32
    %298 = vector.broadcast %cst_98 : f32 to vector<2x8x1xf32>
    %299 = arith.cmpf ogt, %297, %298 : vector<2x8x1xf32>
    %300 = vector.shape_cast %296 : vector<8x32xf32> to vector<1x8x32xf32>
    %cst_99 = arith.constant -1.000000e+30 : f32
    %301 = vector.shape_cast %299 : vector<2x8x1xi1> to vector<2x8x1xi1>
    %302 = vector.broadcast %301 : vector<2x8x1xi1> to vector<2x8x32xi1>
    %303 = vector.shape_cast %300 : vector<1x8x32xf32> to vector<1x8x32xf32>
    %304 = vector.broadcast %303 : vector<1x8x32xf32> to vector<2x8x32xf32>
    %305 = vector.broadcast %cst_99 : f32 to vector<2x8x32xf32>
    %306 = arith.select %302, %304, %305 : vector<2x8x32xi1>, vector<2x8x32xf32>
    %cst_100 = arith.constant dense<0xFF800000> : vector<2x32xf32>
    %307 = vector.multi_reduction <maximumf>, %306, %cst_100 [1] : vector<2x8x32xf32> to vector<2x32xf32>
    %308 = arith.maximumf %294, %307 : vector<2x32xf32>
    %cst_101 = arith.constant 0.000000e+00 : f32
    %309 = vector.shape_cast %10 : vector<2x1xi1> to vector<2x1xi1>
    %310 = vector.broadcast %309 : vector<2x1xi1> to vector<2x32xi1>
    %311 = vector.broadcast %cst_101 : f32 to vector<2x32xf32>
    %312 = arith.select %310, %308, %311 : vector<2x32xi1>, vector<2x32xf32>
    %313 = arith.addf %279, %312 : vector<2x32xf32>
    %cst_102 = arith.constant dense<0.000000e+00> : vector<2x32xf32>
    %314 = tpu.matmul %2, %165, %cst_102 {dimension_numbers = #tpu.dot_dimension_numbers<[1], [0], [0], [1], [0, 0, 1, 1], [], []>} : vector<2x16xf32>, vector<16x32xf32>, vector<2x32xf32> -> vector<2x32xf32>
    %cst_103 = arith.constant -1.000000e+30 : f32
    %315 = vector.broadcast %cst_103 : f32 to vector<2x32xf32>
    %316 = vector.extract_strided_slice %2 {offsets = [0, 0], sizes = [2, 8], strides = [1, 1]} : vector<2x16xf32> to vector<2x8xf32>
    %317 = vector.extract_strided_slice %165 {offsets = [0, 0], sizes = [8, 32], strides = [1, 1]} : vector<16x32xf32> to vector<8x32xf32>
    %318 = vector.shape_cast %316 : vector<2x8xf32> to vector<2x8x1xf32>
    %cst_104 = arith.constant 0.000000e+00 : f32
    %319 = vector.broadcast %cst_104 : f32 to vector<2x8x1xf32>
    %320 = arith.cmpf ogt, %318, %319 : vector<2x8x1xf32>
    %321 = vector.shape_cast %317 : vector<8x32xf32> to vector<1x8x32xf32>
    %cst_105 = arith.constant -1.000000e+30 : f32
    %322 = vector.shape_cast %320 : vector<2x8x1xi1> to vector<2x8x1xi1>
    %323 = vector.broadcast %322 : vector<2x8x1xi1> to vector<2x8x32xi1>
    %324 = vector.shape_cast %321 : vector<1x8x32xf32> to vector<1x8x32xf32>
    %325 = vector.broadcast %324 : vector<1x8x32xf32> to vector<2x8x32xf32>
    %326 = vector.broadcast %cst_105 : f32 to vector<2x8x32xf32>
    %327 = arith.select %323, %325, %326 : vector<2x8x32xi1>, vector<2x8x32xf32>
    %cst_106 = arith.constant dense<0xFF800000> : vector<2x32xf32>
    %328 = vector.multi_reduction <maximumf>, %327, %cst_106 [1] : vector<2x8x32xf32> to vector<2x32xf32>
    %329 = arith.maximumf %315, %328 : vector<2x32xf32>
    %330 = vector.extract_strided_slice %2 {offsets = [0, 8], sizes = [2, 8], strides = [1, 1]} : vector<2x16xf32> to vector<2x8xf32>
    %331 = vector.extract_strided_slice %165 {offsets = [8, 0], sizes = [8, 32], strides = [1, 1]} : vector<16x32xf32> to vector<8x32xf32>
    %332 = vector.shape_cast %330 : vector<2x8xf32> to vector<2x8x1xf32>
    %cst_107 = arith.constant 0.000000e+00 : f32
    %333 = vector.broadcast %cst_107 : f32 to vector<2x8x1xf32>
    %334 = arith.cmpf ogt, %332, %333 : vector<2x8x1xf32>
    %335 = vector.shape_cast %331 : vector<8x32xf32> to vector<1x8x32xf32>
    %cst_108 = arith.constant -1.000000e+30 : f32
    %336 = vector.shape_cast %334 : vector<2x8x1xi1> to vector<2x8x1xi1>
    %337 = vector.broadcast %336 : vector<2x8x1xi1> to vector<2x8x32xi1>
    %338 = vector.shape_cast %335 : vector<1x8x32xf32> to vector<1x8x32xf32>
    %339 = vector.broadcast %338 : vector<1x8x32xf32> to vector<2x8x32xf32>
    %340 = vector.broadcast %cst_108 : f32 to vector<2x8x32xf32>
    %341 = arith.select %337, %339, %340 : vector<2x8x32xi1>, vector<2x8x32xf32>
    %cst_109 = arith.constant dense<0xFF800000> : vector<2x32xf32>
    %342 = vector.multi_reduction <maximumf>, %341, %cst_109 [1] : vector<2x8x32xf32> to vector<2x32xf32>
    %343 = arith.maximumf %329, %342 : vector<2x32xf32>
    %cst_110 = arith.constant 0.000000e+00 : f32
    %344 = vector.shape_cast %10 : vector<2x1xi1> to vector<2x1xi1>
    %345 = vector.broadcast %344 : vector<2x1xi1> to vector<2x32xi1>
    %346 = vector.broadcast %cst_110 : f32 to vector<2x32xf32>
    %347 = arith.select %345, %343, %346 : vector<2x32xi1>, vector<2x32xf32>
    %348 = arith.addf %314, %347 : vector<2x32xf32>
    %cst_111 = arith.constant dense<0.000000e+00> : vector<2x32xf32>
    %349 = tpu.matmul %2, %243, %cst_111 {dimension_numbers = #tpu.dot_dimension_numbers<[1], [0], [0], [1], [0, 0, 1, 1], [], []>} : vector<2x16xf32>, vector<16x32xf32>, vector<2x32xf32> -> vector<2x32xf32>
    %cst_112 = arith.constant -1.000000e+30 : f32
    %350 = vector.broadcast %cst_112 : f32 to vector<2x32xf32>
    %351 = vector.extract_strided_slice %2 {offsets = [0, 0], sizes = [2, 8], strides = [1, 1]} : vector<2x16xf32> to vector<2x8xf32>
    %352 = vector.extract_strided_slice %243 {offsets = [0, 0], sizes = [8, 32], strides = [1, 1]} : vector<16x32xf32> to vector<8x32xf32>
    %353 = vector.shape_cast %351 : vector<2x8xf32> to vector<2x8x1xf32>
    %cst_113 = arith.constant 0.000000e+00 : f32
    %354 = vector.broadcast %cst_113 : f32 to vector<2x8x1xf32>
    %355 = arith.cmpf ogt, %353, %354 : vector<2x8x1xf32>
    %356 = vector.shape_cast %352 : vector<8x32xf32> to vector<1x8x32xf32>
    %cst_114 = arith.constant -1.000000e+30 : f32
    %357 = vector.shape_cast %355 : vector<2x8x1xi1> to vector<2x8x1xi1>
    %358 = vector.broadcast %357 : vector<2x8x1xi1> to vector<2x8x32xi1>
    %359 = vector.shape_cast %356 : vector<1x8x32xf32> to vector<1x8x32xf32>
    %360 = vector.broadcast %359 : vector<1x8x32xf32> to vector<2x8x32xf32>
    %361 = vector.broadcast %cst_114 : f32 to vector<2x8x32xf32>
    %362 = arith.select %358, %360, %361 : vector<2x8x32xi1>, vector<2x8x32xf32>
    %cst_115 = arith.constant dense<0xFF800000> : vector<2x32xf32>
    %363 = vector.multi_reduction <maximumf>, %362, %cst_115 [1] : vector<2x8x32xf32> to vector<2x32xf32>
    %364 = arith.maximumf %350, %363 : vector<2x32xf32>
    %365 = vector.extract_strided_slice %2 {offsets = [0, 8], sizes = [2, 8], strides = [1, 1]} : vector<2x16xf32> to vector<2x8xf32>
    %366 = vector.extract_strided_slice %243 {offsets = [8, 0], sizes = [8, 32], strides = [1, 1]} : vector<16x32xf32> to vector<8x32xf32>
    %367 = vector.shape_cast %365 : vector<2x8xf32> to vector<2x8x1xf32>
    %cst_116 = arith.constant 0.000000e+00 : f32
    %368 = vector.broadcast %cst_116 : f32 to vector<2x8x1xf32>
    %369 = arith.cmpf ogt, %367, %368 : vector<2x8x1xf32>
    %370 = vector.shape_cast %366 : vector<8x32xf32> to vector<1x8x32xf32>
    %cst_117 = arith.constant -1.000000e+30 : f32
    %371 = vector.shape_cast %369 : vector<2x8x1xi1> to vector<2x8x1xi1>
    %372 = vector.broadcast %371 : vector<2x8x1xi1> to vector<2x8x32xi1>
    %373 = vector.shape_cast %370 : vector<1x8x32xf32> to vector<1x8x32xf32>
    %374 = vector.broadcast %373 : vector<1x8x32xf32> to vector<2x8x32xf32>
    %375 = vector.broadcast %cst_117 : f32 to vector<2x8x32xf32>
    %376 = arith.select %372, %374, %375 : vector<2x8x32xi1>, vector<2x8x32xf32>
    %cst_118 = arith.constant dense<0xFF800000> : vector<2x32xf32>
    %377 = vector.multi_reduction <maximumf>, %376, %cst_118 [1] : vector<2x8x32xf32> to vector<2x32xf32>
    %378 = arith.maximumf %364, %377 : vector<2x32xf32>
    %cst_119 = arith.constant 0.000000e+00 : f32
    %379 = vector.shape_cast %10 : vector<2x1xi1> to vector<2x1xi1>
    %380 = vector.broadcast %379 : vector<2x1xi1> to vector<2x32xi1>
    %381 = vector.broadcast %cst_119 : f32 to vector<2x32xf32>
    %382 = arith.select %380, %378, %381 : vector<2x32xi1>, vector<2x32xf32>
    %383 = arith.addf %349, %382 : vector<2x32xf32>
    %384 = tpu.concatenate %278, %313, %348, %383 in 1 : vector<2x32xf32>, vector<2x32xf32>, vector<2x32xf32>, vector<2x32xf32> -> vector<2x128xf32>
    %c0_120 = arith.constant 0 : index
    %c0_121 = arith.constant 0 : index
    %385 = vector.load %arg13[%c0_120, %c0_121] : memref<2x128xf32, #tpu.memory_space<vmem>>, vector<2x128xf32>
    tpu.vector_store %arg13[%c0_120, %c0_121], %384 {strides = array<i32>} : memref<2x128xf32, #tpu.memory_space<vmem>>, vector<2x128xf32>,
    %c0_122 = arith.constant 0 : index
    %c0_123 = arith.constant 0 : index
    %386 = vector.load %arg7[%c0_122, %c0_123] : memref<128x32xf32, #tpu.memory_space<vmem>>, vector<128x32xf32>
    %cst_124 = arith.constant dense<0.000000e+00> : vector<2x32xf32>
    %387 = tpu.matmul %384, %386, %cst_124 {dimension_numbers = #tpu.dot_dimension_numbers<[1], [0], [0], [1], [0, 0, 1, 1], [], []>} : vector<2x128xf32>, vector<128x32xf32>, vector<2x32xf32> -> vector<2x32xf32>
    %c0_125 = arith.constant 0 : index
    %c0_126 = arith.constant 0 : index
    %388 = vector.load %arg8[%c0_125, %c0_126] : memref<1x32xf32, #tpu.memory_space<vmem>>, vector<1x32xf32>
    %389 = vector.broadcast %388 : vector<1x32xf32> to vector<2x32xf32>
    %390 = arith.addf %387, %389 : vector<2x32xf32>
    %391 = arith.mulf %390, %390 : vector<2x32xf32>
    %392 = arith.mulf %390, %391 : vector<2x32xf32>
    %cst_127 = arith.constant 4.471500e-02 : f32
    %393 = vector.broadcast %cst_127 : f32 to vector<2x32xf32>
    %394 = arith.mulf %393, %392 : vector<2x32xf32>
    %395 = arith.addf %390, %394 : vector<2x32xf32>
    %cst_128 = arith.constant 0.797884583 : f32
    %396 = vector.broadcast %cst_128 : f32 to vector<2x32xf32>
    %397 = arith.mulf %396, %395 : vector<2x32xf32>
    %398 = math.tanh %397 : vector<2x32xf32>
    %cst_129 = arith.constant 1.000000e+00 : f32
    %399 = vector.broadcast %cst_129 : f32 to vector<2x32xf32>
    %400 = arith.addf %399, %398 : vector<2x32xf32>
    %cst_130 = arith.constant 5.000000e-01 : f32
    %401 = vector.broadcast %cst_130 : f32 to vector<2x32xf32>
    %402 = arith.mulf %401, %400 : vector<2x32xf32>
    %403 = arith.mulf %390, %402 : vector<2x32xf32>
    %c0_131 = arith.constant 0 : index
    %c0_132 = arith.constant 0 : index
    %404 = vector.load %arg9[%c0_131, %c0_132] : memref<32x32xf32, #tpu.memory_space<vmem>>, vector<32x32xf32>
    %cst_133 = arith.constant dense<0.000000e+00> : vector<2x32xf32>
    %405 = tpu.matmul %403, %404, %cst_133 {dimension_numbers = #tpu.dot_dimension_numbers<[1], [0], [0], [1], [0, 0, 1, 1], [], []>} : vector<2x32xf32>, vector<32x32xf32>, vector<2x32xf32> -> vector<2x32xf32>
    %c0_134 = arith.constant 0 : index
    %c0_135 = arith.constant 0 : index
    %406 = vector.load %arg10[%c0_134, %c0_135] : memref<1x32xf32, #tpu.memory_space<vmem>>, vector<1x32xf32>
    %407 = vector.broadcast %406 : vector<1x32xf32> to vector<2x32xf32>
    %408 = arith.addf %405, %407 : vector<2x32xf32>
    %409 = arith.mulf %408, %408 : vector<2x32xf32>
    %410 = arith.mulf %408, %409 : vector<2x32xf32>
    %cst_136 = arith.constant 4.471500e-02 : f32
    %411 = vector.broadcast %cst_136 : f32 to vector<2x32xf32>
    %412 = arith.mulf %411, %410 : vector<2x32xf32>
    %413 = arith.addf %408, %412 : vector<2x32xf32>
    %cst_137 = arith.constant 0.797884583 : f32
    %414 = vector.broadcast %cst_137 : f32 to vector<2x32xf32>
    %415 = arith.mulf %414, %413 : vector<2x32xf32>
    %416 = math.tanh %415 : vector<2x32xf32>
    %cst_138 = arith.constant 1.000000e+00 : f32
    %417 = vector.broadcast %cst_138 : f32 to vector<2x32xf32>
    %418 = arith.addf %417, %416 : vector<2x32xf32>
    %cst_139 = arith.constant 5.000000e-01 : f32
    %419 = vector.broadcast %cst_139 : f32 to vector<2x32xf32>
    %420 = arith.mulf %419, %418 : vector<2x32xf32>
    %421 = arith.mulf %408, %420 : vector<2x32xf32>
    %c0_140 = arith.constant 0 : index
    %c0_141 = arith.constant 0 : index
    %422 = vector.load %arg11[%c0_140, %c0_141] : memref<32x128xf32, #tpu.memory_space<vmem>>, vector<32x128xf32>
    %cst_142 = arith.constant dense<0.000000e+00> : vector<2x128xf32>
    %423 = tpu.matmul %421, %422, %cst_142 {dimension_numbers = #tpu.dot_dimension_numbers<[1], [0], [0], [1], [0, 0, 1, 1], [], []>} : vector<2x32xf32>, vector<32x128xf32>, vector<2x128xf32> -> vector<2x128xf32>
    %c0_143 = arith.constant 0 : index
    %c0_144 = arith.constant 0 : index
    %424 = vector.load %arg12[%c0_143, %c0_144] : memref<1x128xf32, #tpu.memory_space<vmem>>, vector<1x128xf32>
    %425 = vector.broadcast %424 : vector<1x128xf32> to vector<2x128xf32>
    %426 = arith.addf %423, %425 : vector<2x128xf32>
    %c0_145 = arith.constant 0 : index
    %c0_146 = arith.constant 0 : index
    %427 = vector.load %arg14[%c0_145, %c0_146] : memref<2x128xf32, #tpu.memory_space<vmem>>, vector<2x128xf32>
    tpu.vector_store %arg14[%c0_145, %c0_146], %426 {strides = array<i32>} : memref<2x128xf32, #tpu.memory_space<vmem>>, vector<2x128xf32>,
    return
  }
}

</mosaic_0001>

<llo_original>
// kernel: model_4v4_forward.1
$region0: #{model_4v4_forward.1}
  #allocation0 [shape = 'u32[]', space=smem, size = 0x4, offset = 0x4, fixed_abs, tag = 'smem constant byte address 0x4 - core index']
  #allocation1 [shape = 'u32[72,128]{1,0:T(1,128)}', space=vmem, size = 0x9000, scoped, tag = 'internal scratch']
  %s0 = inlined_call_operand.hbm [shape: f32[16,32], index: 0, kind: input, shape index: {}]
  %s1 = inlined_call_operand.hbm [shape: f32[16,16], index: 1, kind: input, shape index: {}]
  %s2 = inlined_call_operand.vmem [shape: f32[2,16], index: 2, kind: input, shape index: {}]
  %s3 = inlined_call_operand.vmem [shape: f32[3,32,128], index: 3, kind: input, shape index: {}]
  %s4 = inlined_call_operand.hbm [shape: f32[3,1,128], index: 4, kind: input, shape index: {}]
  %s5 = inlined_call_operand.hbm [shape: f32[3,32,96], index: 5, kind: input, shape index: {}]
  %s6 = inlined_call_operand.hbm [shape: f32[3,1,96], index: 6, kind: input, shape index: {}]
  %s7 = inlined_call_operand.vmem [shape: f32[128,32], index: 7, kind: input, shape index: {}]
  %s8 = inlined_call_operand.vmem [shape: f32[1,32], index: 8, kind: input, shape index: {}]
  %s9 = inlined_call_operand.vmem [shape: f32[32,32], index: 9, kind: input, shape index: {}]
  %s10 = inlined_call_operand.hbm [shape: f32[1,32], index: 10, kind: input, shape index: {}]
  %s11 = inlined_call_operand.vmem [shape: f32[32,128], index: 11, kind: input, shape index: {}]
  %s12 = inlined_call_operand.vmem [shape: f32[1,128], index: 12, kind: input, shape index: {}]
  %s13 = inlined_call_operand.hbm [shape: f32[2,128], index: 13, kind: output, shape index: {0}]
  %s14 = inlined_call_operand.hbm [shape: f32[2,128], index: 14, kind: output, shape index: {1}]
  %15 = xla_tuple %s13, %s14
  %s16 = sld [smem:[#allocation0]]
  $region94: #{model_4v4_forward.1} parent=0
    _
  %s18 = ssub.s32 1, %s16
  %s19 = scalar_select 0, %s18, %s16
  $region1: #{model_4v4_forward.1} parent=0
    #allocation2 [shape = 'u8[8192]{0}', space=vmem, size = 0x2000, scoped, tag = 'input window, operand 0, single buffered']
    #allocation3 [shape = 's32[1]{0}', space=sflag, size = 0x4, scoped, tag = 'scoped memory for model_4v4_forward.1']
    #allocation4 [shape = 's32[1]{0}', space=sflag, size = 0x4, scoped, tag = 'scoped memory for model_4v4_forward.1']
    #allocation5 [shape = 'u8[8192]{0}', space=vmem, size = 0x2000, scoped, tag = 'input window, operand 1, single buffered']
    #allocation6 [shape = 's32[1]{0}', space=sflag, size = 0x4, scoped, tag = 'scoped memory for model_4v4_forward.1']
    #allocation7 [shape = 'u8[1536]{0}', space=vmem, size = 0x800, scoped, tag = 'input window, operand 4, single buffered']
    #allocation8 [shape = 'u8[49152]{0}', space=vmem, size = 0xc000, scoped, tag = 'input window, operand 5, single buffered']
    #allocation9 [shape = 's32[1]{0}', space=sflag, size = 0x4, scoped, tag = 'scoped memory for model_4v4_forward.1']
    #allocation10 [shape = 'u8[1536]{0}', space=vmem, size = 0x800, scoped, tag = 'input window, operand 6, single buffered']
    #allocation11 [shape = 'u8[512]{0}', space=vmem, size = 0x400, scoped, tag = 'input window, operand 10, single buffered']
    #allocation12 [shape = 's32[1]{0}', space=sflag, size = 0x4, scoped, tag = 'scoped memory for model_4v4_forward.1']
    #allocation13 [shape = 'u8[1024]{0}', space=vmem, size = 0x400, scoped, tag = 'output window, operand 0, single buffered']
    #allocation14 [shape = 'u8[1024]{0}', space=vmem, size = 0x400, scoped, tag = 'output window, operand 1, single buffered']
    #allocation15 [shape = 's32[1]{0}', space=sflag, size = 0x4, scoped, tag = 'scoped memory for model_4v4_forward.1']
    %20 = vsyncpa [#allocation3], 0
    %21 = vsyncpa [#allocation6], 0
    %22 = vsyncpa [#allocation9], 0
    %23 = vsyncpa [#allocation12], 0
    %24 = vsyncpa [#allocation4], 0
    %25 = vsyncpa [#allocation15], 0
    // Predicated region
    $region2: #{model_4v4_forward.1} parent=1 // pred_check
      _
    $region3: #{model_4v4_forward.1} parent=1 // pred_check_branch
      %27 = sbr.rel (0) target = $region5
    $region4: #{model_4v4_forward.1} parent=1 // pred_region
      %29 = vsyncadd [#allocation3], 0
      %s30 = sshll.u32 %s0, 4
      %s31 = int_to_ptr.hbm [resolvable:$true] %s30
      %s32 = sshll.u32 [#allocation2], 4
      %s33 = int_to_ptr.vmem [resolvable:$true] %s32
      %38 = dma.hbm_to_vmem [thread:$0]  %s31, 256, %s33, [#allocation3], 128, 128, 8
    $region5: #{model_4v4_forward.1} parent=1 // pred_fallthru
      _
    // Predicated region
    $region6: #{model_4v4_forward.1} parent=1 // pred_check
      _
    $region7: #{model_4v4_forward.1} parent=1 // pred_check_branch
      %40 = sbr.rel (0) target = $region9
    $region8: #{model_4v4_forward.1} parent=1 // pred_region
      %42 = vsyncadd [#allocation6], 0
      %s43 = sshll.u32 %s1, 4
      %s44 = int_to_ptr.hbm [resolvable:$true] %s43
      %s45 = sshll.u32 [#allocation5], 4
      %s46 = int_to_ptr.vmem [resolvable:$true] %s45
      %51 = dma.hbm_to_vmem [thread:$0]  %s44, 256, %s46, [#allocation6], 128, 128, 8
    $region9: #{model_4v4_forward.1} parent=1 // pred_fallthru
      _
    // Predicated region
    $region10: #{model_4v4_forward.1} parent=1 // pred_check
      _
    $region11: #{model_4v4_forward.1} parent=1 // pred_check_branch
      %53 = sbr.rel (0) target = $region13
    $region12: #{model_4v4_forward.1} parent=1 // pred_region
      _
    $region13: #{model_4v4_forward.1} parent=1 // pred_fallthru
      _
    // Predicated region
    $region14: #{model_4v4_forward.1} parent=1 // pred_check
      _
    $region15: #{model_4v4_forward.1} parent=1 // pred_check_branch
      %55 = sbr.rel (0) target = $region17
    $region16: #{model_4v4_forward.1} parent=1 // pred_region
      _
    $region17: #{model_4v4_forward.1} parent=1 // pred_fallthru
      _
    // Predicated region
    $region18: #{model_4v4_forward.1} parent=1 // pred_check
      _
    $region19: #{model_4v4_forward.1} parent=1 // pred_check_branch
      %57 = sbr.rel (0) target = $region21
    $region20: #{model_4v4_forward.1} parent=1 // pred_region
      %59 = vsyncadd [#allocation6], 0
      %s60 = sshll.u32 %s4, 4
      %s61 = int_to_ptr.hbm [resolvable:$true] %s60
      %s62 = sshll.u32 [#allocation7], 4
      %s63 = int_to_ptr.vmem [resolvable:$true] %s62
      %68 = dma.hbm_to_vmem [thread:$0]  %s61, 48, %s63, [#allocation6], 16, 16, 1
    $region21: #{model_4v4_forward.1} parent=1 // pred_fallthru
      _
    // Predicated region
    $region22: #{model_4v4_forward.1} parent=1 // pred_check
      _
    $region23: #{model_4v4_forward.1} parent=1 // pred_check_branch
      %70 = sbr.rel (0) target = $region25
    $region24: #{model_4v4_forward.1} parent=1 // pred_region
      %72 = vsyncadd [#allocation9], 0
      %s73 = sshll.u32 %s5, 4
      %s74 = int_to_ptr.hbm [resolvable:$true] %s73
      %s75 = sshll.u32 [#allocation8], 4
      %s76 = int_to_ptr.vmem [resolvable:$true] %s75
      %81 = dma.hbm_to_vmem [thread:$0]  %s74, 1536, %s76, [#allocation9], 128, 128, 8
    $region25: #{model_4v4_forward.1} parent=1 // pred_fallthru
      _
    // Predicated region
    $region26: #{model_4v4_forward.1} parent=1 // pred_check
      _
    $region27: #{model_4v4_forward.1} parent=1 // pred_check_branch
      %83 = sbr.rel (0) target = $region29
    $region28: #{model_4v4_forward.1} parent=1 // pred_region
      %85 = vsyncadd [#allocation9], 0
      %s86 = sshll.u32 %s6, 4
      %s87 = int_to_ptr.hbm [resolvable:$true] %s86
      %s88 = sshll.u32 [#allocation10], 4
      %s89 = int_to_ptr.vmem [resolvable:$true] %s88
      %94 = dma.hbm_to_vmem [thread:$0]  %s87, 48, %s89, [#allocation9], 16, 16, 1
    $region29: #{model_4v4_forward.1} parent=1 // pred_fallthru
      _
    // Predicated region
    $region30: #{model_4v4_forward.1} parent=1 // pred_check
      _
    $region31: #{model_4v4_forward.1} parent=1 // pred_check_branch
      %96 = sbr.rel (0) target = $region33
    $region32: #{model_4v4_forward.1} parent=1 // pred_region
      _
    $region33: #{model_4v4_forward.1} parent=1 // pred_fallthru
      _
    // Predicated region
    $region34: #{model_4v4_forward.1} parent=1 // pred_check
      _
    $region35: #{model_4v4_forward.1} parent=1 // pred_check_branch
      %98 = sbr.rel (0) target = $region37
    $region36: #{model_4v4_forward.1} parent=1 // pred_region
      _
    $region37: #{model_4v4_forward.1} parent=1 // pred_fallthru
      _
    // Predicated region
    $region38: #{model_4v4_forward.1} parent=1 // pred_check
      _
    $region39: #{model_4v4_forward.1} parent=1 // pred_check_branch
      %100 = sbr.rel (0) target = $region41
    $region40: #{model_4v4_forward.1} parent=1 // pred_region
      _
    $region41: #{model_4v4_forward.1} parent=1 // pred_fallthru
      _
    // Predicated region
    $region42: #{model_4v4_forward.1} parent=1 // pred_check
      _
    $region43: #{model_4v4_forward.1} parent=1 // pred_check_branch
      %102 = sbr.rel (0) target = $region45
    $region44: #{model_4v4_forward.1} parent=1 // pred_region
      %104 = vsyncadd [#allocation12], 0
      %s106 = sshll.u32 %s10, 4
      %s107 = int_to_ptr.hbm [resolvable:$true] %s106
      %s108 = sshll.u32 [#allocation11], 4
      %s109 = int_to_ptr.vmem [resolvable:$true] %s108
      %111 = dma.hbm_to_vmem [thread:$0]  %s107, 16, %s109, [#allocation12]
    $region45: #{model_4v4_forward.1} parent=1 // pred_fallthru
      _
    // Predicated region
    $region46: #{model_4v4_forward.1} parent=1 // pred_check
      _
    $region47: #{model_4v4_forward.1} parent=1 // pred_check_branch
      %113 = sbr.rel (0) target = $region49
    $region48: #{model_4v4_forward.1} parent=1 // pred_region
      _
    $region49: #{model_4v4_forward.1} parent=1 // pred_fallthru
      _
    // Predicated region
    $region50: #{model_4v4_forward.1} parent=1 // pred_check
      _
    $region51: #{model_4v4_forward.1} parent=1 // pred_check_branch
      %115 = sbr.rel (0) target = $region53
    $region52: #{model_4v4_forward.1} parent=1 // pred_region
      _
    $region53: #{model_4v4_forward.1} parent=1 // pred_fallthru
      _
    // Predicated region
    $region54: #{model_4v4_forward.1} parent=1 // pred_check
      _
    $region55: #{model_4v4_forward.1} parent=1 // pred_check_branch
      %117 = sbr.rel (0) target = $region57
    $region56: #{model_4v4_forward.1} parent=1 // pred_region
      %119 = dma.done [#allocation3], 256
    $region57: #{model_4v4_forward.1} parent=1 // pred_fallthru
      _
    // Predicated region
    $region58: #{model_4v4_forward.1} parent=1 // pred_check
      _
    $region59: #{model_4v4_forward.1} parent=1 // pred_check_branch
      %121 = sbr.rel (0) target = $region61
    $region60: #{model_4v4_forward.1} parent=1 // pred_region
      %123 = dma.done [#allocation6], 256
    $region61: #{model_4v4_forward.1} parent=1 // pred_fallthru
      _
    // Predicated region
    $region62: #{model_4v4_forward.1} parent=1 // pred_check
      _
    $region63: #{model_4v4_forward.1} parent=1 // pred_check_branch
      %125 = sbr.rel (0) target = $region65
    $region64: #{model_4v4_forward.1} parent=1 // pred_region
      %127 = dma.done [#allocation6], 48
    $region65: #{model_4v4_forward.1} parent=1 // pred_fallthru
      _
    // Predicated region
    $region66: #{model_4v4_forward.1} parent=1 // pred_check
      _
    $region67: #{model_4v4_forward.1} parent=1 // pred_check_branch
      %129 = sbr.rel (0) target = $region69
    $region68: #{model_4v4_forward.1} parent=1 // pred_region
      %131 = dma.done [#allocation9], 1536
    $region69: #{model_4v4_forward.1} parent=1 // pred_fallthru
      _
    // Predicated region
    $region70: #{model_4v4_forward.1} parent=1 // pred_check
      _
    $region71: #{model_4v4_forward.1} parent=1 // pred_check_branch
      %133 = sbr.rel (0) target = $region73
    $region72: #{model_4v4_forward.1} parent=1 // pred_region
      %135 = dma.done [#allocation9], 48
    $region73: #{model_4v4_forward.1} parent=1 // pred_fallthru
      _
    // Predicated region
    $region74: #{model_4v4_forward.1} parent=1 // pred_check
      _
    $region75: #{model_4v4_forward.1} parent=1 // pred_check_branch
      %137 = sbr.rel (0) target = $region77
    $region76: #{model_4v4_forward.1} parent=1 // pred_region
      %139 = dma.done [#allocation12], 16
    $region77: #{model_4v4_forward.1} parent=1 // pred_fallthru
      _
    %v140 = vld [vmem:[#allocation2] sm:$0xff]
    %v141 = vld [vmem:[#allocation2 + $0x8] sm:$0xff]
    %v142 = vld [vmem:[#allocation5] sm:$0xff]
    %v143 = vld [vmem:[#allocation5 + $0x8] sm:$0xff]
    %v144 = vld [vmem:[%s2] sm:$0x3]
    %vm145 = vcmask 130048
    %v146 = vsel %vm145, %v142, 0.0
    %147 = vadd.xlane.f32.xlu0 %v146
    %v148 = vpop.xlane.xlu0 %147
    %v149 = vsel %vm145, %v143, 0.0
    %150 = vadd.xlane.f32.xlu0 %v149
    %v151 = vpop.xlane.xlu0 %150
    %vm152 = vcmp.gt.f32.partialorder %v148, 0.0
    %vm153 = vcmp.gt.f32.partialorder %v151, 0.0
    %vm154 = vcmask 123904
    %v155 = vsel %vm154, %v144, 0.0
    %156 = vadd.xlane.f32.xlu0 %v155
    %v157 = vpop.xlane.xlu0 %156
    %vm158 = vcmp.gt.f32.partialorder %v157, 0.0
    %v159 = vld [vmem:[%s3] sm:$0xff]
    %v160 = vld [vmem:[%s3 + $0x8] sm:$0xff]
    %v161 = vld [vmem:[%s3 + $0x10] sm:$0xff]
    %v162 = vld [vmem:[%s3 + $0x18] sm:$0xff]
    %v163 = vld [vmem:[#allocation7] sm:$0x1]
    %v165 = vperm.slane %v163, 0
    %vm167 = vcmask 261120
    %v169 = vsel %vm167, %v140, 0
    %v172 = vsel %vm167, %v141, 0
    %174 = vmatpush.msra.mxu0 0.0
    %175 = vmatpush.msra.mxu0 0.0
    %176 = vmatpush.msra.mxu0 0.0
    %177 = vmatpush.msra.mxu0 0.0
    %178 = vmatpush.msra.mxu0 0.0
    %179 = vmatpush.msra.mxu0 0.0
    %180 = vmatpush.msra.mxu0 0.0
    %181 = vmatpush.msra.mxu0 0.0
    %182 = vmatpush.msra.mxu0 0.0
    %183 = vmatpush.msra.mxu0 0.0
    %184 = vmatpush.msra.mxu0 0.0
    %185 = vmatpush.msra.mxu0 0.0
    %186 = vmatpush.msra.mxu0 %v162
    %187 = vmatpush.msra.mxu0 %v161
    %188 = vmatpush.msra.mxu0 %v160
    %189 = vmatpush.msra.mxu0 %v159
    %190 = vmatmul.f32.gmra.mxu0 %v169
    %v191 = vpop.f32.mrf.mxu0
    %v192 = vadd.f32 %v165, %v191
    %193 = vmatmul.f32.gmra.mxu0 %v172
    %v194 = vpop.f32.mrf.mxu0
    %v195 = vadd.f32 %v165, %v194
    %196 = vdwg.mxu0
    %v197 = vperm.slane %v142, 0
    %v198 = vlaneseq
    %v199 = vshrl.u32 %v198, 7
    %201 = vset.pattern.permute.xlu0 %v199
    %202 = vperm.xlu0 %201, %v197
    %v203 = vpop.permute.xlu0 %202
    %v204 = vperm.slane %v142, 1
    %v205 = vlaneseq
    %v206 = vshrl.u32 %v205, 7
    %208 = vset.pattern.permute.xlu0 %v206
    %209 = vperm.xlu0 %208, %v204
    %v210 = vpop.permute.xlu0 %209
    %v211 = vperm.slane %v142, 2
    %v212 = vlaneseq
    %v213 = vshrl.u32 %v212, 7
    %215 = vset.pattern.permute.xlu0 %v213
    %216 = vperm.xlu0 %215, %v211
    %v217 = vpop.permute.xlu0 %216
    %v218 = vperm.slane %v142, 3
    %v219 = vlaneseq
    %v220 = vshrl.u32 %v219, 7
    %222 = vset.pattern.permute.xlu0 %v220
    %223 = vperm.xlu0 %222, %v218
    %v224 = vpop.permute.xlu0 %223
    %v225 = vperm.slane %v142, 4
    %v226 = vlaneseq
    %v227 = vshrl.u32 %v226, 7
    %229 = vset.pattern.permute.xlu0 %v227
    %230 = vperm.xlu0 %229, %v225
    %v231 = vpop.permute.xlu0 %230
    %v232 = vperm.slane %v142, 5
    %v233 = vlaneseq
    %v234 = vshrl.u32 %v233, 7
    %236 = vset.pattern.permute.xlu0 %v234
    %237 = vperm.xlu0 %236, %v232
    %v238 = vpop.permute.xlu0 %237
    %v239 = vperm.slane %v142, 6
    %v240 = vlaneseq
    %v241 = vshrl.u32 %v240, 7
    %243 = vset.pattern.permute.xlu0 %v241
    %244 = vperm.xlu0 %243, %v239
    %v245 = vpop.permute.xlu0 %244
    %v246 = vperm.slane %v142, 7
    %v247 = vlaneseq
    %v248 = vshrl.u32 %v247, 7
    %250 = vset.pattern.permute.xlu0 %v248
    %251 = vperm.xlu0 %250, %v246
    %v252 = vpop.permute.xlu0 %251
    %v253 = vperm.slane %v143, 0
    %v254 = vlaneseq
    %v255 = vshrl.u32 %v254, 7
    %257 = vset.pattern.permute.xlu0 %v255
    %258 = vperm.xlu0 %257, %v253
    %v259 = vpop.permute.xlu0 %258
    %v260 = vperm.slane %v143, 1
    %v261 = vlaneseq
    %v262 = vshrl.u32 %v261, 7
    %264 = vset.pattern.permute.xlu0 %v262
    %265 = vperm.xlu0 %264, %v260
    %v266 = vpop.permute.xlu0 %265
    %v267 = vperm.slane %v143, 2
    %v268 = vlaneseq
    %v269 = vshrl.u32 %v268, 7
    %271 = vset.pattern.permute.xlu0 %v269
    %272 = vperm.xlu0 %271, %v267
    %v273 = vpop.permute.xlu0 %272
    %v274 = vperm.slane %v143, 3
    %v275 = vlaneseq
    %v276 = vshrl.u32 %v275, 7
    %278 = vset.pattern.permute.xlu0 %v276
    %279 = vperm.xlu0 %278, %v274
    %v280 = vpop.permute.xlu0 %279
    %v281 = vperm.slane %v143, 4
    %v282 = vlaneseq
    %v283 = vshrl.u32 %v282, 7
    %285 = vset.pattern.permute.xlu0 %v283
    %286 = vperm.xlu0 %285, %v281
    %v287 = vpop.permute.xlu0 %286
    %v288 = vperm.slane %v143, 5
    %v289 = vlaneseq
    %v290 = vshrl.u32 %v289, 7
    %292 = vset.pattern.permute.xlu0 %v290
    %293 = vperm.xlu0 %292, %v288
    %v294 = vpop.permute.xlu0 %293
    %v295 = vperm.slane %v143, 6
    %v296 = vlaneseq
    %v297 = vshrl.u32 %v296, 7
    %299 = vset.pattern.permute.xlu0 %v297
    %300 = vperm.xlu0 %299, %v295
    %v301 = vpop.permute.xlu0 %300
    %v302 = vperm.slane %v143, 7
    %v303 = vlaneseq
    %v304 = vshrl.u32 %v303, 7
    %306 = vset.pattern.permute.xlu0 %v304
    %307 = vperm.xlu0 %306, %v302
    %v308 = vpop.permute.xlu0 %307
    %vm309 = vcmp.gt.f32.partialorder %v203, 0.0
    %vm310 = vcmp.gt.f32.partialorder %v210, 0.0
    %vm311 = vcmp.gt.f32.partialorder %v217, 0.0
    %vm312 = vcmp.gt.f32.partialorder %v224, 0.0
    %vm313 = vcmp.gt.f32.partialorder %v231, 0.0
    %vm314 = vcmp.gt.f32.partialorder %v238, 0.0
    %vm315 = vcmp.gt.f32.partialorder %v245, 0.0
    %vm316 = vcmp.gt.f32.partialorder %v252, 0.0
    %vm317 = vcmp.gt.f32.partialorder %v259, 0.0
    %vm318 = vcmp.gt.f32.partialorder %v266, 0.0
    %vm319 = vcmp.gt.f32.partialorder %v273, 0.0
    %vm320 = vcmp.gt.f32.partialorder %v280, 0.0
    %vm321 = vcmp.gt.f32.partialorder %v287, 0.0
    %vm322 = vcmp.gt.f32.partialorder %v294, 0.0
    %vm323 = vcmp.gt.f32.partialorder %v301, 0.0
    %vm324 = vcmp.gt.f32.partialorder %v308, 0.0
    %v325 = vsel %vm309, 1, 0
    %v326 = vsel %vm310, 1, 0
    %v327 = vsel %vm311, 1, 0
    %v328 = vsel %vm312, 1, 0
    %v329 = vsel %vm313, 1, 0
    %v330 = vsel %vm314, 1, 0
    %v331 = vsel %vm315, 1, 0
    %v332 = vsel %vm316, 1, 0
    %v333 = vsel %vm317, 1, 0
    %v334 = vsel %vm318, 1, 0
    %v335 = vsel %vm319, 1, 0
    %v336 = vsel %vm320, 1, 0
    %v337 = vsel %vm321, 1, 0
    %v338 = vsel %vm322, 1, 0
    %v339 = vsel %vm323, 1, 0
    %v340 = vsel %vm324, 1, 0
    %vm341 = vcmp.eq.s32.totalorder %v325, 1
    %vm342 = vcmp.eq.s32.totalorder %v326, 1
    %vm343 = vcmp.eq.s32.totalorder %v327, 1
    %vm344 = vcmp.eq.s32.totalorder %v328, 1
    %vm345 = vcmp.eq.s32.totalorder %v329, 1
    %vm346 = vcmp.eq.s32.totalorder %v330, 1
    %vm347 = vcmp.eq.s32.totalorder %v331, 1
    %vm348 = vcmp.eq.s32.totalorder %v332, 1
    %vm349 = vcmp.eq.s32.totalorder %v333, 1
    %vm350 = vcmp.eq.s32.totalorder %v334, 1
    %vm351 = vcmp.eq.s32.totalorder %v335, 1
    %vm352 = vcmp.eq.s32.totalorder %v336, 1
    %vm353 = vcmp.eq.s32.totalorder %v337, 1
    %vm354 = vcmp.eq.s32.totalorder %v338, 1
    %vm355 = vcmp.eq.s32.totalorder %v339, 1
    %vm356 = vcmp.eq.s32.totalorder %v340, 1
    %v357 = vsel %vm341, %v192, -1e+30
    %v358 = vsel %vm342, %v192, -1e+30
    %v359 = vsel %vm343, %v192, -1e+30
    %v360 = vsel %vm344, %v192, -1e+30
    %v361 = vsel %vm345, %v192, -1e+30
    %v362 = vsel %vm346, %v192, -1e+30
    %v363 = vsel %vm347, %v192, -1e+30
    %v364 = vsel %vm348, %v192, -1e+30
    %v365 = vsel %vm349, %v192, -1e+30
    %v366 = vsel %vm350, %v192, -1e+30
    %v367 = vsel %vm351, %v192, -1e+30
    %v368 = vsel %vm352, %v192, -1e+30
    %v369 = vsel %vm353, %v192, -1e+30
    %v370 = vsel %vm354, %v192, -1e+30
    %v371 = vsel %vm355, %v192, -1e+30
    %v372 = vsel %vm356, %v192, -1e+30
    %v373 = vsel %vm167, %v357, -inf
    %v374 = vrot.slane %v373, 4
    %v375 = vmax.f32 %v373, %v374
    %v376 = vrot.slane %v375, 2
    %v377 = vmax.f32 %v375, %v376
    %v378 = vrot.slane %v377, 1
    %v379 = vmax.f32 %v377, %v378
    %v380 = vsel %vm167, %v358, -inf
    %v381 = vrot.slane %v380, 4
    %v382 = vmax.f32 %v380, %v381
    %v383 = vrot.slane %v382, 2
    %v384 = vmax.f32 %v382, %v383
    %v385 = vrot.slane %v384, 1
    %v386 = vmax.f32 %v384, %v385
    %v387 = vsel %vm167, %v359, -inf
    %v388 = vrot.slane %v387, 4
    %v389 = vmax.f32 %v387, %v388
    %v390 = vrot.slane %v389, 2
    %v391 = vmax.f32 %v389, %v390
    %v392 = vrot.slane %v391, 1
    %v393 = vmax.f32 %v391, %v392
    %v394 = vsel %vm167, %v360, -inf
    %v395 = vrot.slane %v394, 4
    %v396 = vmax.f32 %v394, %v395
    %v397 = vrot.slane %v396, 2
    %v398 = vmax.f32 %v396, %v397
    %v399 = vrot.slane %v398, 1
    %v400 = vmax.f32 %v398, %v399
    %v401 = vsel %vm167, %v361, -inf
    %v402 = vrot.slane %v401, 4
    %v403 = vmax.f32 %v401, %v402
    %v404 = vrot.slane %v403, 2
    %v405 = vmax.f32 %v403, %v404
    %v406 = vrot.slane %v405, 1
    %v407 = vmax.f32 %v405, %v406
    %v408 = vsel %vm167, %v362, -inf
    %v409 = vrot.slane %v408, 4
    %v410 = vmax.f32 %v408, %v409
    %v411 = vrot.slane %v410, 2
    %v412 = vmax.f32 %v410, %v411
    %v413 = vrot.slane %v412, 1
    %v414 = vmax.f32 %v412, %v413
    %v415 = vsel %vm167, %v363, -inf
    %v416 = vrot.slane %v415, 4
    %v417 = vmax.f32 %v415, %v416
    %v418 = vrot.slane %v417, 2
    %v419 = vmax.f32 %v417, %v418
    %v420 = vrot.slane %v419, 1
    %v421 = vmax.f32 %v419, %v420
    %v422 = vsel %vm167, %v364, -inf
    %v423 = vrot.slane %v422, 4
    %v424 = vmax.f32 %v422, %v423
    %v425 = vrot.slane %v424, 2
    %v426 = vmax.f32 %v424, %v425
    %v427 = vrot.slane %v426, 1
    %v428 = vmax.f32 %v426, %v427
    %v429 = vsel %vm167, %v365, -inf
    %v430 = vrot.slane %v429, 4
    %v431 = vmax.f32 %v429, %v430
    %v432 = vrot.slane %v431, 2
    %v433 = vmax.f32 %v431, %v432
    %v434 = vrot.slane %v433, 1
    %v435 = vmax.f32 %v433, %v434
    %v436 = vsel %vm167, %v366, -inf
    %v437 = vrot.slane %v436, 4
    %v438 = vmax.f32 %v436, %v437
    %v439 = vrot.slane %v438, 2
    %v440 = vmax.f32 %v438, %v439
    %v441 = vrot.slane %v440, 1
    %v442 = vmax.f32 %v440, %v441
    %v443 = vsel %vm167, %v367, -inf
    %v444 = vrot.slane %v443, 4
    %v445 = vmax.f32 %v443, %v444
    %v446 = vrot.slane %v445, 2
    %v447 = vmax.f32 %v445, %v446
    %v448 = vrot.slane %v447, 1
    %v449 = vmax.f32 %v447, %v448
    %v450 = vsel %vm167, %v368, -inf
    %v451 = vrot.slane %v450, 4
    %v452 = vmax.f32 %v450, %v451
    %v453 = vrot.slane %v452, 2
    %v454 = vmax.f32 %v452, %v453
    %v455 = vrot.slane %v454, 1
    %v456 = vmax.f32 %v454, %v455
    %v457 = vsel %vm167, %v369, -inf
    %v458 = vrot.slane %v457, 4
    %v459 = vmax.f32 %v457, %v458
    %v460 = vrot.slane %v459, 2
    %v461 = vmax.f32 %v459, %v460
    %v462 = vrot.slane %v461, 1
    %v463 = vmax.f32 %v461, %v462
    %v464 = vsel %vm167, %v370, -inf
    %v465 = vrot.slane %v464, 4
    %v466 = vmax.f32 %v464, %v465
    %v467 = vrot.slane %v466, 2
    %v468 = vmax.f32 %v466, %v467
    %v469 = vrot.slane %v468, 1
    %v470 = vmax.f32 %v468, %v469
    %v471 = vsel %vm167, %v371, -inf
    %v472 = vrot.slane %v471, 4
    %v473 = vmax.f32 %v471, %v472
    %v474 = vrot.slane %v473, 2
    %v475 = vmax.f32 %v473, %v474
    %v476 = vrot.slane %v475, 1
    %v477 = vmax.f32 %v475, %v476
    %v478 = vsel %vm167, %v372, -inf
    %v479 = vrot.slane %v478, 4
    %v480 = vmax.f32 %v478, %v479
    %v481 = vrot.slane %v480, 2
    %v482 = vmax.f32 %v480, %v481
    %v483 = vrot.slane %v482, 1
    %v484 = vmax.f32 %v482, %v483
    %v485 = vmax.f32 %v379, -1e+30
    %v486 = vmax.f32 %v386, -1e+30
    %v487 = vmax.f32 %v393, -1e+30
    %v488 = vmax.f32 %v400, -1e+30
    %v489 = vmax.f32 %v407, -1e+30
    %v490 = vmax.f32 %v414, -1e+30
    %v491 = vmax.f32 %v421, -1e+30
    %v492 = vmax.f32 %v428, -1e+30
    %v493 = vmax.f32 %v435, -1e+30
    %v494 = vmax.f32 %v442, -1e+30
    %v495 = vmax.f32 %v449, -1e+30
    %v496 = vmax.f32 %v456, -1e+30
    %v497 = vmax.f32 %v463, -1e+30
    %v498 = vmax.f32 %v470, -1e+30
    %v499 = vmax.f32 %v477, -1e+30
    %v500 = vmax.f32 %v484, -1e+30
    %v501 = vlaneseq
    %v502 = vshrl.u32 %v501, 7
    %v503 = vadd.s32 %v502, 8
    %504 = vset.pattern.permute.xlu0 %v503
    %505 = vperm.xlu0 %504, %v197
    %v506 = vpop.permute.xlu0 %505
    %v507 = vlaneseq
    %v508 = vshrl.u32 %v507, 7
    %v509 = vadd.s32 %v508, 8
    %510 = vset.pattern.permute.xlu0 %v509
    %511 = vperm.xlu0 %510, %v204
    %v512 = vpop.permute.xlu0 %511
    %v513 = vlaneseq
    %v514 = vshrl.u32 %v513, 7
    %v515 = vadd.s32 %v514, 8
    %516 = vset.pattern.permute.xlu0 %v515
    %517 = vperm.xlu0 %516, %v211
    %v518 = vpop.permute.xlu0 %517
    %v519 = vlaneseq
    %v520 = vshrl.u32 %v519, 7
    %v521 = vadd.s32 %v520, 8
    %522 = vset.pattern.permute.xlu0 %v521
    %523 = vperm.xlu0 %522, %v218
    %v524 = vpop.permute.xlu0 %523
    %v525 = vlaneseq
    %v526 = vshrl.u32 %v525, 7
    %v527 = vadd.s32 %v526, 8
    %528 = vset.pattern.permute.xlu0 %v527
    %529 = vperm.xlu0 %528, %v225
    %v530 = vpop.permute.xlu0 %529
    %v531 = vlaneseq
    %v532 = vshrl.u32 %v531, 7
    %v533 = vadd.s32 %v532, 8
    %534 = vset.pattern.permute.xlu0 %v533
    %535 = vperm.xlu0 %534, %v232
    %v536 = vpop.permute.xlu0 %535
    %v537 = vlaneseq
    %v538 = vshrl.u32 %v537, 7
    %v539 = vadd.s32 %v538, 8
    %540 = vset.pattern.permute.xlu0 %v539
    %541 = vperm.xlu0 %540, %v239
    %v542 = vpop.permute.xlu0 %541
    %v543 = vlaneseq
    %v544 = vshrl.u32 %v543, 7
    %v545 = vadd.s32 %v544, 8
    %546 = vset.pattern.permute.xlu0 %v545
    %547 = vperm.xlu0 %546, %v246
    %v548 = vpop.permute.xlu0 %547
    %v549 = vlaneseq
    %v550 = vshrl.u32 %v549, 7
    %v551 = vadd.s32 %v550, 8
    %552 = vset.pattern.permute.xlu0 %v551
    %553 = vperm.xlu0 %552, %v253
    %v554 = vpop.permute.xlu0 %553
    %v555 = vlaneseq
    %v556 = vshrl.u32 %v555, 7
    %v557 = vadd.s32 %v556, 8
    %558 = vset.pattern.permute.xlu0 %v557
    %559 = vperm.xlu0 %558, %v260
    %v560 = vpop.permute.xlu0 %559
    %v561 = vlaneseq
    %v562 = vshrl.u32 %v561, 7
    %v563 = vadd.s32 %v562, 8
    %564 = vset.pattern.permute.xlu0 %v563
    %565 = vperm.xlu0 %564, %v267
    %v566 = vpop.permute.xlu0 %565
    %v567 = vlaneseq
    %v568 = vshrl.u32 %v567, 7
    %v569 = vadd.s32 %v568, 8
    %570 = vset.pattern.permute.xlu0 %v569
    %571 = vperm.xlu0 %570, %v274
    %v572 = vpop.permute.xlu0 %571
    %v573 = vlaneseq
    %v574 = vshrl.u32 %v573, 7
    %v575 = vadd.s32 %v574, 8
    %576 = vset.pattern.permute.xlu0 %v575
    %577 = vperm.xlu0 %576, %v281
    %v578 = vpop.permute.xlu0 %577
    %v579 = vlaneseq
    %v580 = vshrl.u32 %v579, 7
    %v581 = vadd.s32 %v580, 8
    %582 = vset.pattern.permute.xlu0 %v581
    %583 = vperm.xlu0 %582, %v288
    %v584 = vpop.permute.xlu0 %583
    %v585 = vlaneseq
    %v586 = vshrl.u32 %v585, 7
    %v587 = vadd.s32 %v586, 8
    %588 = vset.pattern.permute.xlu0 %v587
    %589 = vperm.xlu0 %588, %v295
    %v590 = vpop.permute.xlu0 %589
    %v591 = vlaneseq
    %v592 = vshrl.u32 %v591, 7
    %v593 = vadd.s32 %v592, 8
    %594 = vset.pattern.permute.xlu0 %v593
    %595 = vperm.xlu0 %594, %v302
    %v596 = vpop.permute.xlu0 %595
    %vm597 = vcmp.gt.f32.partialorder %v506, 0.0
    %vm598 = vcmp.gt.f32.partialorder %v512, 0.0
    %vm599 = vcmp.gt.f32.partialorder %v518, 0.0
    %vm600 = vcmp.gt.f32.partialorder %v524, 0.0
    %vm601 = vcmp.gt.f32.partialorder %v530, 0.0
    %vm602 = vcmp.gt.f32.partialorder %v536, 0.0
    %vm603 = vcmp.gt.f32.partialorder %v542, 0.0
    %vm604 = vcmp.gt.f32.partialorder %v548, 0.0
    %vm605 = vcmp.gt.f32.partialorder %v554, 0.0
    %vm606 = vcmp.gt.f32.partialorder %v560, 0.0
    %vm607 = vcmp.gt.f32.partialorder %v566, 0.0
    %vm608 = vcmp.gt.f32.partialorder %v572, 0.0
    %vm609 = vcmp.gt.f32.partialorder %v578, 0.0
    %vm610 = vcmp.gt.f32.partialorder %v584, 0.0
    %vm611 = vcmp.gt.f32.partialorder %v590, 0.0
    %vm612 = vcmp.gt.f32.partialorder %v596, 0.0
    %v613 = vsel %vm597, 1, 0
    %v614 = vsel %vm598, 1, 0
    %v615 = vsel %vm599, 1, 0
    %v616 = vsel %vm600, 1, 0
    %v617 = vsel %vm601, 1, 0
    %v618 = vsel %vm602, 1, 0
    %v619 = vsel %vm603, 1, 0
    %v620 = vsel %vm604, 1, 0
    %v621 = vsel %vm605, 1, 0
    %v622 = vsel %vm606, 1, 0
    %v623 = vsel %vm607, 1, 0
    %v624 = vsel %vm608, 1, 0
    %v625 = vsel %vm609, 1, 0
    %v626 = vsel %vm610, 1, 0
    %v627 = vsel %vm611, 1, 0
    %v628 = vsel %vm612, 1, 0
    %vm629 = vcmp.eq.s32.totalorder %v613, 1
    %vm630 = vcmp.eq.s32.totalorder %v614, 1
    %vm631 = vcmp.eq.s32.totalorder %v615, 1
    %vm632 = vcmp.eq.s32.totalorder %v616, 1
    %vm633 = vcmp.eq.s32.totalorder %v617, 1
    %vm634 = vcmp.eq.s32.totalorder %v618, 1
    %vm635 = vcmp.eq.s32.totalorder %v619, 1
    %vm636 = vcmp.eq.s32.totalorder %v620, 1
    %vm637 = vcmp.eq.s32.totalorder %v621, 1
    %vm638 = vcmp.eq.s32.totalorder %v622, 1
    %vm639 = vcmp.eq.s32.totalorder %v623, 1
    %vm640 = vcmp.eq.s32.totalorder %v624, 1
    %vm641 = vcmp.eq.s32.totalorder %v625, 1
    %vm642 = vcmp.eq.s32.totalorder %v626, 1
    %vm643 = vcmp.eq.s32.totalorder %v627, 1
    %vm644 = vcmp.eq.s32.totalorder %v628, 1
    %v645 = vsel %vm629, %v195, -1e+30
    %v646 = vsel %vm630, %v195, -1e+30
    %v647 = vsel %vm631, %v195, -1e+30
    %v648 = vsel %vm632, %v195, -1e+30
    %v649 = vsel %vm633, %v195, -1e+30
    %v650 = vsel %vm634, %v195, -1e+30
    %v651 = vsel %vm635, %v195, -1e+30
    %v652 = vsel %vm636, %v195, -1e+30
    %v653 = vsel %vm637, %v195, -1e+30
    %v654 = vsel %vm638, %v195, -1e+30
    %v655 = vsel %vm639, %v195, -1e+30
    %v656 = vsel %vm640, %v195, -1e+30
    %v657 = vsel %vm641, %v195, -1e+30
    %v658 = vsel %vm642, %v195, -1e+30
    %v659 = vsel %vm643, %v195, -1e+30
    %v660 = vsel %vm644, %v195, -1e+30
    %v661 = vsel %vm167, %v645, -inf
    %v662 = vrot.slane %v661, 4
    %v663 = vmax.f32 %v661, %v662
    %v664 = vrot.slane %v663, 2
    %v665 = vmax.f32 %v663, %v664
    %v666 = vrot.slane %v665, 1
    %v667 = vmax.f32 %v665, %v666
    %v668 = vsel %vm167, %v646, -inf
    %v669 = vrot.slane %v668, 4
    %v670 = vmax.f32 %v668, %v669
    %v671 = vrot.slane %v670, 2
    %v672 = vmax.f32 %v670, %v671
    %v673 = vrot.slane %v672, 1
    %v674 = vmax.f32 %v672, %v673
    %v675 = vsel %vm167, %v647, -inf
    %v676 = vrot.slane %v675, 4
    %v677 = vmax.f32 %v675, %v676
    %v678 = vrot.slane %v677, 2
    %v679 = vmax.f32 %v677, %v678
    %v680 = vrot.slane %v679, 1
    %v681 = vmax.f32 %v679, %v680
    %v682 = vsel %vm167, %v648, -inf
    %v683 = vrot.slane %v682, 4
    %v684 = vmax.f32 %v682, %v683
    %v685 = vrot.slane %v684, 2
    %v686 = vmax.f32 %v684, %v685
    %v687 = vrot.slane %v686, 1
    %v688 = vmax.f32 %v686, %v687
    %v689 = vsel %vm167, %v649, -inf
    %v690 = vrot.slane %v689, 4
    %v691 = vmax.f32 %v689, %v690
    %v692 = vrot.slane %v691, 2
    %v693 = vmax.f32 %v691, %v692
    %v694 = vrot.slane %v693, 1
    %v695 = vmax.f32 %v693, %v694
    %v696 = vsel %vm167, %v650, -inf
    %v697 = vrot.slane %v696, 4
    %v698 = vmax.f32 %v696, %v697
    %v699 = vrot.slane %v698, 2
    %v700 = vmax.f32 %v698, %v699
    %v701 = vrot.slane %v700, 1
    %v702 = vmax.f32 %v700, %v701
    %v703 = vsel %vm167, %v651, -inf
    %v704 = vrot.slane %v703, 4
    %v705 = vmax.f32 %v703, %v704
    %v706 = vrot.slane %v705, 2
    %v707 = vmax.f32 %v705, %v706
    %v708 = vrot.slane %v707, 1
    %v709 = vmax.f32 %v707, %v708
    %v710 = vsel %vm167, %v652, -inf
    %v711 = vrot.slane %v710, 4
    %v712 = vmax.f32 %v710, %v711
    %v713 = vrot.slane %v712, 2
    %v714 = vmax.f32 %v712, %v713
    %v715 = vrot.slane %v714, 1
    %v716 = vmax.f32 %v714, %v715
    %v717 = vsel %vm167, %v653, -inf
    %v718 = vrot.slane %v717, 4
    %v719 = vmax.f32 %v717, %v718
    %v720 = vrot.slane %v719, 2
    %v721 = vmax.f32 %v719, %v720
    %v722 = vrot.slane %v721, 1
    %v723 = vmax.f32 %v721, %v722
    %v724 = vsel %vm167, %v654, -inf
    %v725 = vrot.slane %v724, 4
    %v726 = vmax.f32 %v724, %v725
    %v727 = vrot.slane %v726, 2
    %v728 = vmax.f32 %v726, %v727
    %v729 = vrot.slane %v728, 1
    %v730 = vmax.f32 %v728, %v729
    %v731 = vsel %vm167, %v655, -inf
    %v732 = vrot.slane %v731, 4
    %v733 = vmax.f32 %v731, %v732
    %v734 = vrot.slane %v733, 2
    %v735 = vmax.f32 %v733, %v734
    %v736 = vrot.slane %v735, 1
    %v737 = vmax.f32 %v735, %v736
    %v738 = vsel %vm167, %v656, -inf
    %v739 = vrot.slane %v738, 4
    %v740 = vmax.f32 %v738, %v739
    %v741 = vrot.slane %v740, 2
    %v742 = vmax.f32 %v740, %v741
    %v743 = vrot.slane %v742, 1
    %v744 = vmax.f32 %v742, %v743
    %v745 = vsel %vm167, %v657, -inf
    %v746 = vrot.slane %v745, 4
    %v747 = vmax.f32 %v745, %v746
    %v748 = vrot.slane %v747, 2
    %v749 = vmax.f32 %v747, %v748
    %v750 = vrot.slane %v749, 1
    %v751 = vmax.f32 %v749, %v750
    %v752 = vsel %vm167, %v658, -inf
    %v753 = vrot.slane %v752, 4
    %v754 = vmax.f32 %v752, %v753
    %v755 = vrot.slane %v754, 2
    %v756 = vmax.f32 %v754, %v755
    %v757 = vrot.slane %v756, 1
    %v758 = vmax.f32 %v756, %v757
    %v759 = vsel %vm167, %v659, -inf
    %v760 = vrot.slane %v759, 4
    %v761 = vmax.f32 %v759, %v760
    %v762 = vrot.slane %v761, 2
    %v763 = vmax.f32 %v761, %v762
    %v764 = vrot.slane %v763, 1
    %v765 = vmax.f32 %v763, %v764
    %v766 = vsel %vm167, %v660, -inf
    %v767 = vrot.slane %v766, 4
    %v768 = vmax.f32 %v766, %v767
    %v769 = vrot.slane %v768, 2
    %v770 = vmax.f32 %v768, %v769
    %v771 = vrot.slane %v770, 1
    %v772 = vmax.f32 %v770, %v771
    %v773 = vmax.f32 %v485, %v667
    %v774 = vmax.f32 %v486, %v674
    %v775 = vmax.f32 %v487, %v681
    %v776 = vmax.f32 %v488, %v688
    %v777 = vmax.f32 %v489, %v695
    %v778 = vmax.f32 %v490, %v702
    %v779 = vmax.f32 %v491, %v709
    %v780 = vmax.f32 %v492, %v716
    %v781 = vmax.f32 %v493, %v723
    %v782 = vmax.f32 %v494, %v730
    %v783 = vmax.f32 %v495, %v737
    %v784 = vmax.f32 %v496, %v744
    %v785 = vmax.f32 %v497, %v751
    %v786 = vmax.f32 %v498, %v758
    %v787 = vmax.f32 %v499, %v765
    %v788 = vmax.f32 %v500, %v772
    %v789 = vsel %vm152, 1, 0
    %v790 = vsel %vm153, 1, 0
    %vm791 = vcmp.eq.s32.totalorder %v789, 1
    %vm792 = vcmp.eq.s32.totalorder %v790, 1
    %vm809 = vcmask 1041409
    %v810 = vsel %vm809, %v774, %v773
    %vm811 = vcmask 1042434
    %v812 = vsel %vm811, %v775, %v810
    %vm813 = vcmask 1043459
    %v814 = vsel %vm813, %v776, %v812
    %vm815 = vcmask 1044484
    %v816 = vsel %vm815, %v777, %v814
    %vm817 = vcmask 1045509
    %v818 = vsel %vm817, %v778, %v816
    %vm819 = vcmask 1046534
    %v820 = vsel %vm819, %v779, %v818
    %vm821 = vcmask 1047559
    %v822 = vsel %vm821, %v780, %v820
    %v823 = vsel %vm809, %v782, %v781
    %v824 = vsel %vm811, %v783, %v823
    %v825 = vsel %vm813, %v784, %v824
    %v826 = vsel %vm815, %v785, %v825
    %v827 = vsel %vm817, %v786, %v826
    %v828 = vsel %vm819, %v787, %v827
    %v829 = vsel %vm821, %v788, %v828
    %v832 = vsel %vm791, %v822, 0.0
    %v833 = vsel %vm792, %v829, 0.0
    %v835 = vsel %vm145, %v142, 0
    %v838 = vsel %vm145, %v143, 0
    %840 = vmatpush.msra.mxu0 0.0
    %841 = vmatpush.msra.mxu0 0.0
    %842 = vmatpush.msra.mxu0 0.0
    %843 = vmatpush.msra.mxu0 0.0
    %844 = vmatpush.msra.mxu0 0.0
    %845 = vmatpush.msra.mxu0 0.0
    %846 = vmatpush.msra.mxu0 0.0
    %847 = vmatpush.msra.mxu0 0.0
    %848 = vmatpush.msra.mxu0 0.0
    %849 = vmatpush.msra.mxu0 0.0
    %850 = vmatpush.msra.mxu0 0.0
    %851 = vmatpush.msra.mxu0 0.0
    %852 = vmatpush.msra.mxu0 0.0
    %853 = vmatpush.msra.mxu0 0.0
    %854 = vmatpush.msra.mxu0 %v195
    %855 = vmatpush.msra.mxu0 %v192
    %856 = vmatmul.f32.gmra.mxu0 %v835
    %v857 = vpop.f32.mrf.mxu0
    %v858 = vadd.f32 %v832, %v857
    %859 = vmatmul.f32.gmra.mxu0 %v838
    %v860 = vpop.f32.mrf.mxu0
    %v861 = vadd.f32 %v833, %v860
    %862 = vdwg.mxu0
    %v863 = vld [vmem:[#allocation8] sm:$0xff]
    %v864 = vld [vmem:[#allocation8 + $0x8] sm:$0xff]
    %v865 = vld [vmem:[#allocation8 + $0x10] sm:$0xff]
    %v866 = vld [vmem:[#allocation8 + $0x18] sm:$0xff]
    %v867 = vld [vmem:[#allocation10] sm:$0x1]
    %v869 = vperm.slane %v867, 0
    %v872 = vsel %vm167, %v858, 0
    %v875 = vsel %vm167, %v861, 0
    %877 = vmatpush.msra.mxu0 0.0
    %878 = vmatpush.msra.mxu0 0.0
    %879 = vmatpush.msra.mxu0 0.0
    %880 = vmatpush.msra.mxu0 0.0
    %881 = vmatpush.msra.mxu0 0.0
    %882 = vmatpush.msra.mxu0 0.0
    %883 = vmatpush.msra.mxu0 0.0
    %884 = vmatpush.msra.mxu0 0.0
    %885 = vmatpush.msra.mxu0 0.0
    %886 = vmatpush.msra.mxu0 0.0
    %887 = vmatpush.msra.mxu0 0.0
    %888 = vmatpush.msra.mxu0 0.0
    %889 = vmatpush.msra.mxu0 %v866
    %890 = vmatpush.msra.mxu0 %v865
    %891 = vmatpush.msra.mxu0 %v864
    %892 = vmatpush.msra.mxu0 %v863
    %893 = vmatmul.f32.gmra.mxu0 %v872
    %v894 = vpop.f32.mrf.mxu0
    %v895 = vadd.f32 %v869, %v894
    %896 = vmatmul.f32.gmra.mxu0 %v875
    %v897 = vpop.f32.mrf.mxu0
    %v898 = vadd.f32 %v869, %v897
    %899 = vdwg.mxu0
    %902 = vrot.lane.b32.xlu0 %v192, 96
    %v903 = vpop.permute.xlu0 %902
    %904 = vrot.lane.b32.xlu0 %v195, 96
    %v905 = vpop.permute.xlu0 %904
    %v908 = vadd.f32 %v895, %v903
    %v909 = vadd.f32 %v898, %v905
    %v910 = vxor.u32 %v908, 2147483648
    %v911 = vxor.u32 %v909, 2147483648
    %v912 = vmul.f32 %v910, 1.442695
    %v913 = vpow.pop %v912
    %v914 = vmul.f32 %v911, 1.442695
    %v915 = vpow.pop %v914
    %v916 = vadd.f32 %v913, 1.0
    %v917 = vadd.f32 %v915, 1.0
    %v918 = vrcp.pop %v916
    %v919 = vmul.f32 %v916, %v918
    %v920 = vsub.f32 1.0, %v919
    %v921 = vmul.f32 %v918, %v920
    %v922 = vadd.f32 %v918, %v921
    %vm923 = vweird.f32 %v916
    %vm924 = vweird.f32 %v918
    %vm925 = vmor %vm923, %vm924
    %v926 = vsel %vm925, %v918, %v922
    %v927 = vand.u32 2147483647, %v916
    %vm928 = vcmp.eq.f32.partialorder %v927, 8.507059e+37
    %v929 = vand.u32 %v916, 2147483648
    %v930 = vor.u32 1.1754944e-38, %v929
    %v931 = vsel %vm928, %v930, %v926
    %v932 = vmul.f32 1.0, %v931
    %v933 = vrcp.pop %v917
    %v934 = vmul.f32 %v917, %v933
    %v935 = vsub.f32 1.0, %v934
    %v936 = vmul.f32 %v933, %v935
    %v937 = vadd.f32 %v933, %v936
    %vm938 = vweird.f32 %v917
    %vm939 = vweird.f32 %v933
    %vm940 = vmor %vm938, %vm939
    %v941 = vsel %vm940, %v933, %v937
    %v942 = vand.u32 2147483647, %v917
    %vm943 = vcmp.eq.f32.partialorder %v942, 8.507059e+37
    %v944 = vand.u32 %v917, 2147483648
    %v945 = vor.u32 1.1754944e-38, %v944
    %v946 = vsel %vm943, %v945, %v941
    %v947 = vmul.f32 1.0, %v946
    %948 = vrot.lane.b32.xlu0 %v192, 32
    %v949 = vpop.permute.xlu0 %948
    %950 = vrot.lane.b32.xlu0 %v195, 32
    %v951 = vpop.permute.xlu0 %950
    %v954 = vmul.f32 %v932, %v949
    %v955 = vmul.f32 %v947, %v951
    %958 = vrot.lane.b32.xlu0 %v954, 64
    %v959 = vpop.permute.xlu0 %958
    %960 = vrot.lane.b32.xlu0 %v955, 64
    %v961 = vpop.permute.xlu0 %960
    %v964 = vadd.f32 %v895, %v959
    %v965 = vadd.f32 %v898, %v961
    %v966 = vtanh.pop %v964
    %v967 = vtanh.pop %v965
    %v968 = vsub.f32 1.0, %v932
    %v969 = vsub.f32 1.0, %v947
    %972 = vrot.lane.b32.xlu0 %v966, 96
    %v973 = vpop.permute.xlu0 %972
    %974 = vrot.lane.b32.xlu0 %v967, 96
    %v975 = vpop.permute.xlu0 %974
    %v978 = vmul.f32 %v968, %v973
    %v979 = vmul.f32 %v969, %v975
    %980 = vrot.lane.b32.xlu0 %v140, 32
    %v981 = vpop.permute.xlu0 %980
    %982 = vrot.lane.b32.xlu0 %v141, 32
    %v983 = vpop.permute.xlu0 %982
    %v986 = vmul.f32 %v932, %v981
    %v987 = vmul.f32 %v947, %v983
    %v988 = vadd.f32 %v978, %v986
    %v989 = vadd.f32 %v979, %v987
    %992 = vrot.lane.b32.xlu0 %v988, 96
    %v993 = vpop.permute.xlu0 %992
    %994 = vrot.lane.b32.xlu0 %v989, 96
    %v995 = vpop.permute.xlu0 %994
    %v998 = vadd.f32 %v140, %v993
    %v999 = vadd.f32 %v141, %v995
    %s1000 = scalar_lea.vmem %s3, 32
    %v1001 = vld [vmem:[%s1000] sm:$0xff]
    %v1002 = vld [vmem:[%s1000 + $0x8] sm:$0xff]
    %v1003 = vld [vmem:[%s1000 + $0x10] sm:$0xff]
    %v1004 = vld [vmem:[%s1000 + $0x18] sm:$0xff]
    %s1005 = scalar_lea.vmem [#allocation7], 1
    %v1006 = vld [vmem:[%s1005] sm:$0x1]
    %v1008 = vperm.slane %v1006, 0
    %v1011 = vsel %vm167, %v998, 0
    %v1014 = vsel %vm167, %v999, 0
    %1016 = vmatpush.msra.mxu0 0.0
    %1017 = vmatpush.msra.mxu0 0.0
    %1018 = vmatpush.msra.mxu0 0.0
    %1019 = vmatpush.msra.mxu0 0.0
    %1020 = vmatpush.msra.mxu0 0.0
    %1021 = vmatpush.msra.mxu0 0.0
    %1022 = vmatpush.msra.mxu0 0.0
    %1023 = vmatpush.msra.mxu0 0.0
    %1024 = vmatpush.msra.mxu0 0.0
    %1025 = vmatpush.msra.mxu0 0.0
    %1026 = vmatpush.msra.mxu0 0.0
    %1027 = vmatpush.msra.mxu0 0.0
    %1028 = vmatpush.msra.mxu0 %v1004
    %1029 = vmatpush.msra.mxu0 %v1003
    %1030 = vmatpush.msra.mxu0 %v1002
    %1031 = vmatpush.msra.mxu0 %v1001
    %1032 = vmatmul.f32.gmra.mxu0 %v1011
    %v1033 = vpop.f32.mrf.mxu0
    %v1034 = vadd.f32 %v1008, %v1033
    %1035 = vmatmul.f32.gmra.mxu0 %v1014
    %v1036 = vpop.f32.mrf.mxu0
    %v1037 = vadd.f32 %v1008, %v1036
    %1038 = vdwg.mxu0
    %v1039 = vsel %vm341, %v1034, -1e+30
    %v1040 = vsel %vm342, %v1034, -1e+30
    %v1041 = vsel %vm343, %v1034, -1e+30
    %v1042 = vsel %vm344, %v1034, -1e+30
    %v1043 = vsel %vm345, %v1034, -1e+30
    %v1044 = vsel %vm346, %v1034, -1e+30
    %v1045 = vsel %vm347, %v1034, -1e+30
    %v1046 = vsel %vm348, %v1034, -1e+30
    %v1047 = vsel %vm349, %v1034, -1e+30
    %v1048 = vsel %vm350, %v1034, -1e+30
    %v1049 = vsel %vm351, %v1034, -1e+30
    %v1050 = vsel %vm352, %v1034, -1e+30
    %v1051 = vsel %vm353, %v1034, -1e+30
    %v1052 = vsel %vm354, %v1034, -1e+30
    %v1053 = vsel %vm355, %v1034, -1e+30
    %v1054 = vsel %vm356, %v1034, -1e+30
    %v1055 = vsel %vm167, %v1039, -inf
    %v1056 = vrot.slane %v1055, 4
    %v1057 = vmax.f32 %v1055, %v1056
    %v1058 = vrot.slane %v1057, 2
    %v1059 = vmax.f32 %v1057, %v1058
    %v1060 = vrot.slane %v1059, 1
    %v1061 = vmax.f32 %v1059, %v1060
    %v1062 = vsel %vm167, %v1040, -inf
    %v1063 = vrot.slane %v1062, 4
    %v1064 = vmax.f32 %v1062, %v1063
    %v1065 = vrot.slane %v1064, 2
    %v1066 = vmax.f32 %v1064, %v1065
    %v1067 = vrot.slane %v1066, 1
    %v1068 = vmax.f32 %v1066, %v1067
    %v1069 = vsel %vm167, %v1041, -inf
    %v1070 = vrot.slane %v1069, 4
    %v1071 = vmax.f32 %v1069, %v1070
    %v1072 = vrot.slane %v1071, 2
    %v1073 = vmax.f32 %v1071, %v1072
    %v1074 = vrot.slane %v1073, 1
    %v1075 = vmax.f32 %v1073, %v1074
    %v1076 = vsel %vm167, %v1042, -inf
    %v1077 = vrot.slane %v1076, 4
    %v1078 = vmax.f32 %v1076, %v1077
    %v1079 = vrot.slane %v1078, 2
    %v1080 = vmax.f32 %v1078, %v1079
    %v1081 = vrot.slane %v1080, 1
    %v1082 = vmax.f32 %v1080, %v1081
    %v1083 = vsel %vm167, %v1043, -inf
    %v1084 = vrot.slane %v1083, 4
    %v1085 = vmax.f32 %v1083, %v1084
    %v1086 = vrot.slane %v1085, 2
    %v1087 = vmax.f32 %v1085, %v1086
    %v1088 = vrot.slane %v1087, 1
    %v1089 = vmax.f32 %v1087, %v1088
    %v1090 = vsel %vm167, %v1044, -inf
    %v1091 = vrot.slane %v1090, 4
    %v1092 = vmax.f32 %v1090, %v1091
    %v1093 = vrot.slane %v1092, 2
    %v1094 = vmax.f32 %v1092, %v1093
    %v1095 = vrot.slane %v1094, 1
    %v1096 = vmax.f32 %v1094, %v1095
    %v1097 = vsel %vm167, %v1045, -inf
    %v1098 = vrot.slane %v1097, 4
    %v1099 = vmax.f32 %v1097, %v1098
    %v1100 = vrot.slane %v1099, 2
    %v1101 = vmax.f32 %v1099, %v1100
    %v1102 = vrot.slane %v1101, 1
    %v1103 = vmax.f32 %v1101, %v1102
    %v1104 = vsel %vm167, %v1046, -inf
    %v1105 = vrot.slane %v1104, 4
    %v1106 = vmax.f32 %v1104, %v1105
    %v1107 = vrot.slane %v1106, 2
    %v1108 = vmax.f32 %v1106, %v1107
    %v1109 = vrot.slane %v1108, 1
    %v1110 = vmax.f32 %v1108, %v1109
    %v1111 = vsel %vm167, %v1047, -inf
    %v1112 = vrot.slane %v1111, 4
    %v1113 = vmax.f32 %v1111, %v1112
    %v1114 = vrot.slane %v1113, 2
    %v1115 = vmax.f32 %v1113, %v1114
    %v1116 = vrot.slane %v1115, 1
    %v1117 = vmax.f32 %v1115, %v1116
    %v1118 = vsel %vm167, %v1048, -inf
    %v1119 = vrot.slane %v1118, 4
    %v1120 = vmax.f32 %v1118, %v1119
    %v1121 = vrot.slane %v1120, 2
    %v1122 = vmax.f32 %v1120, %v1121
    %v1123 = vrot.slane %v1122, 1
    %v1124 = vmax.f32 %v1122, %v1123
    %v1125 = vsel %vm167, %v1049, -inf
    %v1126 = vrot.slane %v1125, 4
    %v1127 = vmax.f32 %v1125, %v1126
    %v1128 = vrot.slane %v1127, 2
    %v1129 = vmax.f32 %v1127, %v1128
    %v1130 = vrot.slane %v1129, 1
    %v1131 = vmax.f32 %v1129, %v1130
    %v1132 = vsel %vm167, %v1050, -inf
    %v1133 = vrot.slane %v1132, 4
    %v1134 = vmax.f32 %v1132, %v1133
    %v1135 = vrot.slane %v1134, 2
    %v1136 = vmax.f32 %v1134, %v1135
    %v1137 = vrot.slane %v1136, 1
    %v1138 = vmax.f32 %v1136, %v1137
    %v1139 = vsel %vm167, %v1051, -inf
    %v1140 = vrot.slane %v1139, 4
    %v1141 = vmax.f32 %v1139, %v1140
    %v1142 = vrot.slane %v1141, 2
    %v1143 = vmax.f32 %v1141, %v1142
    %v1144 = vrot.slane %v1143, 1
    %v1145 = vmax.f32 %v1143, %v1144
    %v1146 = vsel %vm167, %v1052, -inf
    %v1147 = vrot.slane %v1146, 4
    %v1148 = vmax.f32 %v1146, %v1147
    %v1149 = vrot.slane %v1148, 2
    %v1150 = vmax.f32 %v1148, %v1149
    %v1151 = vrot.slane %v1150, 1
    %v1152 = vmax.f32 %v1150, %v1151
    %v1153 = vsel %vm167, %v1053, -inf
    %v1154 = vrot.slane %v1153, 4
    %v1155 = vmax.f32 %v1153, %v1154
    %v1156 = vrot.slane %v1155, 2
    %v1157 = vmax.f32 %v1155, %v1156
    %v1158 = vrot.slane %v1157, 1
    %v1159 = vmax.f32 %v1157, %v1158
    %v1160 = vsel %vm167, %v1054, -inf
    %v1161 = vrot.slane %v1160, 4
    %v1162 = vmax.f32 %v1160, %v1161
    %v1163 = vrot.slane %v1162, 2
    %v1164 = vmax.f32 %v1162, %v1163
    %v1165 = vrot.slane %v1164, 1
    %v1166 = vmax.f32 %v1164, %v1165
    %v1167 = vmax.f32 %v1061, -1e+30
    %v1168 = vmax.f32 %v1068, -1e+30
    %v1169 = vmax.f32 %v1075, -1e+30
    %v1170 = vmax.f32 %v1082, -1e+30
    %v1171 = vmax.f32 %v1089, -1e+30
    %v1172 = vmax.f32 %v1096, -1e+30
    %v1173 = vmax.f32 %v1103, -1e+30
    %v1174 = vmax.f32 %v1110, -1e+30
    %v1175 = vmax.f32 %v1117, -1e+30
    %v1176 = vmax.f32 %v1124, -1e+30
    %v1177 = vmax.f32 %v1131, -1e+30
    %v1178 = vmax.f32 %v1138, -1e+30
    %v1179 = vmax.f32 %v1145, -1e+30
    %v1180 = vmax.f32 %v1152, -1e+30
    %v1181 = vmax.f32 %v1159, -1e+30
    %v1182 = vmax.f32 %v1166, -1e+30
    %v1183 = vsel %vm629, %v1037, -1e+30
    %v1184 = vsel %vm630, %v1037, -1e+30
    %v1185 = vsel %vm631, %v1037, -1e+30
    %v1186 = vsel %vm632, %v1037, -1e+30
    %v1187 = vsel %vm633, %v1037, -1e+30
    %v1188 = vsel %vm634, %v1037, -1e+30
    %v1189 = vsel %vm635, %v1037, -1e+30
    %v1190 = vsel %vm636, %v1037, -1e+30
    %v1191 = vsel %vm637, %v1037, -1e+30
    %v1192 = vsel %vm638, %v1037, -1e+30
    %v1193 = vsel %vm639, %v1037, -1e+30
    %v1194 = vsel %vm640, %v1037, -1e+30
    %v1195 = vsel %vm641, %v1037, -1e+30
    %v1196 = vsel %vm642, %v1037, -1e+30
    %v1197 = vsel %vm643, %v1037, -1e+30
    %v1198 = vsel %vm644, %v1037, -1e+30
    %v1199 = vsel %vm167, %v1183, -inf
    %v1200 = vrot.slane %v1199, 4
    %v1201 = vmax.f32 %v1199, %v1200
    %v1202 = vrot.slane %v1201, 2
    %v1203 = vmax.f32 %v1201, %v1202
    %v1204 = vrot.slane %v1203, 1
    %v1205 = vmax.f32 %v1203, %v1204
    %v1206 = vsel %vm167, %v1184, -inf
    %v1207 = vrot.slane %v1206, 4
    %v1208 = vmax.f32 %v1206, %v1207
    %v1209 = vrot.slane %v1208, 2
    %v1210 = vmax.f32 %v1208, %v1209
    %v1211 = vrot.slane %v1210, 1
    %v1212 = vmax.f32 %v1210, %v1211
    %v1213 = vsel %vm167, %v1185, -inf
    %v1214 = vrot.slane %v1213, 4
    %v1215 = vmax.f32 %v1213, %v1214
    %v1216 = vrot.slane %v1215, 2
    %v1217 = vmax.f32 %v1215, %v1216
    %v1218 = vrot.slane %v1217, 1
    %v1219 = vmax.f32 %v1217, %v1218
    %v1220 = vsel %vm167, %v1186, -inf
    %v1221 = vrot.slane %v1220, 4
    %v1222 = vmax.f32 %v1220, %v1221
    %v1223 = vrot.slane %v1222, 2
    %v1224 = vmax.f32 %v1222, %v1223
    %v1225 = vrot.slane %v1224, 1
    %v1226 = vmax.f32 %v1224, %v1225
    %v1227 = vsel %vm167, %v1187, -inf
    %v1228 = vrot.slane %v1227, 4
    %v1229 = vmax.f32 %v1227, %v1228
    %v1230 = vrot.slane %v1229, 2
    %v1231 = vmax.f32 %v1229, %v1230
    %v1232 = vrot.slane %v1231, 1
    %v1233 = vmax.f32 %v1231, %v1232
    %v1234 = vsel %vm167, %v1188, -inf
    %v1235 = vrot.slane %v1234, 4
    %v1236 = vmax.f32 %v1234, %v1235
    %v1237 = vrot.slane %v1236, 2
    %v1238 = vmax.f32 %v1236, %v1237
    %v1239 = vrot.slane %v1238, 1
    %v1240 = vmax.f32 %v1238, %v1239
    %v1241 = vsel %vm167, %v1189, -inf
    %v1242 = vrot.slane %v1241, 4
    %v1243 = vmax.f32 %v1241, %v1242
    %v1244 = vrot.slane %v1243, 2
    %v1245 = vmax.f32 %v1243, %v1244
    %v1246 = vrot.slane %v1245, 1
    %v1247 = vmax.f32 %v1245, %v1246
    %v1248 = vsel %vm167, %v1190, -inf
    %v1249 = vrot.slane %v1248, 4
    %v1250 = vmax.f32 %v1248, %v1249
    %v1251 = vrot.slane %v1250, 2
    %v1252 = vmax.f32 %v1250, %v1251
    %v1253 = vrot.slane %v1252, 1
    %v1254 = vmax.f32 %v1252, %v1253
    %v1255 = vsel %vm167, %v1191, -inf
    %v1256 = vrot.slane %v1255, 4
    %v1257 = vmax.f32 %v1255, %v1256
    %v1258 = vrot.slane %v1257, 2
    %v1259 = vmax.f32 %v1257, %v1258
    %v1260 = vrot.slane %v1259, 1
    %v1261 = vmax.f32 %v1259, %v1260
    %v1262 = vsel %vm167, %v1192, -inf
    %v1263 = vrot.slane %v1262, 4
    %v1264 = vmax.f32 %v1262, %v1263
    %v1265 = vrot.slane %v1264, 2
    %v1266 = vmax.f32 %v1264, %v1265
    %v1267 = vrot.slane %v1266, 1
    %v1268 = vmax.f32 %v1266, %v1267
    %v1269 = vsel %vm167, %v1193, -inf
    %v1270 = vrot.slane %v1269, 4
    %v1271 = vmax.f32 %v1269, %v1270
    %v1272 = vrot.slane %v1271, 2
    %v1273 = vmax.f32 %v1271, %v1272
    %v1274 = vrot.slane %v1273, 1
    %v1275 = vmax.f32 %v1273, %v1274
    %v1276 = vsel %vm167, %v1194, -inf
    %v1277 = vrot.slane %v1276, 4
    %v1278 = vmax.f32 %v1276, %v1277
    %v1279 = vrot.slane %v1278, 2
    %v1280 = vmax.f32 %v1278, %v1279
    %v1281 = vrot.slane %v1280, 1
    %v1282 = vmax.f32 %v1280, %v1281
    %v1283 = vsel %vm167, %v1195, -inf
    %v1284 = vrot.slane %v1283, 4
    %v1285 = vmax.f32 %v1283, %v1284
    %v1286 = vrot.slane %v1285, 2
    %v1287 = vmax.f32 %v1285, %v1286
    %v1288 = vrot.slane %v1287, 1
    %v1289 = vmax.f32 %v1287, %v1288
    %v1290 = vsel %vm167, %v1196, -inf
    %v1291 = vrot.slane %v1290, 4
    %v1292 = vmax.f32 %v1290, %v1291
    %v1293 = vrot.slane %v1292, 2
    %v1294 = vmax.f32 %v1292, %v1293
    %v1295 = vrot.slane %v1294, 1
    %v1296 = vmax.f32 %v1294, %v1295
    %v1297 = vsel %vm167, %v1197, -inf
    %v1298 = vrot.slane %v1297, 4
    %v1299 = vmax.f32 %v1297, %v1298
    %v1300 = vrot.slane %v1299, 2
    %v1301 = vmax.f32 %v1299, %v1300
    %v1302 = vrot.slane %v1301, 1
    %v1303 = vmax.f32 %v1301, %v1302
    %v1304 = vsel %vm167, %v1198, -inf
    %v1305 = vrot.slane %v1304, 4
    %v1306 = vmax.f32 %v1304, %v1305
    %v1307 = vrot.slane %v1306, 2
    %v1308 = vmax.f32 %v1306, %v1307
    %v1309 = vrot.slane %v1308, 1
    %v1310 = vmax.f32 %v1308, %v1309
    %v1311 = vmax.f32 %v1167, %v1205
    %v1312 = vmax.f32 %v1168, %v1212
    %v1313 = vmax.f32 %v1169, %v1219
    %v1314 = vmax.f32 %v1170, %v1226
    %v1315 = vmax.f32 %v1171, %v1233
    %v1316 = vmax.f32 %v1172, %v1240
    %v1317 = vmax.f32 %v1173, %v1247
    %v1318 = vmax.f32 %v1174, %v1254
    %v1319 = vmax.f32 %v1175, %v1261
    %v1320 = vmax.f32 %v1176, %v1268
    %v1321 = vmax.f32 %v1177, %v1275
    %v1322 = vmax.f32 %v1178, %v1282
    %v1323 = vmax.f32 %v1179, %v1289
    %v1324 = vmax.f32 %v1180, %v1296
    %v1325 = vmax.f32 %v1181, %v1303
    %v1326 = vmax.f32 %v1182, %v1310
    %v1343 = vsel %vm809, %v1312, %v1311
    %v1344 = vsel %vm811, %v1313, %v1343
    %v1345 = vsel %vm813, %v1314, %v1344
    %v1346 = vsel %vm815, %v1315, %v1345
    %v1347 = vsel %vm817, %v1316, %v1346
    %v1348 = vsel %vm819, %v1317, %v1347
    %v1349 = vsel %vm821, %v1318, %v1348
    %v1350 = vsel %vm809, %v1320, %v1319
    %v1351 = vsel %vm811, %v1321, %v1350
    %v1352 = vsel %vm813, %v1322, %v1351
    %v1353 = vsel %vm815, %v1323, %v1352
    %v1354 = vsel %vm817, %v1324, %v1353
    %v1355 = vsel %vm819, %v1325, %v1354
    %v1356 = vsel %vm821, %v1326, %v1355
    %v1359 = vsel %vm791, %v1349, 0.0
    %v1360 = vsel %vm792, %v1356, 0.0
    %1361 = vmatpush.msra.mxu0 0.0
    %1362 = vmatpush.msra.mxu0 0.0
    %1363 = vmatpush.msra.mxu0 0.0
    %1364 = vmatpush.msra.mxu0 0.0
    %1365 = vmatpush.msra.mxu0 0.0
    %1366 = vmatpush.msra.mxu0 0.0
    %1367 = vmatpush.msra.mxu0 0.0
    %1368 = vmatpush.msra.mxu0 0.0
    %1369 = vmatpush.msra.mxu0 0.0
    %1370 = vmatpush.msra.mxu0 0.0
    %1371 = vmatpush.msra.mxu0 0.0
    %1372 = vmatpush.msra.mxu0 0.0
    %1373 = vmatpush.msra.mxu0 0.0
    %1374 = vmatpush.msra.mxu0 0.0
    %1375 = vmatpush.msra.mxu0 %v1037
    %1376 = vmatpush.msra.mxu0 %v1034
    %1377 = vmatmul.f32.gmra.mxu0 %v835
    %v1378 = vpop.f32.mrf.mxu0
    %v1379 = vadd.f32 %v1359, %v1378
    %1380 = vmatmul.f32.gmra.mxu0 %v838
    %v1381 = vpop.f32.mrf.mxu0
    %v1382 = vadd.f32 %v1360, %v1381
    %1383 = vdwg.mxu0
    %s1384 = scalar_lea.vmem [#allocation8], 32
    %v1385 = vld [vmem:[%s1384] sm:$0xff]
    %v1386 = vld [vmem:[%s1384 + $0x8] sm:$0xff]
    %v1387 = vld [vmem:[%s1384 + $0x10] sm:$0xff]
    %v1388 = vld [vmem:[%s1384 + $0x18] sm:$0xff]
    %s1389 = scalar_lea.vmem [#allocation10], 1
    %v1390 = vld [vmem:[%s1389] sm:$0x1]
    %v1392 = vperm.slane %v1390, 0
    %v1395 = vsel %vm167, %v1379, 0
    %v1398 = vsel %vm167, %v1382, 0
    %1400 = vmatpush.msra.mxu0 0.0
    %1401 = vmatpush.msra.mxu0 0.0
    %1402 = vmatpush.msra.mxu0 0.0
    %1403 = vmatpush.msra.mxu0 0.0
    %1404 = vmatpush.msra.mxu0 0.0
    %1405 = vmatpush.msra.mxu0 0.0
    %1406 = vmatpush.msra.mxu0 0.0
    %1407 = vmatpush.msra.mxu0 0.0
    %1408 = vmatpush.msra.mxu0 0.0
    %1409 = vmatpush.msra.mxu0 0.0
    %1410 = vmatpush.msra.mxu0 0.0
    %1411 = vmatpush.msra.mxu0 0.0
    %1412 = vmatpush.msra.mxu0 %v1388
    %1413 = vmatpush.msra.mxu0 %v1387
    %1414 = vmatpush.msra.mxu0 %v1386
    %1415 = vmatpush.msra.mxu0 %v1385
    %1416 = vmatmul.f32.gmra.mxu0 %v1395
    %v1417 = vpop.f32.mrf.mxu0
    %v1418 = vadd.f32 %v1392, %v1417
    %1419 = vmatmul.f32.gmra.mxu0 %v1398
    %v1420 = vpop.f32.mrf.mxu0
    %v1421 = vadd.f32 %v1392, %v1420
    %1422 = vdwg.mxu0
    %1425 = vrot.lane.b32.xlu0 %v1034, 96
    %v1426 = vpop.permute.xlu0 %1425
    %1427 = vrot.lane.b32.xlu0 %v1037, 96
    %v1428 = vpop.permute.xlu0 %1427
    %v1431 = vadd.f32 %v1418, %v1426
    %v1432 = vadd.f32 %v1421, %v1428
    %v1433 = vxor.u32 %v1431, 2147483648
    %v1434 = vxor.u32 %v1432, 2147483648
    %v1435 = vmul.f32 %v1433, 1.442695
    %v1436 = vpow.pop %v1435
    %v1437 = vmul.f32 %v1434, 1.442695
    %v1438 = vpow.pop %v1437
    %v1439 = vadd.f32 %v1436, 1.0
    %v1440 = vadd.f32 %v1438, 1.0
    %v1441 = vrcp.pop %v1439
    %v1442 = vmul.f32 %v1439, %v1441
    %v1443 = vsub.f32 1.0, %v1442
    %v1444 = vmul.f32 %v1441, %v1443
    %v1445 = vadd.f32 %v1441, %v1444
    %vm1446 = vweird.f32 %v1439
    %vm1447 = vweird.f32 %v1441
    %vm1448 = vmor %vm1446, %vm1447
    %v1449 = vsel %vm1448, %v1441, %v1445
    %v1450 = vand.u32 2147483647, %v1439
    %vm1451 = vcmp.eq.f32.partialorder %v1450, 8.507059e+37
    %v1452 = vand.u32 %v1439, 2147483648
    %v1453 = vor.u32 1.1754944e-38, %v1452
    %v1454 = vsel %vm1451, %v1453, %v1449
    %v1455 = vmul.f32 1.0, %v1454
    %v1456 = vrcp.pop %v1440
    %v1457 = vmul.f32 %v1440, %v1456
    %v1458 = vsub.f32 1.0, %v1457
    %v1459 = vmul.f32 %v1456, %v1458
    %v1460 = vadd.f32 %v1456, %v1459
    %vm1461 = vweird.f32 %v1440
    %vm1462 = vweird.f32 %v1456
    %vm1463 = vmor %vm1461, %vm1462
    %v1464 = vsel %vm1463, %v1456, %v1460
    %v1465 = vand.u32 2147483647, %v1440
    %vm1466 = vcmp.eq.f32.partialorder %v1465, 8.507059e+37
    %v1467 = vand.u32 %v1440, 2147483648
    %v1468 = vor.u32 1.1754944e-38, %v1467
    %v1469 = vsel %vm1466, %v1468, %v1464
    %v1470 = vmul.f32 1.0, %v1469
    %1471 = vrot.lane.b32.xlu0 %v1034, 32
    %v1472 = vpop.permute.xlu0 %1471
    %1473 = vrot.lane.b32.xlu0 %v1037, 32
    %v1474 = vpop.permute.xlu0 %1473
    %v1477 = vmul.f32 %v1455, %v1472
    %v1478 = vmul.f32 %v1470, %v1474
    %1481 = vrot.lane.b32.xlu0 %v1477, 64
    %v1482 = vpop.permute.xlu0 %1481
    %1483 = vrot.lane.b32.xlu0 %v1478, 64
    %v1484 = vpop.permute.xlu0 %1483
    %v1487 = vadd.f32 %v1418, %v1482
    %v1488 = vadd.f32 %v1421, %v1484
    %v1489 = vtanh.pop %v1487
    %v1490 = vtanh.pop %v1488
    %v1491 = vsub.f32 1.0, %v1455
    %v1492 = vsub.f32 1.0, %v1470
    %1495 = vrot.lane.b32.xlu0 %v1489, 96
    %v1496 = vpop.permute.xlu0 %1495
    %1497 = vrot.lane.b32.xlu0 %v1490, 96
    %v1498 = vpop.permute.xlu0 %1497
    %v1501 = vmul.f32 %v1491, %v1496
    %v1502 = vmul.f32 %v1492, %v1498
    %1503 = vrot.lane.b32.xlu0 %v998, 32
    %v1504 = vpop.permute.xlu0 %1503
    %1505 = vrot.lane.b32.xlu0 %v999, 32
    %v1506 = vpop.permute.xlu0 %1505
    %v1509 = vmul.f32 %v1455, %v1504
    %v1510 = vmul.f32 %v1470, %v1506
    %v1511 = vadd.f32 %v1501, %v1509
    %v1512 = vadd.f32 %v1502, %v1510
    %1515 = vrot.lane.b32.xlu0 %v1511, 96
    %v1516 = vpop.permute.xlu0 %1515
    %1517 = vrot.lane.b32.xlu0 %v1512, 96
    %v1518 = vpop.permute.xlu0 %1517
    %v1521 = vadd.f32 %v998, %v1516
    %v1522 = vadd.f32 %v999, %v1518
    %s1523 = scalar_lea.vmem %s3, 64
    %v1524 = vld [vmem:[%s1523] sm:$0xff]
    %v1525 = vld [vmem:[%s1523 + $0x8] sm:$0xff]
    %v1526 = vld [vmem:[%s1523 + $0x10] sm:$0xff]
    %v1527 = vld [vmem:[%s1523 + $0x18] sm:$0xff]
    %s1528 = scalar_lea.vmem [#allocation7], 2
    %v1529 = vld [vmem:[%s1528] sm:$0x1]
    %v1531 = vperm.slane %v1529, 0
    %v1534 = vsel %vm167, %v1521, 0
    %v1537 = vsel %vm167, %v1522, 0
    %1539 = vmatpush.msra.mxu0 0.0
    %1540 = vmatpush.msra.mxu0 0.0
    %1541 = vmatpush.msra.mxu0 0.0
    %1542 = vmatpush.msra.mxu0 0.0
    %1543 = vmatpush.msra.mxu0 0.0
    %1544 = vmatpush.msra.mxu0 0.0
    %1545 = vmatpush.msra.mxu0 0.0
    %1546 = vmatpush.msra.mxu0 0.0
    %1547 = vmatpush.msra.mxu0 0.0
    %1548 = vmatpush.msra.mxu0 0.0
    %1549 = vmatpush.msra.mxu0 0.0
    %1550 = vmatpush.msra.mxu0 0.0
    %1551 = vmatpush.msra.mxu0 %v1527
    %1552 = vmatpush.msra.mxu0 %v1526
    %1553 = vmatpush.msra.mxu0 %v1525
    %1554 = vmatpush.msra.mxu0 %v1524
    %1555 = vmatmul.f32.gmra.mxu0 %v1534
    %v1556 = vpop.f32.mrf.mxu0
    %v1557 = vadd.f32 %v1531, %v1556
    %1558 = vmatmul.f32.gmra.mxu0 %v1537
    %v1559 = vpop.f32.mrf.mxu0
    %v1560 = vadd.f32 %v1531, %v1559
    %1561 = vdwg.mxu0
    %v1562 = vsel %vm341, %v1557, -1e+30
    %v1563 = vsel %vm342, %v1557, -1e+30
    %v1564 = vsel %vm343, %v1557, -1e+30
    %v1565 = vsel %vm344, %v1557, -1e+30
    %v1566 = vsel %vm345, %v1557, -1e+30
    %v1567 = vsel %vm346, %v1557, -1e+30
    %v1568 = vsel %vm347, %v1557, -1e+30
    %v1569 = vsel %vm348, %v1557, -1e+30
    %v1570 = vsel %vm349, %v1557, -1e+30
    %v1571 = vsel %vm350, %v1557, -1e+30
    %v1572 = vsel %vm351, %v1557, -1e+30
    %v1573 = vsel %vm352, %v1557, -1e+30
    %v1574 = vsel %vm353, %v1557, -1e+30
    %v1575 = vsel %vm354, %v1557, -1e+30
    %v1576 = vsel %vm355, %v1557, -1e+30
    %v1577 = vsel %vm356, %v1557, -1e+30
    %v1578 = vsel %vm167, %v1562, -inf
    %v1579 = vrot.slane %v1578, 4
    %v1580 = vmax.f32 %v1578, %v1579
    %v1581 = vrot.slane %v1580, 2
    %v1582 = vmax.f32 %v1580, %v1581
    %v1583 = vrot.slane %v1582, 1
    %v1584 = vmax.f32 %v1582, %v1583
    %v1585 = vsel %vm167, %v1563, -inf
    %v1586 = vrot.slane %v1585, 4
    %v1587 = vmax.f32 %v1585, %v1586
    %v1588 = vrot.slane %v1587, 2
    %v1589 = vmax.f32 %v1587, %v1588
    %v1590 = vrot.slane %v1589, 1
    %v1591 = vmax.f32 %v1589, %v1590
    %v1592 = vsel %vm167, %v1564, -inf
    %v1593 = vrot.slane %v1592, 4
    %v1594 = vmax.f32 %v1592, %v1593
    %v1595 = vrot.slane %v1594, 2
    %v1596 = vmax.f32 %v1594, %v1595
    %v1597 = vrot.slane %v1596, 1
    %v1598 = vmax.f32 %v1596, %v1597
    %v1599 = vsel %vm167, %v1565, -inf
    %v1600 = vrot.slane %v1599, 4
    %v1601 = vmax.f32 %v1599, %v1600
    %v1602 = vrot.slane %v1601, 2
    %v1603 = vmax.f32 %v1601, %v1602
    %v1604 = vrot.slane %v1603, 1
    %v1605 = vmax.f32 %v1603, %v1604
    %v1606 = vsel %vm167, %v1566, -inf
    %v1607 = vrot.slane %v1606, 4
    %v1608 = vmax.f32 %v1606, %v1607
    %v1609 = vrot.slane %v1608, 2
    %v1610 = vmax.f32 %v1608, %v1609
    %v1611 = vrot.slane %v1610, 1
    %v1612 = vmax.f32 %v1610, %v1611
    %v1613 = vsel %vm167, %v1567, -inf
    %v1614 = vrot.slane %v1613, 4
    %v1615 = vmax.f32 %v1613, %v1614
    %v1616 = vrot.slane %v1615, 2
    %v1617 = vmax.f32 %v1615, %v1616
    %v1618 = vrot.slane %v1617, 1
    %v1619 = vmax.f32 %v1617, %v1618
    %v1620 = vsel %vm167, %v1568, -inf
    %v1621 = vrot.slane %v1620, 4
    %v1622 = vmax.f32 %v1620, %v1621
    %v1623 = vrot.slane %v1622, 2
    %v1624 = vmax.f32 %v1622, %v1623
    %v1625 = vrot.slane %v1624, 1
    %v1626 = vmax.f32 %v1624, %v1625
    %v1627 = vsel %vm167, %v1569, -inf
    %v1628 = vrot.slane %v1627, 4
    %v1629 = vmax.f32 %v1627, %v1628
    %v1630 = vrot.slane %v1629, 2
    %v1631 = vmax.f32 %v1629, %v1630
    %v1632 = vrot.slane %v1631, 1
    %v1633 = vmax.f32 %v1631, %v1632
    %v1634 = vsel %vm167, %v1570, -inf
    %v1635 = vrot.slane %v1634, 4
    %v1636 = vmax.f32 %v1634, %v1635
    %v1637 = vrot.slane %v1636, 2
    %v1638 = vmax.f32 %v1636, %v1637
    %v1639 = vrot.slane %v1638, 1
    %v1640 = vmax.f32 %v1638, %v1639
    %v1641 = vsel %vm167, %v1571, -inf
    %v1642 = vrot.slane %v1641, 4
    %v1643 = vmax.f32 %v1641, %v1642
    %v1644 = vrot.slane %v1643, 2
    %v1645 = vmax.f32 %v1643, %v1644
    %v1646 = vrot.slane %v1645, 1
    %v1647 = vmax.f32 %v1645, %v1646
    %v1648 = vsel %vm167, %v1572, -inf
    %v1649 = vrot.slane %v1648, 4
    %v1650 = vmax.f32 %v1648, %v1649
    %v1651 = vrot.slane %v1650, 2
    %v1652 = vmax.f32 %v1650, %v1651
    %v1653 = vrot.slane %v1652, 1
    %v1654 = vmax.f32 %v1652, %v1653
    %v1655 = vsel %vm167, %v1573, -inf
    %v1656 = vrot.slane %v1655, 4
    %v1657 = vmax.f32 %v1655, %v1656
    %v1658 = vrot.slane %v1657, 2
    %v1659 = vmax.f32 %v1657, %v1658
    %v1660 = vrot.slane %v1659, 1
    %v1661 = vmax.f32 %v1659, %v1660
    %v1662 = vsel %vm167, %v1574, -inf
    %v1663 = vrot.slane %v1662, 4
    %v1664 = vmax.f32 %v1662, %v1663
    %v1665 = vrot.slane %v1664, 2
    %v1666 = vmax.f32 %v1664, %v1665
    %v1667 = vrot.slane %v1666, 1
    %v1668 = vmax.f32 %v1666, %v1667
    %v1669 = vsel %vm167, %v1575, -inf
    %v1670 = vrot.slane %v1669, 4
    %v1671 = vmax.f32 %v1669, %v1670
    %v1672 = vrot.slane %v1671, 2
    %v1673 = vmax.f32 %v1671, %v1672
    %v1674 = vrot.slane %v1673, 1
    %v1675 = vmax.f32 %v1673, %v1674
    %v1676 = vsel %vm167, %v1576, -inf
    %v1677 = vrot.slane %v1676, 4
    %v1678 = vmax.f32 %v1676, %v1677
    %v1679 = vrot.slane %v1678, 2
    %v1680 = vmax.f32 %v1678, %v1679
    %v1681 = vrot.slane %v1680, 1
    %v1682 = vmax.f32 %v1680, %v1681
    %v1683 = vsel %vm167, %v1577, -inf
    %v1684 = vrot.slane %v1683, 4
    %v1685 = vmax.f32 %v1683, %v1684
    %v1686 = vrot.slane %v1685, 2
    %v1687 = vmax.f32 %v1685, %v1686
    %v1688 = vrot.slane %v1687, 1
    %v1689 = vmax.f32 %v1687, %v1688
    %v1690 = vmax.f32 %v1584, -1e+30
    %v1691 = vmax.f32 %v1591, -1e+30
    %v1692 = vmax.f32 %v1598, -1e+30
    %v1693 = vmax.f32 %v1605, -1e+30
    %v1694 = vmax.f32 %v1612, -1e+30
    %v1695 = vmax.f32 %v1619, -1e+30
    %v1696 = vmax.f32 %v1626, -1e+30
    %v1697 = vmax.f32 %v1633, -1e+30
    %v1698 = vmax.f32 %v1640, -1e+30
    %v1699 = vmax.f32 %v1647, -1e+30
    %v1700 = vmax.f32 %v1654, -1e+30
    %v1701 = vmax.f32 %v1661, -1e+30
    %v1702 = vmax.f32 %v1668, -1e+30
    %v1703 = vmax.f32 %v1675, -1e+30
    %v1704 = vmax.f32 %v1682, -1e+30
    %v1705 = vmax.f32 %v1689, -1e+30
    %v1706 = vsel %vm629, %v1560, -1e+30
    %v1707 = vsel %vm630, %v1560, -1e+30
    %v1708 = vsel %vm631, %v1560, -1e+30
    %v1709 = vsel %vm632, %v1560, -1e+30
    %v1710 = vsel %vm633, %v1560, -1e+30
    %v1711 = vsel %vm634, %v1560, -1e+30
    %v1712 = vsel %vm635, %v1560, -1e+30
    %v1713 = vsel %vm636, %v1560, -1e+30
    %v1714 = vsel %vm637, %v1560, -1e+30
    %v1715 = vsel %vm638, %v1560, -1e+30
    %v1716 = vsel %vm639, %v1560, -1e+30
    %v1717 = vsel %vm640, %v1560, -1e+30
    %v1718 = vsel %vm641, %v1560, -1e+30
    %v1719 = vsel %vm642, %v1560, -1e+30
    %v1720 = vsel %vm643, %v1560, -1e+30
    %v1721 = vsel %vm644, %v1560, -1e+30
    %v1722 = vsel %vm167, %v1706, -inf
    %v1723 = vrot.slane %v1722, 4
    %v1724 = vmax.f32 %v1722, %v1723
    %v1725 = vrot.slane %v1724, 2
    %v1726 = vmax.f32 %v1724, %v1725
    %v1727 = vrot.slane %v1726, 1
    %v1728 = vmax.f32 %v1726, %v1727
    %v1729 = vsel %vm167, %v1707, -inf
    %v1730 = vrot.slane %v1729, 4
    %v1731 = vmax.f32 %v1729, %v1730
    %v1732 = vrot.slane %v1731, 2
    %v1733 = vmax.f32 %v1731, %v1732
    %v1734 = vrot.slane %v1733, 1
    %v1735 = vmax.f32 %v1733, %v1734
    %v1736 = vsel %vm167, %v1708, -inf
    %v1737 = vrot.slane %v1736, 4
    %v1738 = vmax.f32 %v1736, %v1737
    %v1739 = vrot.slane %v1738, 2
    %v1740 = vmax.f32 %v1738, %v1739
    %v1741 = vrot.slane %v1740, 1
    %v1742 = vmax.f32 %v1740, %v1741
    %v1743 = vsel %vm167, %v1709, -inf
    %v1744 = vrot.slane %v1743, 4
    %v1745 = vmax.f32 %v1743, %v1744
    %v1746 = vrot.slane %v1745, 2
    %v1747 = vmax.f32 %v1745, %v1746
    %v1748 = vrot.slane %v1747, 1
    %v1749 = vmax.f32 %v1747, %v1748
    %v1750 = vsel %vm167, %v1710, -inf
    %v1751 = vrot.slane %v1750, 4
    %v1752 = vmax.f32 %v1750, %v1751
    %v1753 = vrot.slane %v1752, 2
    %v1754 = vmax.f32 %v1752, %v1753
    %v1755 = vrot.slane %v1754, 1
    %v1756 = vmax.f32 %v1754, %v1755
    %v1757 = vsel %vm167, %v1711, -inf
    %v1758 = vrot.slane %v1757, 4
    %v1759 = vmax.f32 %v1757, %v1758
    %v1760 = vrot.slane %v1759, 2
    %v1761 = vmax.f32 %v1759, %v1760
    %v1762 = vrot.slane %v1761, 1
    %v1763 = vmax.f32 %v1761, %v1762
    %v1764 = vsel %vm167, %v1712, -inf
    %v1765 = vrot.slane %v1764, 4
    %v1766 = vmax.f32 %v1764, %v1765
    %v1767 = vrot.slane %v1766, 2
    %v1768 = vmax.f32 %v1766, %v1767
    %v1769 = vrot.slane %v1768, 1
    %v1770 = vmax.f32 %v1768, %v1769
    %v1771 = vsel %vm167, %v1713, -inf
    %v1772 = vrot.slane %v1771, 4
    %v1773 = vmax.f32 %v1771, %v1772
    %v1774 = vrot.slane %v1773, 2
    %v1775 = vmax.f32 %v1773, %v1774
    %v1776 = vrot.slane %v1775, 1
    %v1777 = vmax.f32 %v1775, %v1776
    %v1778 = vsel %vm167, %v1714, -inf
    %v1779 = vrot.slane %v1778, 4
    %v1780 = vmax.f32 %v1778, %v1779
    %v1781 = vrot.slane %v1780, 2
    %v1782 = vmax.f32 %v1780, %v1781
    %v1783 = vrot.slane %v1782, 1
    %v1784 = vmax.f32 %v1782, %v1783
    %v1785 = vsel %vm167, %v1715, -inf
    %v1786 = vrot.slane %v1785, 4
    %v1787 = vmax.f32 %v1785, %v1786
    %v1788 = vrot.slane %v1787, 2
    %v1789 = vmax.f32 %v1787, %v1788
    %v1790 = vrot.slane %v1789, 1
    %v1791 = vmax.f32 %v1789, %v1790
    %v1792 = vsel %vm167, %v1716, -inf
    %v1793 = vrot.slane %v1792, 4
    %v1794 = vmax.f32 %v1792, %v1793
    %v1795 = vrot.slane %v1794, 2
    %v1796 = vmax.f32 %v1794, %v1795
    %v1797 = vrot.slane %v1796, 1
    %v1798 = vmax.f32 %v1796, %v1797
    %v1799 = vsel %vm167, %v1717, -inf
    %v1800 = vrot.slane %v1799, 4
    %v1801 = vmax.f32 %v1799, %v1800
    %v1802 = vrot.slane %v1801, 2
    %v1803 = vmax.f32 %v1801, %v1802
    %v1804 = vrot.slane %v1803, 1
    %v1805 = vmax.f32 %v1803, %v1804
    %v1806 = vsel %vm167, %v1718, -inf
    %v1807 = vrot.slane %v1806, 4
    %v1808 = vmax.f32 %v1806, %v1807
    %v1809 = vrot.slane %v1808, 2
    %v1810 = vmax.f32 %v1808, %v1809
    %v1811 = vrot.slane %v1810, 1
    %v1812 = vmax.f32 %v1810, %v1811
    %v1813 = vsel %vm167, %v1719, -inf
    %v1814 = vrot.slane %v1813, 4
    %v1815 = vmax.f32 %v1813, %v1814
    %v1816 = vrot.slane %v1815, 2
    %v1817 = vmax.f32 %v1815, %v1816
    %v1818 = vrot.slane %v1817, 1
    %v1819 = vmax.f32 %v1817, %v1818
    %v1820 = vsel %vm167, %v1720, -inf
    %v1821 = vrot.slane %v1820, 4
    %v1822 = vmax.f32 %v1820, %v1821
    %v1823 = vrot.slane %v1822, 2
    %v1824 = vmax.f32 %v1822, %v1823
    %v1825 = vrot.slane %v1824, 1
    %v1826 = vmax.f32 %v1824, %v1825
    %v1827 = vsel %vm167, %v1721, -inf
    %v1828 = vrot.slane %v1827, 4
    %v1829 = vmax.f32 %v1827, %v1828
    %v1830 = vrot.slane %v1829, 2
    %v1831 = vmax.f32 %v1829, %v1830
    %v1832 = vrot.slane %v1831, 1
    %v1833 = vmax.f32 %v1831, %v1832
    %v1834 = vmax.f32 %v1690, %v1728
    %v1835 = vmax.f32 %v1691, %v1735
    %v1836 = vmax.f32 %v1692, %v1742
    %v1837 = vmax.f32 %v1693, %v1749
    %v1838 = vmax.f32 %v1694, %v1756
    %v1839 = vmax.f32 %v1695, %v1763
    %v1840 = vmax.f32 %v1696, %v1770
    %v1841 = vmax.f32 %v1697, %v1777
    %v1842 = vmax.f32 %v1698, %v1784
    %v1843 = vmax.f32 %v1699, %v1791
    %v1844 = vmax.f32 %v1700, %v1798
    %v1845 = vmax.f32 %v1701, %v1805
    %v1846 = vmax.f32 %v1702, %v1812
    %v1847 = vmax.f32 %v1703, %v1819
    %v1848 = vmax.f32 %v1704, %v1826
    %v1849 = vmax.f32 %v1705, %v1833
    %v1866 = vsel %vm809, %v1835, %v1834
    %v1867 = vsel %vm811, %v1836, %v1866
    %v1868 = vsel %vm813, %v1837, %v1867
    %v1869 = vsel %vm815, %v1838, %v1868
    %v1870 = vsel %vm817, %v1839, %v1869
    %v1871 = vsel %vm819, %v1840, %v1870
    %v1872 = vsel %vm821, %v1841, %v1871
    %v1873 = vsel %vm809, %v1843, %v1842
    %v1874 = vsel %vm811, %v1844, %v1873
    %v1875 = vsel %vm813, %v1845, %v1874
    %v1876 = vsel %vm815, %v1846, %v1875
    %v1877 = vsel %vm817, %v1847, %v1876
    %v1878 = vsel %vm819, %v1848, %v1877
    %v1879 = vsel %vm821, %v1849, %v1878
    %v1882 = vsel %vm791, %v1872, 0.0
    %v1883 = vsel %vm792, %v1879, 0.0
    %1884 = vmatpush.msra.mxu0 0.0
    %1885 = vmatpush.msra.mxu0 0.0
    %1886 = vmatpush.msra.mxu0 0.0
    %1887 = vmatpush.msra.mxu0 0.0
    %1888 = vmatpush.msra.mxu0 0.0
    %1889 = vmatpush.msra.mxu0 0.0
    %1890 = vmatpush.msra.mxu0 0.0
    %1891 = vmatpush.msra.mxu0 0.0
    %1892 = vmatpush.msra.mxu0 0.0
    %1893 = vmatpush.msra.mxu0 0.0
    %1894 = vmatpush.msra.mxu0 0.0
    %1895 = vmatpush.msra.mxu0 0.0
    %1896 = vmatpush.msra.mxu0 0.0
    %1897 = vmatpush.msra.mxu0 0.0
    %1898 = vmatpush.msra.mxu0 %v1560
    %1899 = vmatpush.msra.mxu0 %v1557
    %1900 = vmatmul.f32.gmra.mxu0 %v835
    %v1901 = vpop.f32.mrf.mxu0
    %v1902 = vadd.f32 %v1882, %v1901
    %1903 = vmatmul.f32.gmra.mxu0 %v838
    %v1904 = vpop.f32.mrf.mxu0
    %v1905 = vadd.f32 %v1883, %v1904
    %1906 = vdwg.mxu0
    %s1907 = scalar_lea.vmem [#allocation8], 64
    %v1908 = vld [vmem:[%s1907] sm:$0xff]
    %v1909 = vld [vmem:[%s1907 + $0x8] sm:$0xff]
    %v1910 = vld [vmem:[%s1907 + $0x10] sm:$0xff]
    %v1911 = vld [vmem:[%s1907 + $0x18] sm:$0xff]
    %s1912 = scalar_lea.vmem [#allocation10], 2
    %v1913 = vld [vmem:[%s1912] sm:$0x1]
    %v1915 = vperm.slane %v1913, 0
    %v1918 = vsel %vm167, %v1902, 0
    %v1921 = vsel %vm167, %v1905, 0
    %1923 = vmatpush.msra.mxu0 0.0
    %1924 = vmatpush.msra.mxu0 0.0
    %1925 = vmatpush.msra.mxu0 0.0
    %1926 = vmatpush.msra.mxu0 0.0
    %1927 = vmatpush.msra.mxu0 0.0
    %1928 = vmatpush.msra.mxu0 0.0
    %1929 = vmatpush.msra.mxu0 0.0
    %1930 = vmatpush.msra.mxu0 0.0
    %1931 = vmatpush.msra.mxu0 0.0
    %1932 = vmatpush.msra.mxu0 0.0
    %1933 = vmatpush.msra.mxu0 0.0
    %1934 = vmatpush.msra.mxu0 0.0
    %1935 = vmatpush.msra.mxu0 %v1911
    %1936 = vmatpush.msra.mxu0 %v1910
    %1937 = vmatpush.msra.mxu0 %v1909
    %1938 = vmatpush.msra.mxu0 %v1908
    %1939 = vmatmul.f32.gmra.mxu0 %v1918
    %v1940 = vpop.f32.mrf.mxu0
    %v1941 = vadd.f32 %v1915, %v1940
    %1942 = vmatmul.f32.gmra.mxu0 %v1921
    %v1943 = vpop.f32.mrf.mxu0
    %v1944 = vadd.f32 %v1915, %v1943
    %1945 = vdwg.mxu0
    %1948 = vrot.lane.b32.xlu0 %v1557, 96
    %v1949 = vpop.permute.xlu0 %1948
    %1950 = vrot.lane.b32.xlu0 %v1560, 96
    %v1951 = vpop.permute.xlu0 %1950
    %v1954 = vadd.f32 %v1941, %v1949
    %v1955 = vadd.f32 %v1944, %v1951
    %v1956 = vxor.u32 %v1954, 2147483648
    %v1957 = vxor.u32 %v1955, 2147483648
    %v1958 = vmul.f32 %v1956, 1.442695
    %v1959 = vpow.pop %v1958
    %v1960 = vmul.f32 %v1957, 1.442695
    %v1961 = vpow.pop %v1960
    %v1962 = vadd.f32 %v1959, 1.0
    %v1963 = vadd.f32 %v1961, 1.0
    %v1964 = vrcp.pop %v1962
    %v1965 = vmul.f32 %v1962, %v1964
    %v1966 = vsub.f32 1.0, %v1965
    %v1967 = vmul.f32 %v1964, %v1966
    %v1968 = vadd.f32 %v1964, %v1967
    %vm1969 = vweird.f32 %v1962
    %vm1970 = vweird.f32 %v1964
    %vm1971 = vmor %vm1969, %vm1970
    %v1972 = vsel %vm1971, %v1964, %v1968
    %v1973 = vand.u32 2147483647, %v1962
    %vm1974 = vcmp.eq.f32.partialorder %v1973, 8.507059e+37
    %v1975 = vand.u32 %v1962, 2147483648
    %v1976 = vor.u32 1.1754944e-38, %v1975
    %v1977 = vsel %vm1974, %v1976, %v1972
    %v1978 = vmul.f32 1.0, %v1977
    %v1979 = vrcp.pop %v1963
    %v1980 = vmul.f32 %v1963, %v1979
    %v1981 = vsub.f32 1.0, %v1980
    %v1982 = vmul.f32 %v1979, %v1981
    %v1983 = vadd.f32 %v1979, %v1982
    %vm1984 = vweird.f32 %v1963
    %vm1985 = vweird.f32 %v1979
    %vm1986 = vmor %vm1984, %vm1985
    %v1987 = vsel %vm1986, %v1979, %v1983
    %v1988 = vand.u32 2147483647, %v1963
    %vm1989 = vcmp.eq.f32.partialorder %v1988, 8.507059e+37
    %v1990 = vand.u32 %v1963, 2147483648
    %v1991 = vor.u32 1.1754944e-38, %v1990
    %v1992 = vsel %vm1989, %v1991, %v1987
    %v1993 = vmul.f32 1.0, %v1992
    %1994 = vrot.lane.b32.xlu0 %v1557, 32
    %v1995 = vpop.permute.xlu0 %1994
    %1996 = vrot.lane.b32.xlu0 %v1560, 32
    %v1997 = vpop.permute.xlu0 %1996
    %v2000 = vmul.f32 %v1978, %v1995
    %v2001 = vmul.f32 %v1993, %v1997
    %2004 = vrot.lane.b32.xlu0 %v2000, 64
    %v2005 = vpop.permute.xlu0 %2004
    %2006 = vrot.lane.b32.xlu0 %v2001, 64
    %v2007 = vpop.permute.xlu0 %2006
    %v2010 = vadd.f32 %v1941, %v2005
    %v2011 = vadd.f32 %v1944, %v2007
    %v2012 = vtanh.pop %v2010
    %v2013 = vtanh.pop %v2011
    %v2014 = vsub.f32 1.0, %v1978
    %v2015 = vsub.f32 1.0, %v1993
    %2018 = vrot.lane.b32.xlu0 %v2012, 96
    %v2019 = vpop.permute.xlu0 %2018
    %2020 = vrot.lane.b32.xlu0 %v2013, 96
    %v2021 = vpop.permute.xlu0 %2020
    %v2024 = vmul.f32 %v2014, %v2019
    %v2025 = vmul.f32 %v2015, %v2021
    %2026 = vrot.lane.b32.xlu0 %v1521, 32
    %v2027 = vpop.permute.xlu0 %2026
    %2028 = vrot.lane.b32.xlu0 %v1522, 32
    %v2029 = vpop.permute.xlu0 %2028
    %v2032 = vmul.f32 %v1978, %v2027
    %v2033 = vmul.f32 %v1993, %v2029
    %v2034 = vadd.f32 %v2024, %v2032
    %v2035 = vadd.f32 %v2025, %v2033
    %v2036 = vperm.slane %v144, 0
    %v2037 = vlaneseq
    %v2038 = vshrl.u32 %v2037, 7
    %2040 = vset.pattern.permute.xlu0 %v2038
    %2041 = vperm.xlu0 %2040, %v2036
    %v2042 = vpop.permute.xlu0 %2041
    %v2043 = vperm.slane %v144, 1
    %v2044 = vlaneseq
    %v2045 = vshrl.u32 %v2044, 7
    %2047 = vset.pattern.permute.xlu0 %v2045
    %2048 = vperm.xlu0 %2047, %v2043
    %v2049 = vpop.permute.xlu0 %2048
    %vm2050 = vcmp.gt.f32.partialorder %v2042, 0.0
    %vm2051 = vcmp.gt.f32.partialorder %v2049, 0.0
    %v2052 = vsel %vm2050, 1, 0
    %v2053 = vsel %vm2051, 1, 0
    %vm2054 = vcmp.eq.s32.totalorder %v2052, 1
    %vm2055 = vcmp.eq.s32.totalorder %v2053, 1
    %v2056 = vsel %vm2054, %v140, -1e+30
    %v2057 = vsel %vm2055, %v140, -1e+30
    %v2058 = vsel %vm167, %v2056, -inf
    %v2059 = vrot.slane %v2058, 4
    %v2060 = vmax.f32 %v2058, %v2059
    %v2061 = vrot.slane %v2060, 2
    %v2062 = vmax.f32 %v2060, %v2061
    %v2063 = vrot.slane %v2062, 1
    %v2064 = vmax.f32 %v2062, %v2063
    %v2065 = vsel %vm167, %v2057, -inf
    %v2066 = vrot.slane %v2065, 4
    %v2067 = vmax.f32 %v2065, %v2066
    %v2068 = vrot.slane %v2067, 2
    %v2069 = vmax.f32 %v2067, %v2068
    %v2070 = vrot.slane %v2069, 1
    %v2071 = vmax.f32 %v2069, %v2070
    %v2072 = vmax.f32 %v2064, -1e+30
    %v2073 = vmax.f32 %v2071, -1e+30
    %v2074 = vlaneseq
    %v2075 = vshrl.u32 %v2074, 7
    %v2076 = vadd.s32 %v2075, 8
    %2077 = vset.pattern.permute.xlu0 %v2076
    %2078 = vperm.xlu0 %2077, %v2036
    %v2079 = vpop.permute.xlu0 %2078
    %v2080 = vlaneseq
    %v2081 = vshrl.u32 %v2080, 7
    %v2082 = vadd.s32 %v2081, 8
    %2083 = vset.pattern.permute.xlu0 %v2082
    %2084 = vperm.xlu0 %2083, %v2043
    %v2085 = vpop.permute.xlu0 %2084
    %vm2086 = vcmp.gt.f32.partialorder %v2079, 0.0
    %vm2087 = vcmp.gt.f32.partialorder %v2085, 0.0
    %v2088 = vsel %vm2086, 1, 0
    %v2089 = vsel %vm2087, 1, 0
    %vm2090 = vcmp.eq.s32.totalorder %v2088, 1
    %vm2091 = vcmp.eq.s32.totalorder %v2089, 1
    %v2092 = vsel %vm2090, %v141, -1e+30
    %v2093 = vsel %vm2091, %v141, -1e+30
    %v2094 = vsel %vm167, %v2092, -inf
    %v2095 = vrot.slane %v2094, 4
    %v2096 = vmax.f32 %v2094, %v2095
    %v2097 = vrot.slane %v2096, 2
    %v2098 = vmax.f32 %v2096, %v2097
    %v2099 = vrot.slane %v2098, 1
    %v2100 = vmax.f32 %v2098, %v2099
    %v2101 = vsel %vm167, %v2093, -inf
    %v2102 = vrot.slane %v2101, 4
    %v2103 = vmax.f32 %v2101, %v2102
    %v2104 = vrot.slane %v2103, 2
    %v2105 = vmax.f32 %v2103, %v2104
    %v2106 = vrot.slane %v2105, 1
    %v2107 = vmax.f32 %v2105, %v2106
    %v2108 = vmax.f32 %v2072, %v2100
    %v2109 = vmax.f32 %v2073, %v2107
    %v2110 = vsel %vm158, 1, 0
    %vm2111 = vcmp.eq.s32.totalorder %v2110, 1
    %v2114 = vsel %vm809, %v2109, %v2108
    %v2116 = vsel %vm2111, %v2114, 0.0
    %v2118 = vsel %vm145, %v144, 0
    %2120 = vmatpush.msra.mxu0 0.0
    %2121 = vmatpush.msra.mxu0 0.0
    %2122 = vmatpush.msra.mxu0 0.0
    %2123 = vmatpush.msra.mxu0 0.0
    %2124 = vmatpush.msra.mxu0 0.0
    %2125 = vmatpush.msra.mxu0 0.0
    %2126 = vmatpush.msra.mxu0 0.0
    %2127 = vmatpush.msra.mxu0 0.0
    %2128 = vmatpush.msra.mxu0 0.0
    %2129 = vmatpush.msra.mxu0 0.0
    %2130 = vmatpush.msra.mxu0 0.0
    %2131 = vmatpush.msra.mxu0 0.0
    %2132 = vmatpush.msra.mxu0 0.0
    %2133 = vmatpush.msra.mxu0 0.0
    %2134 = vmatpush.msra.mxu0 %v141
    %2135 = vmatpush.msra.mxu0 %v140
    %2136 = vmatmul.f32.gmra.mxu0 %v2118
    %v2137 = vpop.f32.mrf.mxu0
    %v2138 = vadd.f32 %v2116, %v2137
    %2139 = vdwg.mxu0
    %v2140 = vsel %vm2054, %v988, -1e+30
    %v2141 = vsel %vm2055, %v988, -1e+30
    %vm2142 = vcmask 523520
    %v2143 = vsel %vm2142, %v2140, -inf
    %v2144 = vrot.slane %v2143, 4
    %v2145 = vmax.f32 %v2143, %v2144
    %v2146 = vrot.slane %v2145, 2
    %v2147 = vmax.f32 %v2145, %v2146
    %v2148 = vrot.slane %v2147, 1
    %v2149 = vmax.f32 %v2147, %v2148
    %v2150 = vsel %vm2142, %v2141, -inf
    %v2151 = vrot.slane %v2150, 4
    %v2152 = vmax.f32 %v2150, %v2151
    %v2153 = vrot.slane %v2152, 2
    %v2154 = vmax.f32 %v2152, %v2153
    %v2155 = vrot.slane %v2154, 1
    %v2156 = vmax.f32 %v2154, %v2155
    %v2157 = vmax.f32 %v2149, -1e+30
    %v2158 = vmax.f32 %v2156, -1e+30
    %v2159 = vsel %vm2090, %v989, -1e+30
    %v2160 = vsel %vm2091, %v989, -1e+30
    %v2161 = vsel %vm2142, %v2159, -inf
    %v2162 = vrot.slane %v2161, 4
    %v2163 = vmax.f32 %v2161, %v2162
    %v2164 = vrot.slane %v2163, 2
    %v2165 = vmax.f32 %v2163, %v2164
    %v2166 = vrot.slane %v2165, 1
    %v2167 = vmax.f32 %v2165, %v2166
    %v2168 = vsel %vm2142, %v2160, -inf
    %v2169 = vrot.slane %v2168, 4
    %v2170 = vmax.f32 %v2168, %v2169
    %v2171 = vrot.slane %v2170, 2
    %v2172 = vmax.f32 %v2170, %v2171
    %v2173 = vrot.slane %v2172, 1
    %v2174 = vmax.f32 %v2172, %v2173
    %v2175 = vmax.f32 %v2157, %v2167
    %v2176 = vmax.f32 %v2158, %v2174
    %v2179 = vsel %vm809, %v2176, %v2175
    %2180 = vrot.lane.b32.xlu0 %v2179, 96
    %v2181 = vpop.permute.xlu0 %2180
    %v2183 = vsel %vm2111, %v2181, 0.0
    %2184 = vmatpush.msra.mxu0 0.0
    %2185 = vmatpush.msra.mxu0 0.0
    %2186 = vmatpush.msra.mxu0 0.0
    %2187 = vmatpush.msra.mxu0 0.0
    %2188 = vmatpush.msra.mxu0 0.0
    %2189 = vmatpush.msra.mxu0 0.0
    %2190 = vmatpush.msra.mxu0 0.0
    %2191 = vmatpush.msra.mxu0 0.0
    %2192 = vmatpush.msra.mxu0 0.0
    %2193 = vmatpush.msra.mxu0 0.0
    %2194 = vmatpush.msra.mxu0 0.0
    %2195 = vmatpush.msra.mxu0 0.0
    %2196 = vmatpush.msra.mxu0 0.0
    %2197 = vmatpush.msra.mxu0 0.0
    %2198 = vmatpush.msra.mxu0 %v995
    %2199 = vmatpush.msra.mxu0 %v993
    %2200 = vmatmul.f32.gmra.mxu0 %v2118
    %v2201 = vpop.f32.mrf.mxu0
    %v2202 = vadd.f32 %v2183, %v2201
    %2203 = vdwg.mxu0
    %v2204 = vsel %vm2054, %v1511, -1e+30
    %v2205 = vsel %vm2055, %v1511, -1e+30
    %v2206 = vsel %vm2142, %v2204, -inf
    %v2207 = vrot.slane %v2206, 4
    %v2208 = vmax.f32 %v2206, %v2207
    %v2209 = vrot.slane %v2208, 2
    %v2210 = vmax.f32 %v2208, %v2209
    %v2211 = vrot.slane %v2210, 1
    %v2212 = vmax.f32 %v2210, %v2211
    %v2213 = vsel %vm2142, %v2205, -inf
    %v2214 = vrot.slane %v2213, 4
    %v2215 = vmax.f32 %v2213, %v2214
    %v2216 = vrot.slane %v2215, 2
    %v2217 = vmax.f32 %v2215, %v2216
    %v2218 = vrot.slane %v2217, 1
    %v2219 = vmax.f32 %v2217, %v2218
    %v2220 = vmax.f32 %v2212, -1e+30
    %v2221 = vmax.f32 %v2219, -1e+30
    %v2222 = vsel %vm2090, %v1512, -1e+30
    %v2223 = vsel %vm2091, %v1512, -1e+30
    %v2224 = vsel %vm2142, %v2222, -inf
    %v2225 = vrot.slane %v2224, 4
    %v2226 = vmax.f32 %v2224, %v2225
    %v2227 = vrot.slane %v2226, 2
    %v2228 = vmax.f32 %v2226, %v2227
    %v2229 = vrot.slane %v2228, 1
    %v2230 = vmax.f32 %v2228, %v2229
    %v2231 = vsel %vm2142, %v2223, -inf
    %v2232 = vrot.slane %v2231, 4
    %v2233 = vmax.f32 %v2231, %v2232
    %v2234 = vrot.slane %v2233, 2
    %v2235 = vmax.f32 %v2233, %v2234
    %v2236 = vrot.slane %v2235, 1
    %v2237 = vmax.f32 %v2235, %v2236
    %v2238 = vmax.f32 %v2220, %v2230
    %v2239 = vmax.f32 %v2221, %v2237
    %v2242 = vsel %vm809, %v2239, %v2238
    %2243 = vrot.lane.b32.xlu0 %v2242, 96
    %v2244 = vpop.permute.xlu0 %2243
    %v2246 = vsel %vm2111, %v2244, 0.0
    %2247 = vmatpush.msra.mxu0 0.0
    %2248 = vmatpush.msra.mxu0 0.0
    %2249 = vmatpush.msra.mxu0 0.0
    %2250 = vmatpush.msra.mxu0 0.0
    %2251 = vmatpush.msra.mxu0 0.0
    %2252 = vmatpush.msra.mxu0 0.0
    %2253 = vmatpush.msra.mxu0 0.0
    %2254 = vmatpush.msra.mxu0 0.0
    %2255 = vmatpush.msra.mxu0 0.0
    %2256 = vmatpush.msra.mxu0 0.0
    %2257 = vmatpush.msra.mxu0 0.0
    %2258 = vmatpush.msra.mxu0 0.0
    %2259 = vmatpush.msra.mxu0 0.0
    %2260 = vmatpush.msra.mxu0 0.0
    %2261 = vmatpush.msra.mxu0 %v1518
    %2262 = vmatpush.msra.mxu0 %v1516
    %2263 = vmatmul.f32.gmra.mxu0 %v2118
    %v2264 = vpop.f32.mrf.mxu0
    %v2265 = vadd.f32 %v2246, %v2264
    %2266 = vdwg.mxu0
    %v2267 = vsel %vm2054, %v2034, -1e+30
    %v2268 = vsel %vm2055, %v2034, -1e+30
    %v2269 = vsel %vm2142, %v2267, -inf
    %v2270 = vrot.slane %v2269, 4
    %v2271 = vmax.f32 %v2269, %v2270
    %v2272 = vrot.slane %v2271, 2
    %v2273 = vmax.f32 %v2271, %v2272
    %v2274 = vrot.slane %v2273, 1
    %v2275 = vmax.f32 %v2273, %v2274
    %v2276 = vsel %vm2142, %v2268, -inf
    %v2277 = vrot.slane %v2276, 4
    %v2278 = vmax.f32 %v2276, %v2277
    %v2279 = vrot.slane %v2278, 2
    %v2280 = vmax.f32 %v2278, %v2279
    %v2281 = vrot.slane %v2280, 1
    %v2282 = vmax.f32 %v2280, %v2281
    %v2283 = vmax.f32 %v2275, -1e+30
    %v2284 = vmax.f32 %v2282, -1e+30
    %v2285 = vsel %vm2090, %v2035, -1e+30
    %v2286 = vsel %vm2091, %v2035, -1e+30
    %v2287 = vsel %vm2142, %v2285, -inf
    %v2288 = vrot.slane %v2287, 4
    %v2289 = vmax.f32 %v2287, %v2288
    %v2290 = vrot.slane %v2289, 2
    %v2291 = vmax.f32 %v2289, %v2290
    %v2292 = vrot.slane %v2291, 1
    %v2293 = vmax.f32 %v2291, %v2292
    %v2294 = vsel %vm2142, %v2286, -inf
    %v2295 = vrot.slane %v2294, 4
    %v2296 = vmax.f32 %v2294, %v2295
    %v2297 = vrot.slane %v2296, 2
    %v2298 = vmax.f32 %v2296, %v2297
    %v2299 = vrot.slane %v2298, 1
    %v2300 = vmax.f32 %v2298, %v2299
    %v2301 = vmax.f32 %v2283, %v2293
    %v2302 = vmax.f32 %v2284, %v2300
    %v2305 = vsel %vm809, %v2302, %v2301
    %2306 = vrot.lane.b32.xlu0 %v2305, 96
    %v2307 = vpop.permute.xlu0 %2306
    %v2309 = vsel %vm2111, %v2307, 0.0
    %2312 = vrot.lane.b32.xlu0 %v2034, 96
    %v2313 = vpop.permute.xlu0 %2312
    %2314 = vrot.lane.b32.xlu0 %v2035, 96
    %v2315 = vpop.permute.xlu0 %2314
    %2318 = vmatpush.msra.mxu0 0.0
    %2319 = vmatpush.msra.mxu0 0.0
    %2320 = vmatpush.msra.mxu0 0.0
    %2321 = vmatpush.msra.mxu0 0.0
    %2322 = vmatpush.msra.mxu0 0.0
    %2323 = vmatpush.msra.mxu0 0.0
    %2324 = vmatpush.msra.mxu0 0.0
    %2325 = vmatpush.msra.mxu0 0.0
    %2326 = vmatpush.msra.mxu0 0.0
    %2327 = vmatpush.msra.mxu0 0.0
    %2328 = vmatpush.msra.mxu0 0.0
    %2329 = vmatpush.msra.mxu0 0.0
    %2330 = vmatpush.msra.mxu0 0.0
    %2331 = vmatpush.msra.mxu0 0.0
    %2332 = vmatpush.msra.mxu0 %v2315
    %2333 = vmatpush.msra.mxu0 %v2313
    %2334 = vmatmul.f32.gmra.mxu0 %v2118
    %v2335 = vpop.f32.mrf.mxu0
    %v2336 = vadd.f32 %v2309, %v2335
    %2337 = vdwg.mxu0
    %2339 = vrot.lane.b32.xlu0 %v2202, 32
    %v2340 = vpop.permute.xlu0 %2339
    %2343 = vrot.lane.b32.xlu0 %v2265, 64
    %v2344 = vpop.permute.xlu0 %2343
    %2347 = vrot.lane.b32.xlu0 %v2336, 96
    %v2348 = vpop.permute.xlu0 %2347
    %v2350 = vsel %vm167, %v2138, %v2340
    %vm2351 = vcmask 523264
    %v2352 = vsel %vm2351, %v2350, %v2344
    %vm2353 = vcmask 785408
    %v2354 = vsel %vm2353, %v2352, %v2348
    %2355 = vst [vmem:[#allocation13] sm:$0x3] %v2354
    %v2356 = vld [vmem:[%s7] sm:$0xff]
    %v2357 = vld [vmem:[%s7 + $0x8] sm:$0xff]
    %v2358 = vld [vmem:[%s7 + $0x10] sm:$0xff]
    %v2359 = vld [vmem:[%s7 + $0x18] sm:$0xff]
    %v2360 = vld [vmem:[%s7 + $0x20] sm:$0xff]
    %v2361 = vld [vmem:[%s7 + $0x28] sm:$0xff]
    %v2362 = vld [vmem:[%s7 + $0x30] sm:$0xff]
    %v2363 = vld [vmem:[%s7 + $0x38] sm:$0xff]
    %v2364 = vld [vmem:[%s7 + $0x40] sm:$0xff]
    %v2365 = vld [vmem:[%s7 + $0x48] sm:$0xff]
    %v2366 = vld [vmem:[%s7 + $0x50] sm:$0xff]
    %v2367 = vld [vmem:[%s7 + $0x58] sm:$0xff]
    %v2368 = vld [vmem:[%s7 + $0x60] sm:$0xff]
    %v2369 = vld [vmem:[%s7 + $0x68] sm:$0xff]
    %v2370 = vld [vmem:[%s7 + $0x70] sm:$0xff]
    %v2371 = vld [vmem:[%s7 + $0x78] sm:$0xff]
    %v2372 = vld [vmem:[%s8] sm:$0x1]
    %v2374 = vperm.slane %v2372, 0
    %2376 = vmatpush.msra.mxu0 %v2371
    %2377 = vmatpush.msra.mxu0 %v2370
    %2378 = vmatpush.msra.mxu0 %v2369
    %2379 = vmatpush.msra.mxu0 %v2368
    %2380 = vmatpush.msra.mxu0 %v2367
    %2381 = vmatpush.msra.mxu0 %v2366
    %2382 = vmatpush.msra.mxu0 %v2365
    %2383 = vmatpush.msra.mxu0 %v2364
    %2384 = vmatpush.msra.mxu0 %v2363
    %2385 = vmatpush.msra.mxu0 %v2362
    %2386 = vmatpush.msra.mxu0 %v2361
    %2387 = vmatpush.msra.mxu0 %v2360
    %2388 = vmatpush.msra.mxu0 %v2359
    %2389 = vmatpush.msra.mxu0 %v2358
    %2390 = vmatpush.msra.mxu0 %v2357
    %2391 = vmatpush.msra.mxu0 %v2356
    %2392 = vmatmul.f32.gmra.mxu0 %v2354
    %v2393 = vpop.f32.mrf.mxu0
    %v2394 = vadd.f32 %v2374, %v2393
    %2395 = vdwg.mxu0
    %v2396 = vmul.f32 %v2394, %v2394
    %v2397 = vmul.f32 %v2394, %v2396
    %v2398 = vmul.f32 %v2397, 0.044715
    %v2399 = vadd.f32 %v2394, %v2398
    %v2400 = vmul.f32 %v2399, 0.7978846
    %v2401 = vtanh.pop %v2400
    %v2402 = vadd.f32 %v2401, 1.0
    %v2403 = vmul.f32 %v2402, 0.5
    %v2404 = vmul.f32 %v2394, %v2403
    %v2405 = vld [vmem:[%s9] sm:$0xff]
    %v2406 = vld [vmem:[%s9 + $0x8] sm:$0xff]
    %v2407 = vld [vmem:[%s9 + $0x10] sm:$0xff]
    %v2408 = vld [vmem:[%s9 + $0x18] sm:$0xff]
    %v2409 = vld [vmem:[#allocation11] sm:$0x1]
    %v2411 = vperm.slane %v2409, 0
    %v2414 = vsel %vm167, %v2404, 0
    %2416 = vmatpush.msra.mxu0 0.0
    %2417 = vmatpush.msra.mxu0 0.0
    %2418 = vmatpush.msra.mxu0 0.0
    %2419 = vmatpush.msra.mxu0 0.0
    %2420 = vmatpush.msra.mxu0 0.0
    %2421 = vmatpush.msra.mxu0 0.0
    %2422 = vmatpush.msra.mxu0 0.0
    %2423 = vmatpush.msra.mxu0 0.0
    %2424 = vmatpush.msra.mxu0 0.0
    %2425 = vmatpush.msra.mxu0 0.0
    %2426 = vmatpush.msra.mxu0 0.0
    %2427 = vmatpush.msra.mxu0 0.0
    %2428 = vmatpush.msra.mxu0 %v2408
    %2429 = vmatpush.msra.mxu0 %v2407
    %2430 = vmatpush.msra.mxu0 %v2406
    %2431 = vmatpush.msra.mxu0 %v2405
    %2432 = vmatmul.f32.gmra.mxu0 %v2414
    %v2433 = vpop.f32.mrf.mxu0
    %v2434 = vadd.f32 %v2411, %v2433
    %2435 = vdwg.mxu0
    %v2436 = vmul.f32 %v2434, %v2434
    %v2437 = vmul.f32 %v2434, %v2436
    %v2438 = vmul.f32 %v2437, 0.044715
    %v2439 = vadd.f32 %v2434, %v2438
    %v2440 = vmul.f32 %v2439, 0.7978846
    %v2441 = vtanh.pop %v2440
    %v2442 = vadd.f32 %v2441, 1.0
    %v2443 = vmul.f32 %v2442, 0.5
    %v2444 = vmul.f32 %v2434, %v2443
    %v2445 = vld [vmem:[%s11] sm:$0xff]
    %v2446 = vld [vmem:[%s11 + $0x8] sm:$0xff]
    %v2447 = vld [vmem:[%s11 + $0x10] sm:$0xff]
    %v2448 = vld [vmem:[%s11 + $0x18] sm:$0xff]
    %v2449 = vld [vmem:[%s12] sm:$0x1]
    %v2451 = vperm.slane %v2449, 0
    %v2454 = vsel %vm167, %v2444, 0
    %2456 = vmatpush.msra.mxu0 0.0
    %2457 = vmatpush.msra.mxu0 0.0
    %2458 = vmatpush.msra.mxu0 0.0
    %2459 = vmatpush.msra.mxu0 0.0
    %2460 = vmatpush.msra.mxu0 0.0
    %2461 = vmatpush.msra.mxu0 0.0
    %2462 = vmatpush.msra.mxu0 0.0
    %2463 = vmatpush.msra.mxu0 0.0
    %2464 = vmatpush.msra.mxu0 0.0
    %2465 = vmatpush.msra.mxu0 0.0
    %2466 = vmatpush.msra.mxu0 0.0
    %2467 = vmatpush.msra.mxu0 0.0
    %2468 = vmatpush.msra.mxu0 %v2448
    %2469 = vmatpush.msra.mxu0 %v2447
    %2470 = vmatpush.msra.mxu0 %v2446
    %2471 = vmatpush.msra.mxu0 %v2445
    %2472 = vmatmul.f32.gmra.mxu0 %v2454
    %v2473 = vpop.f32.mrf.mxu0
    %v2474 = vadd.f32 %v2451, %v2473
    %2475 = vdwg.mxu0
    %2476 = vst [vmem:[#allocation14] sm:$0x3] %v2474
    // Predicated region
    $region78: #{model_4v4_forward.1} parent=1 // pred_check
      _
    $region79: #{model_4v4_forward.1} parent=1 // pred_check_branch
      %2478 = sbr.rel (0) target = $region81
    $region80: #{model_4v4_forward.1} parent=1 // pred_region
      %2480 = vsyncadd [#allocation4], 0
      %s2482 = sshll.u32 [#allocation13], 4
      %s2483 = int_to_ptr.vmem [resolvable:$true] %s2482
      %s2484 = sshll.u32 %s13, 4
      %s2485 = int_to_ptr.hbm [resolvable:$true] %s2484
      %2487 = dma.vmem_to_hbm [thread:$0]  %s2483, 32, %s2485, [#allocation4]
    $region81: #{model_4v4_forward.1} parent=1 // pred_fallthru
      _
    // Predicated region
    $region82: #{model_4v4_forward.1} parent=1 // pred_check
      _
    $region83: #{model_4v4_forward.1} parent=1 // pred_check_branch
      %2489 = sbr.rel (0) target = $region85
    $region84: #{model_4v4_forward.1} parent=1 // pred_region
      %2491 = vsyncadd [#allocation15], 0
      %s2493 = sshll.u32 [#allocation14], 4
      %s2494 = int_to_ptr.vmem [resolvable:$true] %s2493
      %s2495 = sshll.u32 %s14, 4
      %s2496 = int_to_ptr.hbm [resolvable:$true] %s2495
      %2498 = dma.vmem_to_hbm [thread:$0]  %s2494, 32, %s2496, [#allocation15]
    $region85: #{model_4v4_forward.1} parent=1 // pred_fallthru
      _
    // Predicated region
    $region86: #{model_4v4_forward.1} parent=1 // pred_check
      _
    $region87: #{model_4v4_forward.1} parent=1 // pred_check_branch
      %2500 = sbr.rel (0) target = $region89
    $region88: #{model_4v4_forward.1} parent=1 // pred_region
      %2502 = dma.done [#allocation4], 32
    $region89: #{model_4v4_forward.1} parent=1 // pred_fallthru
      _
    // Predicated region
    $region90: #{model_4v4_forward.1} parent=1 // pred_check
      _
    $region91: #{model_4v4_forward.1} parent=1 // pred_check_branch
      %2504 = sbr.rel (0) target = $region93
    $region92: #{model_4v4_forward.1} parent=1 // pred_region
      %2506 = dma.done [#allocation15], 32
    $region93: #{model_4v4_forward.1} parent=1 // pred_fallthru
      _
    %2507 = vsyncpa [#allocation3], 1
    %2508 = vsyncpa [#allocation6], 1
    %2509 = vsyncpa [#allocation9], 1
    %2510 = vsyncpa [#allocation12], 1
    %2511 = vsyncpa [#allocation4], 1
    %2512 = vsyncpa [#allocation15], 1

</llo_original>
